<compile_context>
chip_gen: v5e
topology: v5e:2x2
jax: 0.10.0
libtpu: 0.0.40
codegen_flags: <defaults>
</compile_context>

<pallas_src>
import math
import functools

import jax
import jax.numpy as jnp
from jax.experimental import pallas as pl
from jax.experimental.pallas import tpu as pltpu


# ----------------------------------------------------------------------------
# In-kernel math helpers (VPU / EUP ops only).
# ----------------------------------------------------------------------------
def _gelu_tanh(x):
    # tanh-approx GELU (tanh goes to the EUP slot); within ~3e-3 of erf GELU.
    c = jnp.float32(math.sqrt(2.0 / math.pi))
    return 0.5 * x * (1.0 + jnp.tanh(c * (x + jnp.float32(0.044715) * x * x * x)))


def _layernorm(x, gamma, beta, eps=1e-12):
    mean = jnp.mean(x, axis=-1, keepdims=True)
    xc = x - mean
    var = jnp.mean(xc * xc, axis=-1, keepdims=True)
    return xc * jax.lax.rsqrt(var + eps) * gamma + beta


# ----------------------------------------------------------------------------
# Fused BERT-layer kernel.  One grid step == (batch element, query tile).
# ----------------------------------------------------------------------------
def bert_layer_kernel(xq_ref, xf_ref, mask_ref,
                      wq_ref, bq_ref, wk_ref, bk_ref, wv_ref, bv_ref,
                      wao3_ref, bao_ref, g1_ref, b1_ref,
                      wi_ref, bi_ref, wo_ref, bo_ref, g2_ref, b2_ref,
                      out_ref,
                      q_hm_ref, k_hm_ref, v_hm_ref,
                      *, num_heads, k_tile, num_k_tiles):
    nh, tk, n_kt = num_heads, k_tile, num_k_tiles
    xq = xq_ref[0]                       # (tq, H) f32 query rows (+ residual)
    tq, H = xq.shape
    hd = H // nh
    scale = jnp.float32(1.0 / math.sqrt(hd))

    # --- K / V for the full sequence: compute once per batch element --------
    # NOTE: correct only while the query grid axis is "arbitrary" (sequential
    # per batch element on one core).  Do NOT mark that axis "parallel".
    @pl.when(pl.program_id(1) == 0)
    def _compute_kv():
        xf = xf_ref[0]                                            # (S, H) bf16
        k = jnp.dot(xf, wk_ref[...],
                    preferred_element_type=jnp.float32) + bk_ref[...]
        v = jnp.dot(xf, wv_ref[...],
                    preferred_element_type=jnp.float32) + bv_ref[...]
        kb = k.astype(jnp.bfloat16)
        vb = v.astype(jnp.bfloat16)
        for h in range(nh):           # static unroll: lane-slice copies only
            k_hm_ref[h] = kb[:, h * hd:(h + 1) * hd]
            v_hm_ref[h] = vb[:, h * hd:(h + 1) * hd]

    # --- Q projection for this query tile (bf16 MXU, f32 accumulation) ------
    q = jnp.dot(xq.astype(jnp.bfloat16), wq_ref[...],
                preferred_element_type=jnp.float32) + bq_ref[...]
    qb = (q * scale).astype(jnp.bfloat16)        # fold 1/sqrt(hd) into Q
    for h in range(nh):
        q_hm_ref[h] = qb[:, h * hd:(h + 1) * hd]
    q_hm = q_hm_ref[...]                                   # (nh, tq, hd) bf16

    # --- flash-style attention: online softmax over key tiles ---------------
    # TODO(synk): on v6e/v7x do the exp in bf16 (packed EUP path); kept f32
    # here to stay generation-agnostic (v5e has no bf16 EUP).
    def kv_step(kt, carry):
        m_prev, l_prev, acc_prev = carry
        off = kt * tk
        if not isinstance(kt, int):
            off = pl.multiple_of(off, tk)
        k_blk = k_hm_ref[:, pl.ds(off, tk), :]             # (nh, tk, hd) bf16
        v_blk = v_hm_ref[:, pl.ds(off, tk), :]
        msk = mask_ref[0, :, pl.ds(off, tk)]               # (1, tk) f32
        s = jnp.einsum('nqd,nkd->nqk', q_hm, k_blk,
                       preferred_element_type=jnp.float32)  # (nh, tq, tk)
        s = s + msk[None, :, :]
        m_new = jnp.maximum(m_prev, jnp.max(s, axis=-1, keepdims=True))
        alpha = jnp.exp(m_prev - m_new)
        p = jnp.exp(s - m_new)
        l_new = alpha * l_prev + jnp.sum(p, axis=-1, keepdims=True)
        acc_new = alpha * acc_prev + jnp.einsum(
            'nqk,nkd->nqd', p.astype(jnp.bfloat16), v_blk,
            preferred_element_type=jnp.float32)             # (nh, tq, hd)
        return m_new, l_new, acc_new

    carry = (jnp.full((nh, tq, 1), -1e30, jnp.float32),
             jnp.zeros((nh, tq, 1), jnp.float32),
             jnp.zeros((nh, tq, hd), jnp.float32))
    if n_kt == 1:
        carry = kv_step(0, carry)
    else:
        carry = jax.lax.fori_loop(0, n_kt, kv_step, carry, unroll=n_kt <= 4)
    _, l_i, acc = carry
    ctx = acc * pl.reciprocal(l_i, approx=True)             # (nh, tq, hd) f32

    # --- attention output dense: accumulate over heads (no ctx scatter) -----
    attn = jnp.dot(ctx[0].astype(jnp.bfloat16), wao3_ref[0],
                   preferred_element_type=jnp.float32)
    for h in range(1, nh):
        attn = attn + jnp.dot(ctx[h].astype(jnp.bfloat16), wao3_ref[h],
                              preferred_element_type=jnp.float32)
    attn = attn + bao_ref[...]
    attn = _layernorm(attn + xq, g1_ref[...], b1_ref[...])

    # --- intermediate dense + GELU, output dense + residual + LayerNorm -----
    inter = jnp.dot(attn.astype(jnp.bfloat16), wi_ref[...],
                    preferred_element_type=jnp.float32) + bi_ref[...]
    inter = _gelu_tanh(inter)
    out = jnp.dot(inter.astype(jnp.bfloat16), wo_ref[...],
                  preferred_element_type=jnp.float32) + bo_ref[...]
    out = _layernorm(out + attn, g2_ref[...], b2_ref[...])
    out_ref[0] = out.astype(out_ref.dtype)


# ----------------------------------------------------------------------------
# Wrapper
# ----------------------------------------------------------------------------
def _padded_bytes(shape, dtype):
    """VMEM footprint of a buffer including lane (128) / sublane padding."""
    item = jnp.dtype(dtype).itemsize
    sub = {1: 32, 2: 16, 4: 8}[item]
    dims = list(shape)
    dims[-1] = -(-dims[-1] // 128) * 128
    if len(dims) >= 2:
        dims[-2] = -(-dims[-2] // sub) * sub
    n = 1
    for d in dims:
        n *= int(d)
    return n * item


def bert_layer(x, mask, params, *, num_heads, q_tile=256, k_tile=512):
    B, S, H = x.shape
    I = params["wi"].shape[1]
    nh = num_heads
    assert H % nh == 0
    hd = H // nh

    # Query-tile streams the sequence (keep tq large: attention contraction
    # dim hd already underfeeds the MXU, so tq is what amortizes MXU passes).
    tq = q_tile if (S > q_tile and S % q_tile == 0) else S
    n_q = S // tq
    # Key-tile for the online softmax (lane-aligned for mask / K/V slicing).
    tk = k_tile if (S > k_tile and S % k_tile == 0 and k_tile % 128 == 0) else S
    n_kt = S // tk

    f32, bf16 = jnp.float32, jnp.bfloat16
    mask3 = mask.reshape(B, 1, S).astype(f32)
    x_bf16 = x.astype(bf16)                     # full-seq operand for K/V proj

    # bf16 weights (MXU inputs); biases / LayerNorm params stay f32.
    wq, wk, wv = (params[n].astype(bf16) for n in ("wq", "wk", "wv"))
    wi, wo = (params[n].astype(bf16) for n in ("wi", "wo"))
    wao3 = params["wao"].astype(bf16).reshape(nh, hd, H)   # head-sliced rows
    bq, bk, bv = (params[n].astype(f32) for n in ("bq", "bk", "bv"))
    bao, bi, bo = (params[n].astype(f32) for n in ("bao", "bi", "bo"))
    g1, b1, g2, b2 = (params[n].astype(f32) for n in ("g1", "b1", "g2", "b2"))

    # Cost hint for XLA scheduling around the fused call.
    flops = 2 * B * S * (4 * H * H + 2 * H * I + 2 * S * H)
    transcendentals = B * S * (nh * S + I)
    bytes_accessed = (2 * B * S * H * 4 + B * S * H * 2 + B * S * 4
                      + (4 * H * H + 2 * H * I) * 2 + (10 * H + I) * 4)
    cost = pl.CostEstimate(flops=flops, transcendentals=transcendentals,
                           bytes_accessed=bytes_accessed)

    kernel = functools.partial(bert_layer_kernel, num_heads=nh,
                               k_tile=tk, num_k_tiles=n_kt)

    def run(single_buffer_weights):
        def rep(shape):
            idx = lambda b, q, _n=len(shape): (0,) * _n
            if single_buffer_weights:
                # Grid-invariant block: one VMEM buffer is enough.
                return pl.BlockSpec(shape, idx, pipeline_mode=pl.Buffered(1))
            return pl.BlockSpec(shape, idx)

        in_specs = [
            pl.BlockSpec((1, tq, H), lambda b, q: (b, q, 0)),  # x: query tile
            pl.BlockSpec((1, S, H), lambda b, q: (b, 0, 0)),   # x: full seq bf16
            pl.BlockSpec((1, 1, S), lambda b, q: (b, 0, 0)),   # additive mask
            rep((H, H)), rep((1, H)),      # query  W, b
            rep((H, H)), rep((1, H)),      # key    W, b
            rep((H, H)), rep((1, H)),      # value  W, b
            rep((nh, hd, H)), rep((1, H)), # attn-out dense W (head-major), b
            rep((1, H)), rep((1, H)),      # LN1 gamma, beta
            rep((H, I)), rep((1, I)),      # intermediate W, b
            rep((I, H)), rep((1, H)),      # output dense W, b
            rep((1, H)), rep((1, H)),      # LN2 gamma, beta
        ]
        out_spec = pl.BlockSpec((1, tq, H), lambda b, q: (b, q, 0))

        scratch_shapes = [
            pltpu.VMEM((nh, tq, hd), bf16),   # Q, head-major
            pltpu.VMEM((nh, S, hd), bf16),    # K cache, head-major (per batch)
            pltpu.VMEM((nh, S, hd), bf16),    # V cache, head-major (per batch)
        ]

        # --- VMEM budget (lane/sublane padding included) ---------------------
        wfactor = 1 if single_buffer_weights else 2
        weight_bytes = (3 * _padded_bytes((H, H), bf16)
                        + _padded_bytes((nh, hd, H), bf16)
                        + _padded_bytes((H, I), bf16)
                        + _padded_bytes((I, H), bf16)
                        + 9 * _padded_bytes((1, H), f32)
                        + _padded_bytes((1, I), f32))
        stream_bytes = 2 * (2 * _padded_bytes((1, tq, H), f32)     # xq + out
                            + _padded_bytes((1, S, H), bf16)       # xf
                            + _padded_bytes((1, 1, S), f32))       # mask
        scratch_bytes = (_padded_bytes((nh, tq, hd), bf16)
                         + 2 * _padded_bytes((nh, S, hd), bf16))
        hd_pad = -(-hd // 128) * 128
        live_bytes = 4 * (2 * nh * tq * tk          # scores + probs (f32)
                          + 2 * nh * tq * hd_pad    # acc + ctx (f32)
                          + 2 * tq * I              # intermediate temps
                          + 4 * tq * H)             # attn / out temps
        est = (wfactor * weight_bytes + stream_bytes + scratch_bytes
               + live_bytes + (4 << 20))
        # Always pass a limit (v5e default scope is only 16 MiB); cap at
        # 56 MiB so it stays legal on v7x's 64 MiB physical VMEM.
        vmem_limit = int(min(max(est, 20 << 20), 56 << 20))

        return pl.pallas_call(
            kernel,
            out_shape=jax.ShapeDtypeStruct((B, S, H), x.dtype),
            grid=(B, n_q),
            in_specs=in_specs,
            out_specs=out_spec,
            scratch_shapes=scratch_shapes,
            compiler_params=pltpu.CompilerParams(
                # Query axis must stay "arbitrary" (KV cached at q == 0).
                dimension_semantics=("parallel", "arbitrary"),
                vmem_limit_bytes=vmem_limit),
            cost_estimate=cost,
        )(x, x_bf16, mask3,
          wq, bq, wk, bk, wv, bv, wao3, bao, g1, b1, wi, bi, wo, bo, g2, b2)

    try:
        out = run(True)
        jax.block_until_ready(out)
        return out
    except Exception:
        # TODO(synk): drop this fallback once single-buffered weight blocks
        # (pl.Buffered(1)) are confirmed on the deployed JAX/Mosaic version.
        return run(False)


# ----------------------------------------------------------------------------
# Pure-JAX reference (same math as the PyTorch module in eval mode, f32).
# ----------------------------------------------------------------------------
def bert_layer_ref(x, mask, params, *, num_heads):
    B, S, H = x.shape
    hd = H // num_heads
    P = jax.lax.Precision.HIGHEST

    def lin(t, w, b):
        return jnp.dot(t, w, precision=P) + b

    def ln(t, g, b):
        mu = t.mean(-1, keepdims=True)
        var = ((t - mu) ** 2).mean(-1, keepdims=True)
        return (t - mu) / jnp.sqrt(var + 1e-12) * g + b

    def heads(t):
        return t.reshape(B, S, num_heads, hd).transpose(0, 2, 1, 3)

    q = heads(lin(x, params["wq"], params["bq"]))
    k = heads(lin(x, params["wk"], params["bk"]))
    v = heads(lin(x, params["wv"], params["bv"]))
    scores = jnp.einsum("bhqd,bhkd->bhqk", q, k, precision=P) / math.sqrt(hd)
    scores = scores + mask[:, None, None, :]
    probs = jax.nn.softmax(scores, axis=-1)
    ctx = jnp.einsum("bhqk,bhkd->bhqd", probs, v, precision=P)
    ctx = ctx.transpose(0, 2, 1, 3).reshape(B, S, H)

    attn = ln(lin(ctx, params["wao"], params["bao"]) + x,
              params["g1"], params["b1"])
    inter = jax.nn.gelu(lin(attn, params["wi"], params["bi"]),
                        approximate=False)
    out = ln(lin(inter, params["wo"], params["bo"]) + attn,
             params["g2"], params["b2"])
    return out


if __name__ == "__main__":
    B, S, H, NH, I = 2, 8, 32, 4, 64   # batch, seq, hidden, heads, intermediate

    key = jax.random.PRNGKey(0)
    keys = jax.random.split(key, 16)

    def mk(k, shape, scale=0.02):
        return (scale * jax.random.normal(k, shape)).astype(jnp.float32)

    params = dict(
        wq=mk(keys[0], (H, H)),  bq=mk(keys[1], (1, H)),
        wk=mk(keys[2], (H, H)),  bk=mk(keys[3], (1, H)),
        wv=mk(keys[4], (H, H)),  bv=mk(keys[5], (1, H)),
        wao=mk(keys[6], (H, H)), bao=mk(keys[7], (1, H)),
        g1=jnp.ones((1, H), jnp.float32), b1=jnp.zeros((1, H), jnp.float32),
        wi=mk(keys[8], (H, I)),  bi=mk(keys[9], (1, I)),
        wo=mk(keys[10], (I, H)), bo=mk(keys[11], (1, H)),
        g2=jnp.ones((1, H), jnp.float32), b2=jnp.zeros((1, H), jnp.float32),
    )

    x = jax.random.normal(keys[12], (B, S, H), jnp.float32)
    # additive mask: 0 = attend, -10000 = masked (mask out last 2 keys of batch 1)
    mask = jnp.zeros((B, S), jnp.float32).at[1, -2:].set(-10000.0)

    out = bert_layer(x, mask, params, num_heads=NH)
    jax.block_until_ready(out)

    ref = bert_layer_ref(x, mask, params, num_heads=NH)
    assert out.shape == (B, S, H) and out.dtype == jnp.float32
    err = float(jnp.max(jnp.abs(out - ref)))
    # bf16 MXU inputs + tanh-GELU + approx reciprocal vs full-f32 exact-GELU ref.
    assert err < 1e-2, err

    print("KERNEL_OK")
</pallas_src>

<mosaic_0001>
module attributes {stable_mosaic.version = 11 : i64} {
  func.func @bert_layer_kernel(%arg0: i32, %arg1: i32, %arg2: memref<1x8x32xf32, #tpu.memory_space<vmem>>, %arg3: memref<1x8x32xbf16, #tpu.memory_space<vmem>>, %arg4: memref<1x1x8xf32, #tpu.memory_space<vmem>>, %arg5: memref<32x32xbf16, #tpu.memory_space<vmem>>, %arg6: memref<1x32xf32, #tpu.memory_space<vmem>>, %arg7: memref<32x32xbf16, #tpu.memory_space<vmem>>, %arg8: memref<1x32xf32, #tpu.memory_space<vmem>>, %arg9: memref<32x32xbf16, #tpu.memory_space<vmem>>, %arg10: memref<1x32xf32, #tpu.memory_space<vmem>>, %arg11: memref<4x8x32xbf16, #tpu.memory_space<vmem>>, %arg12: memref<1x32xf32, #tpu.memory_space<vmem>>, %arg13: memref<1x32xf32, #tpu.memory_space<vmem>>, %arg14: memref<1x32xf32, #tpu.memory_space<vmem>>, %arg15: memref<32x64xbf16, #tpu.memory_space<vmem>>, %arg16: memref<1x64xf32, #tpu.memory_space<vmem>>, %arg17: memref<64x32xbf16, #tpu.memory_space<vmem>>, %arg18: memref<1x32xf32, #tpu.memory_space<vmem>>, %arg19: memref<1x32xf32, #tpu.memory_space<vmem>>, %arg20: memref<1x32xf32, #tpu.memory_space<vmem>>, %arg21: memref<1x8x32xf32, #tpu.memory_space<vmem>>, %arg22: memref<4x8x8xbf16, #tpu.memory_space<vmem>>, %arg23: memref<4x8x8xbf16, #tpu.memory_space<vmem>>, %arg24: memref<4x8x8xbf16, #tpu.memory_space<vmem>>) attributes {dimension_semantics = [#tpu.dimension_semantics<parallel>, #tpu.dimension_semantics<arbitrary>], iteration_bounds = array<i64: 2, 1>, scalar_prefetch = 0 : i64, scratch_operands = 3 : i64, tpu.core_type = #tpu.core_type<tc>, window_params = [{transform_indices = @transform_0, window_bounds = array<i64: 1, 8, 32>}, {transform_indices = @transform_1, window_bounds = array<i64: 1, 8, 32>}, {transform_indices = @transform_2, window_bounds = array<i64: 1, 1, 8>}, {pipeline_mode = #tpu.pipeline_mode<synchronous>, transform_indices = @transform_3, window_bounds = array<i64: 32, 32>}, {pipeline_mode = #tpu.pipeline_mode<synchronous>, transform_indices = @transform_4, window_bounds = array<i64: 1, 32>}, {pipeline_mode = #tpu.pipeline_mode<synchronous>, transform_indices = @transform_5, window_bounds = array<i64: 32, 32>}, {pipeline_mode = #tpu.pipeline_mode<synchronous>, transform_indices = @transform_6, window_bounds = array<i64: 1, 32>}, {pipeline_mode = #tpu.pipeline_mode<synchronous>, transform_indices = @transform_7, window_bounds = array<i64: 32, 32>}, {pipeline_mode = #tpu.pipeline_mode<synchronous>, transform_indices = @transform_8, window_bounds = array<i64: 1, 32>}, {pipeline_mode = #tpu.pipeline_mode<synchronous>, transform_indices = @transform_9, window_bounds = array<i64: 4, 8, 32>}, {pipeline_mode = #tpu.pipeline_mode<synchronous>, transform_indices = @transform_10, window_bounds = array<i64: 1, 32>}, {pipeline_mode = #tpu.pipeline_mode<synchronous>, transform_indices = @transform_11, window_bounds = array<i64: 1, 32>}, {pipeline_mode = #tpu.pipeline_mode<synchronous>, transform_indices = @transform_12, window_bounds = array<i64: 1, 32>}, {pipeline_mode = #tpu.pipeline_mode<synchronous>, transform_indices = @transform_13, window_bounds = array<i64: 32, 64>}, {pipeline_mode = #tpu.pipeline_mode<synchronous>, transform_indices = @transform_14, window_bounds = array<i64: 1, 64>}, {pipeline_mode = #tpu.pipeline_mode<synchronous>, transform_indices = @transform_15, window_bounds = array<i64: 64, 32>}, {pipeline_mode = #tpu.pipeline_mode<synchronous>, transform_indices = @transform_16, window_bounds = array<i64: 1, 32>}, {pipeline_mode = #tpu.pipeline_mode<synchronous>, transform_indices = @transform_17, window_bounds = array<i64: 1, 32>}, {pipeline_mode = #tpu.pipeline_mode<synchronous>, transform_indices = @transform_18, window_bounds = array<i64: 1, 32>}, {transform_indices = @transform_19, window_bounds = array<i64: 1, 8, 32>}]} {
    %c0 = arith.constant 0 : index
    %c0_0 = arith.constant 0 : index
    %c0_1 = arith.constant 0 : index
    %0 = vector.load %arg2[%c0, %c0_0, %c0_1] : memref<1x8x32xf32, #tpu.memory_space<vmem>>, vector<1x8x32xf32>
    %1 = vector.shape_cast %0 : vector<1x8x32xf32> to vector<8x32xf32>
    %c0_i32 = arith.constant 0 : i32
    %2 = arith.cmpi eq, %arg1, %c0_i32 : i32
    %3 = arith.extui %2 : i1 to i32
    %c0_i32_2 = arith.constant 0 : i32
    %4 = arith.cmpi ne, %3, %c0_i32_2 : i32
    scf.if %4 {
      %c0_89 = arith.constant 0 : index
      %c0_90 = arith.constant 0 : index
      %c0_91 = arith.constant 0 : index
      %166 = vector.load %arg3[%c0_89, %c0_90, %c0_91] : memref<1x8x32xbf16, #tpu.memory_space<vmem>>, vector<1x8x32xbf16>
      %167 = vector.shape_cast %166 : vector<1x8x32xbf16> to vector<8x32xbf16>
      %c0_92 = arith.constant 0 : index
      %c0_93 = arith.constant 0 : index
      %168 = vector.load %arg7[%c0_92, %c0_93] : memref<32x32xbf16, #tpu.memory_space<vmem>>, vector<32x32xbf16>
      %cst_94 = arith.constant dense<0.000000e+00> : vector<8x32xf32>
      %169 = tpu.matmul %167, %168, %cst_94 {dimension_numbers = #tpu.dot_dimension_numbers<[1], [0], [0], [1], [0, 0, 1, 1], [], []>} : vector<8x32xbf16>, vector<32x32xbf16>, vector<8x32xf32> -> vector<8x32xf32>
      %c0_95 = arith.constant 0 : index
      %c0_96 = arith.constant 0 : index
      %170 = vector.load %arg8[%c0_95, %c0_96] : memref<1x32xf32, #tpu.memory_space<vmem>>, vector<1x32xf32>
      %171 = vector.broadcast %170 : vector<1x32xf32> to vector<8x32xf32>
      %172 = arith.addf %169, %171 : vector<8x32xf32>
      %c0_97 = arith.constant 0 : index
      %c0_98 = arith.constant 0 : index
      %173 = vector.load %arg9[%c0_97, %c0_98] : memref<32x32xbf16, #tpu.memory_space<vmem>>, vector<32x32xbf16>
      %cst_99 = arith.constant dense<0.000000e+00> : vector<8x32xf32>
      %174 = tpu.matmul %167, %173, %cst_99 {dimension_numbers = #tpu.dot_dimension_numbers<[1], [0], [0], [1], [0, 0, 1, 1], [], []>} : vector<8x32xbf16>, vector<32x32xbf16>, vector<8x32xf32> -> vector<8x32xf32>
      %c0_100 = arith.constant 0 : index
      %c0_101 = arith.constant 0 : index
      %175 = vector.load %arg10[%c0_100, %c0_101] : memref<1x32xf32, #tpu.memory_space<vmem>>, vector<1x32xf32>
      %176 = vector.broadcast %175 : vector<1x32xf32> to vector<8x32xf32>
      %177 = arith.addf %174, %176 : vector<8x32xf32>
      %178 = arith.truncf %172 : vector<8x32xf32> to vector<8x32xbf16>
      %179 = arith.truncf %177 : vector<8x32xf32> to vector<8x32xbf16>
      %180 = vector.extract_strided_slice %178 {offsets = [0, 0], sizes = [8, 8], strides = [1, 1]} : vector<8x32xbf16> to vector<8x8xbf16>
      %c0_102 = arith.constant 0 : index
      %c0_103 = arith.constant 0 : index
      %c0_104 = arith.constant 0 : index
      %181 = vector.load %arg23[%c0_102, %c0_103, %c0_104] : memref<4x8x8xbf16, #tpu.memory_space<vmem>>, vector<1x8x8xbf16>
      %182 = vector.shape_cast %181 : vector<1x8x8xbf16> to vector<8x8xbf16>
      %183 = vector.shape_cast %180 : vector<8x8xbf16> to vector<1x8x8xbf16>
      tpu.vector_store %arg23[%c0_102, %c0_103, %c0_104], %183 {strides = array<i32>} : memref<4x8x8xbf16, #tpu.memory_space<vmem>>, vector<1x8x8xbf16>,
      %184 = vector.extract_strided_slice %179 {offsets = [0, 0], sizes = [8, 8], strides = [1, 1]} : vector<8x32xbf16> to vector<8x8xbf16>
      %c0_105 = arith.constant 0 : index
      %c0_106 = arith.constant 0 : index
      %c0_107 = arith.constant 0 : index
      %185 = vector.load %arg24[%c0_105, %c0_106, %c0_107] : memref<4x8x8xbf16, #tpu.memory_space<vmem>>, vector<1x8x8xbf16>
      %186 = vector.shape_cast %185 : vector<1x8x8xbf16> to vector<8x8xbf16>
      %187 = vector.shape_cast %184 : vector<8x8xbf16> to vector<1x8x8xbf16>
      tpu.vector_store %arg24[%c0_105, %c0_106, %c0_107], %187 {strides = array<i32>} : memref<4x8x8xbf16, #tpu.memory_space<vmem>>, vector<1x8x8xbf16>,
      %188 = vector.extract_strided_slice %178 {offsets = [0, 8], sizes = [8, 8], strides = [1, 1]} : vector<8x32xbf16> to vector<8x8xbf16>
      %c1_108 = arith.constant 1 : index
      %c0_109 = arith.constant 0 : index
      %c0_110 = arith.constant 0 : index
      %189 = vector.load %arg23[%c1_108, %c0_109, %c0_110] : memref<4x8x8xbf16, #tpu.memory_space<vmem>>, vector<1x8x8xbf16>
      %190 = vector.shape_cast %189 : vector<1x8x8xbf16> to vector<8x8xbf16>
      %191 = vector.shape_cast %188 : vector<8x8xbf16> to vector<1x8x8xbf16>
      tpu.vector_store %arg23[%c1_108, %c0_109, %c0_110], %191 {strides = array<i32>} : memref<4x8x8xbf16, #tpu.memory_space<vmem>>, vector<1x8x8xbf16>,
      %192 = vector.extract_strided_slice %179 {offsets = [0, 8], sizes = [8, 8], strides = [1, 1]} : vector<8x32xbf16> to vector<8x8xbf16>
      %c1_111 = arith.constant 1 : index
      %c0_112 = arith.constant 0 : index
      %c0_113 = arith.constant 0 : index
      %193 = vector.load %arg24[%c1_111, %c0_112, %c0_113] : memref<4x8x8xbf16, #tpu.memory_space<vmem>>, vector<1x8x8xbf16>
      %194 = vector.shape_cast %193 : vector<1x8x8xbf16> to vector<8x8xbf16>
      %195 = vector.shape_cast %192 : vector<8x8xbf16> to vector<1x8x8xbf16>
      tpu.vector_store %arg24[%c1_111, %c0_112, %c0_113], %195 {strides = array<i32>} : memref<4x8x8xbf16, #tpu.memory_space<vmem>>, vector<1x8x8xbf16>,
      %196 = vector.extract_strided_slice %178 {offsets = [0, 16], sizes = [8, 8], strides = [1, 1]} : vector<8x32xbf16> to vector<8x8xbf16>
      %c2_114 = arith.constant 2 : index
      %c0_115 = arith.constant 0 : index
      %c0_116 = arith.constant 0 : index
      %197 = vector.load %arg23[%c2_114, %c0_115, %c0_116] : memref<4x8x8xbf16, #tpu.memory_space<vmem>>, vector<1x8x8xbf16>
      %198 = vector.shape_cast %197 : vector<1x8x8xbf16> to vector<8x8xbf16>
      %199 = vector.shape_cast %196 : vector<8x8xbf16> to vector<1x8x8xbf16>
      tpu.vector_store %arg23[%c2_114, %c0_115, %c0_116], %199 {strides = array<i32>} : memref<4x8x8xbf16, #tpu.memory_space<vmem>>, vector<1x8x8xbf16>,
      %200 = vector.extract_strided_slice %179 {offsets = [0, 16], sizes = [8, 8], strides = [1, 1]} : vector<8x32xbf16> to vector<8x8xbf16>
      %c2_117 = arith.constant 2 : index
      %c0_118 = arith.constant 0 : index
      %c0_119 = arith.constant 0 : index
      %201 = vector.load %arg24[%c2_117, %c0_118, %c0_119] : memref<4x8x8xbf16, #tpu.memory_space<vmem>>, vector<1x8x8xbf16>
      %202 = vector.shape_cast %201 : vector<1x8x8xbf16> to vector<8x8xbf16>
      %203 = vector.shape_cast %200 : vector<8x8xbf16> to vector<1x8x8xbf16>
      tpu.vector_store %arg24[%c2_117, %c0_118, %c0_119], %203 {strides = array<i32>} : memref<4x8x8xbf16, #tpu.memory_space<vmem>>, vector<1x8x8xbf16>,
      %204 = vector.extract_strided_slice %178 {offsets = [0, 24], sizes = [8, 8], strides = [1, 1]} : vector<8x32xbf16> to vector<8x8xbf16>
      %c3_120 = arith.constant 3 : index
      %c0_121 = arith.constant 0 : index
      %c0_122 = arith.constant 0 : index
      %205 = vector.load %arg23[%c3_120, %c0_121, %c0_122] : memref<4x8x8xbf16, #tpu.memory_space<vmem>>, vector<1x8x8xbf16>
      %206 = vector.shape_cast %205 : vector<1x8x8xbf16> to vector<8x8xbf16>
      %207 = vector.shape_cast %204 : vector<8x8xbf16> to vector<1x8x8xbf16>
      tpu.vector_store %arg23[%c3_120, %c0_121, %c0_122], %207 {strides = array<i32>} : memref<4x8x8xbf16, #tpu.memory_space<vmem>>, vector<1x8x8xbf16>,
      %208 = vector.extract_strided_slice %179 {offsets = [0, 24], sizes = [8, 8], strides = [1, 1]} : vector<8x32xbf16> to vector<8x8xbf16>
      %c3_123 = arith.constant 3 : index
      %c0_124 = arith.constant 0 : index
      %c0_125 = arith.constant 0 : index
      %209 = vector.load %arg24[%c3_123, %c0_124, %c0_125] : memref<4x8x8xbf16, #tpu.memory_space<vmem>>, vector<1x8x8xbf16>
      %210 = vector.shape_cast %209 : vector<1x8x8xbf16> to vector<8x8xbf16>
      %211 = vector.shape_cast %208 : vector<8x8xbf16> to vector<1x8x8xbf16>
      tpu.vector_store %arg24[%c3_123, %c0_124, %c0_125], %211 {strides = array<i32>} : memref<4x8x8xbf16, #tpu.memory_space<vmem>>, vector<1x8x8xbf16>,
    } else {
    }
    %5 = arith.truncf %1 : vector<8x32xf32> to vector<8x32xbf16>
    %c0_3 = arith.constant 0 : index
    %c0_4 = arith.constant 0 : index
    %6 = vector.load %arg5[%c0_3, %c0_4] : memref<32x32xbf16, #tpu.memory_space<vmem>>, vector<32x32xbf16>
    %cst = arith.constant dense<0.000000e+00> : vector<8x32xf32>
    %7 = tpu.matmul %5, %6, %cst {dimension_numbers = #tpu.dot_dimension_numbers<[1], [0], [0], [1], [0, 0, 1, 1], [], []>} : vector<8x32xbf16>, vector<32x32xbf16>, vector<8x32xf32> -> vector<8x32xf32>
    %c0_5 = arith.constant 0 : index
    %c0_6 = arith.constant 0 : index
    %8 = vector.load %arg6[%c0_5, %c0_6] : memref<1x32xf32, #tpu.memory_space<vmem>>, vector<1x32xf32>
    %9 = vector.broadcast %8 : vector<1x32xf32> to vector<8x32xf32>
    %10 = arith.addf %7, %9 : vector<8x32xf32>
    %cst_7 = arith.constant 0.353553385 : f32
    %11 = vector.broadcast %cst_7 : f32 to vector<8x32xf32>
    %12 = arith.mulf %10, %11 : vector<8x32xf32>
    %13 = arith.truncf %12 : vector<8x32xf32> to vector<8x32xbf16>
    %14 = vector.extract_strided_slice %13 {offsets = [0, 0], sizes = [8, 8], strides = [1, 1]} : vector<8x32xbf16> to vector<8x8xbf16>
    %c0_8 = arith.constant 0 : index
    %c0_9 = arith.constant 0 : index
    %c0_10 = arith.constant 0 : index
    %15 = vector.load %arg22[%c0_8, %c0_9, %c0_10] : memref<4x8x8xbf16, #tpu.memory_space<vmem>>, vector<1x8x8xbf16>
    %16 = vector.shape_cast %15 : vector<1x8x8xbf16> to vector<8x8xbf16>
    %17 = vector.shape_cast %14 : vector<8x8xbf16> to vector<1x8x8xbf16>
    tpu.vector_store %arg22[%c0_8, %c0_9, %c0_10], %17 {strides = array<i32>} : memref<4x8x8xbf16, #tpu.memory_space<vmem>>, vector<1x8x8xbf16>,
    %18 = vector.extract_strided_slice %13 {offsets = [0, 8], sizes = [8, 8], strides = [1, 1]} : vector<8x32xbf16> to vector<8x8xbf16>
    %c1 = arith.constant 1 : index
    %c0_11 = arith.constant 0 : index
    %c0_12 = arith.constant 0 : index
    %19 = vector.load %arg22[%c1, %c0_11, %c0_12] : memref<4x8x8xbf16, #tpu.memory_space<vmem>>, vector<1x8x8xbf16>
    %20 = vector.shape_cast %19 : vector<1x8x8xbf16> to vector<8x8xbf16>
    %21 = vector.shape_cast %18 : vector<8x8xbf16> to vector<1x8x8xbf16>
    tpu.vector_store %arg22[%c1, %c0_11, %c0_12], %21 {strides = array<i32>} : memref<4x8x8xbf16, #tpu.memory_space<vmem>>, vector<1x8x8xbf16>,
    %22 = vector.extract_strided_slice %13 {offsets = [0, 16], sizes = [8, 8], strides = [1, 1]} : vector<8x32xbf16> to vector<8x8xbf16>
    %c2 = arith.constant 2 : index
    %c0_13 = arith.constant 0 : index
    %c0_14 = arith.constant 0 : index
    %23 = vector.load %arg22[%c2, %c0_13, %c0_14] : memref<4x8x8xbf16, #tpu.memory_space<vmem>>, vector<1x8x8xbf16>
    %24 = vector.shape_cast %23 : vector<1x8x8xbf16> to vector<8x8xbf16>
    %25 = vector.shape_cast %22 : vector<8x8xbf16> to vector<1x8x8xbf16>
    tpu.vector_store %arg22[%c2, %c0_13, %c0_14], %25 {strides = array<i32>} : memref<4x8x8xbf16, #tpu.memory_space<vmem>>, vector<1x8x8xbf16>,
    %26 = vector.extract_strided_slice %13 {offsets = [0, 24], sizes = [8, 8], strides = [1, 1]} : vector<8x32xbf16> to vector<8x8xbf16>
    %c3 = arith.constant 3 : index
    %c0_15 = arith.constant 0 : index
    %c0_16 = arith.constant 0 : index
    %27 = vector.load %arg22[%c3, %c0_15, %c0_16] : memref<4x8x8xbf16, #tpu.memory_space<vmem>>, vector<1x8x8xbf16>
    %28 = vector.shape_cast %27 : vector<1x8x8xbf16> to vector<8x8xbf16>
    %29 = vector.shape_cast %26 : vector<8x8xbf16> to vector<1x8x8xbf16>
    tpu.vector_store %arg22[%c3, %c0_15, %c0_16], %29 {strides = array<i32>} : memref<4x8x8xbf16, #tpu.memory_space<vmem>>, vector<1x8x8xbf16>,
    %c0_17 = arith.constant 0 : index
    %c0_18 = arith.constant 0 : index
    %c0_19 = arith.constant 0 : index
    %30 = vector.load %arg22[%c0_17, %c0_18, %c0_19] : memref<4x8x8xbf16, #tpu.memory_space<vmem>>, vector<4x8x8xbf16>
    %cst_20 = arith.constant -1.000000e+30 : f32
    %31 = vector.broadcast %cst_20 : f32 to vector<4x8x1xf32>
    %cst_21 = arith.constant 0.000000e+00 : f32
    %32 = vector.broadcast %cst_21 : f32 to vector<4x8x1xf32>
    %cst_22 = arith.constant 0.000000e+00 : f32
    %33 = vector.broadcast %cst_22 : f32 to vector<4x8x8xf32>
    %c0_23 = arith.constant 0 : index
    %c0_24 = arith.constant 0 : index
    %c0_25 = arith.constant 0 : index
    %34 = vector.load %arg23[%c0_23, %c0_24, %c0_25] : memref<4x8x8xbf16, #tpu.memory_space<vmem>>, vector<4x8x8xbf16>
    %c0_26 = arith.constant 0 : index
    %c0_27 = arith.constant 0 : index
    %c0_28 = arith.constant 0 : index
    %35 = vector.load %arg24[%c0_26, %c0_27, %c0_28] : memref<4x8x8xbf16, #tpu.memory_space<vmem>>, vector<4x8x8xbf16>
    %c0_29 = arith.constant 0 : index
    %c0_30 = arith.constant 0 : index
    %c0_31 = arith.constant 0 : index
    %36 = vector.load %arg4[%c0_29, %c0_30, %c0_31] : memref<1x1x8xf32, #tpu.memory_space<vmem>>, vector<1x1x8xf32>
    %37 = vector.shape_cast %36 : vector<1x1x8xf32> to vector<1x8xf32>
    "tpu.trace_start"() <{level = 10 : i32, message = "nqd,nkd->nqk"}> : () -> ()
    %cst_32 = arith.constant dense<0.000000e+00> : vector<4x8x8xf32>
    %38 = tpu.matmul %30, %34, %cst_32 {dimension_numbers = #tpu.dot_dimension_numbers<[2], [2], [1], [1], [0, 0, 0, 1, 1, 1], [0], [0]>} : vector<4x8x8xbf16>, vector<4x8x8xbf16>, vector<4x8x8xf32> -> vector<4x8x8xf32>
    "tpu.trace_stop"() : () -> ()
    %39 = vector.shape_cast %37 : vector<1x8xf32> to vector<1x1x8xf32>
    %40 = vector.broadcast %39 : vector<1x1x8xf32> to vector<4x8x8xf32>
    %41 = arith.addf %38, %40 : vector<4x8x8xf32>
    %cst_33 = arith.constant dense<0xFF800000> : vector<4x8xf32>
    %42 = vector.multi_reduction <maximumf>, %41, %cst_33 [2] : vector<4x8x8xf32> to vector<4x8xf32>
    %43 = vector.shape_cast %42 : vector<4x8xf32> to vector<4x8x1xf32>
    %44 = arith.maximumf %31, %43 : vector<4x8x1xf32>
    %45 = arith.subf %31, %44 : vector<4x8x1xf32>
    %46 = math.exp %45 : vector<4x8x1xf32>
    %47 = vector.broadcast %44 : vector<4x8x1xf32> to vector<4x8x8xf32>
    %48 = arith.subf %41, %47 : vector<4x8x8xf32>
    %49 = math.exp %48 : vector<4x8x8xf32>
    %50 = arith.mulf %46, %32 : vector<4x8x1xf32>
    %cst_34 = arith.constant dense<0.000000e+00> : vector<4x8xf32>
    %51 = vector.multi_reduction <add>, %49, %cst_34 [2] : vector<4x8x8xf32> to vector<4x8xf32>
    %52 = vector.shape_cast %51 : vector<4x8xf32> to vector<4x8x1xf32>
    %53 = arith.addf %50, %52 : vector<4x8x1xf32>
    %54 = vector.broadcast %46 : vector<4x8x1xf32> to vector<4x8x8xf32>
    %55 = arith.mulf %54, %33 : vector<4x8x8xf32>
    %56 = arith.truncf %49 : vector<4x8x8xf32> to vector<4x8x8xbf16>
    "tpu.trace_start"() <{level = 10 : i32, message = "nqk,nkd->nqd"}> : () -> ()
    %cst_35 = arith.constant dense<0.000000e+00> : vector<4x8x8xf32>
    %57 = tpu.matmul %56, %35, %cst_35 {dimension_numbers = #tpu.dot_dimension_numbers<[2], [1], [1], [2], [0, 0, 0, 1, 1, 2], [0], [0]>} : vector<4x8x8xbf16>, vector<4x8x8xbf16>, vector<4x8x8xf32> -> vector<4x8x8xf32>
    "tpu.trace_stop"() : () -> ()
    %58 = arith.addf %55, %57 : vector<4x8x8xf32>
    %59 = tpu.reciprocal %53 {approx = true} : vector<4x8x1xf32> -> vector<4x8x1xf32>
    %60 = vector.broadcast %59 : vector<4x8x1xf32> to vector<4x8x8xf32>
    %61 = arith.mulf %58, %60 : vector<4x8x8xf32>
    %62 = vector.extract_strided_slice %61 {offsets = [0, 0, 0], sizes = [1, 8, 8], strides = [1, 1, 1]} : vector<4x8x8xf32> to vector<1x8x8xf32>
    %63 = vector.shape_cast %62 : vector<1x8x8xf32> to vector<8x8xf32>
    %64 = arith.truncf %63 : vector<8x8xf32> to vector<8x8xbf16>
    %c0_36 = arith.constant 0 : index
    %c0_37 = arith.constant 0 : index
    %c0_38 = arith.constant 0 : index
    %65 = vector.load %arg11[%c0_36, %c0_37, %c0_38] : memref<4x8x32xbf16, #tpu.memory_space<vmem>>, vector<1x8x32xbf16>
    %66 = vector.shape_cast %65 : vector<1x8x32xbf16> to vector<8x32xbf16>
    %cst_39 = arith.constant dense<0.000000e+00> : vector<8x32xf32>
    %67 = tpu.matmul %64, %66, %cst_39 {dimension_numbers = #tpu.dot_dimension_numbers<[1], [0], [0], [1], [0, 0, 1, 1], [], []>} : vector<8x8xbf16>, vector<8x32xbf16>, vector<8x32xf32> -> vector<8x32xf32>
    %68 = vector.extract_strided_slice %61 {offsets = [1, 0, 0], sizes = [1, 8, 8], strides = [1, 1, 1]} : vector<4x8x8xf32> to vector<1x8x8xf32>
    %69 = vector.shape_cast %68 : vector<1x8x8xf32> to vector<8x8xf32>
    %70 = arith.truncf %69 : vector<8x8xf32> to vector<8x8xbf16>
    %c1_40 = arith.constant 1 : index
    %c0_41 = arith.constant 0 : index
    %c0_42 = arith.constant 0 : index
    %71 = vector.load %arg11[%c1_40, %c0_41, %c0_42] : memref<4x8x32xbf16, #tpu.memory_space<vmem>>, vector<1x8x32xbf16>
    %72 = vector.shape_cast %71 : vector<1x8x32xbf16> to vector<8x32xbf16>
    %cst_43 = arith.constant dense<0.000000e+00> : vector<8x32xf32>
    %73 = tpu.matmul %70, %72, %cst_43 {dimension_numbers = #tpu.dot_dimension_numbers<[1], [0], [0], [1], [0, 0, 1, 1], [], []>} : vector<8x8xbf16>, vector<8x32xbf16>, vector<8x32xf32> -> vector<8x32xf32>
    %74 = arith.addf %67, %73 : vector<8x32xf32>
    %75 = vector.extract_strided_slice %61 {offsets = [2, 0, 0], sizes = [1, 8, 8], strides = [1, 1, 1]} : vector<4x8x8xf32> to vector<1x8x8xf32>
    %76 = vector.shape_cast %75 : vector<1x8x8xf32> to vector<8x8xf32>
    %77 = arith.truncf %76 : vector<8x8xf32> to vector<8x8xbf16>
    %c2_44 = arith.constant 2 : index
    %c0_45 = arith.constant 0 : index
    %c0_46 = arith.constant 0 : index
    %78 = vector.load %arg11[%c2_44, %c0_45, %c0_46] : memref<4x8x32xbf16, #tpu.memory_space<vmem>>, vector<1x8x32xbf16>
    %79 = vector.shape_cast %78 : vector<1x8x32xbf16> to vector<8x32xbf16>
    %cst_47 = arith.constant dense<0.000000e+00> : vector<8x32xf32>
    %80 = tpu.matmul %77, %79, %cst_47 {dimension_numbers = #tpu.dot_dimension_numbers<[1], [0], [0], [1], [0, 0, 1, 1], [], []>} : vector<8x8xbf16>, vector<8x32xbf16>, vector<8x32xf32> -> vector<8x32xf32>
    %81 = arith.addf %74, %80 : vector<8x32xf32>
    %82 = vector.extract_strided_slice %61 {offsets = [3, 0, 0], sizes = [1, 8, 8], strides = [1, 1, 1]} : vector<4x8x8xf32> to vector<1x8x8xf32>
    %83 = vector.shape_cast %82 : vector<1x8x8xf32> to vector<8x8xf32>
    %84 = arith.truncf %83 : vector<8x8xf32> to vector<8x8xbf16>
    %c3_48 = arith.constant 3 : index
    %c0_49 = arith.constant 0 : index
    %c0_50 = arith.constant 0 : index
    %85 = vector.load %arg11[%c3_48, %c0_49, %c0_50] : memref<4x8x32xbf16, #tpu.memory_space<vmem>>, vector<1x8x32xbf16>
    %86 = vector.shape_cast %85 : vector<1x8x32xbf16> to vector<8x32xbf16>
    %cst_51 = arith.constant dense<0.000000e+00> : vector<8x32xf32>
    %87 = tpu.matmul %84, %86, %cst_51 {dimension_numbers = #tpu.dot_dimension_numbers<[1], [0], [0], [1], [0, 0, 1, 1], [], []>} : vector<8x8xbf16>, vector<8x32xbf16>, vector<8x32xf32> -> vector<8x32xf32>
    %88 = arith.addf %81, %87 : vector<8x32xf32>
    %c0_52 = arith.constant 0 : index
    %c0_53 = arith.constant 0 : index
    %89 = vector.load %arg12[%c0_52, %c0_53] : memref<1x32xf32, #tpu.memory_space<vmem>>, vector<1x32xf32>
    %90 = vector.broadcast %89 : vector<1x32xf32> to vector<8x32xf32>
    %91 = arith.addf %88, %90 : vector<8x32xf32>
    %92 = arith.addf %91, %1 : vector<8x32xf32>
    %c0_54 = arith.constant 0 : index
    %c0_55 = arith.constant 0 : index
    %93 = vector.load %arg13[%c0_54, %c0_55] : memref<1x32xf32, #tpu.memory_space<vmem>>, vector<1x32xf32>
    %c0_56 = arith.constant 0 : index
    %c0_57 = arith.constant 0 : index
    %94 = vector.load %arg14[%c0_56, %c0_57] : memref<1x32xf32, #tpu.memory_space<vmem>>, vector<1x32xf32>
    %cst_58 = arith.constant dense<0.000000e+00> : vector<8xf32>
    %95 = vector.multi_reduction <add>, %92, %cst_58 [1] : vector<8x32xf32> to vector<8xf32>
    %96 = vector.shape_cast %95 : vector<8xf32> to vector<8x1xf32>
    %cst_59 = arith.constant 3.200000e+01 : f32
    %97 = vector.broadcast %cst_59 : f32 to vector<8x1xf32>
    %98 = arith.divf %96, %97 : vector<8x1xf32>
    %99 = vector.broadcast %98 : vector<8x1xf32> to vector<8x32xf32>
    %100 = arith.subf %92, %99 : vector<8x32xf32>
    %101 = arith.mulf %100, %100 : vector<8x32xf32>
    %cst_60 = arith.constant dense<0.000000e+00> : vector<8xf32>
    %102 = vector.multi_reduction <add>, %101, %cst_60 [1] : vector<8x32xf32> to vector<8xf32>
    %103 = vector.shape_cast %102 : vector<8xf32> to vector<8x1xf32>
    %cst_61 = arith.constant 3.200000e+01 : f32
    %104 = vector.broadcast %cst_61 : f32 to vector<8x1xf32>
    %105 = arith.divf %103, %104 : vector<8x1xf32>
    %cst_62 = arith.constant 9.99999996E-13 : f32
    %106 = vector.broadcast %cst_62 : f32 to vector<8x1xf32>
    %107 = arith.addf %105, %106 : vector<8x1xf32>
    %108 = math.rsqrt %107 : vector<8x1xf32>
    %109 = vector.broadcast %108 : vector<8x1xf32> to vector<8x32xf32>
    %110 = arith.mulf %100, %109 : vector<8x32xf32>
    %111 = vector.broadcast %93 : vector<1x32xf32> to vector<8x32xf32>
    %112 = arith.mulf %110, %111 : vector<8x32xf32>
    %113 = vector.broadcast %94 : vector<1x32xf32> to vector<8x32xf32>
    %114 = arith.addf %112, %113 : vector<8x32xf32>
    %115 = arith.truncf %114 : vector<8x32xf32> to vector<8x32xbf16>
    %c0_63 = arith.constant 0 : index
    %c0_64 = arith.constant 0 : index
    %116 = vector.load %arg15[%c0_63, %c0_64] : memref<32x64xbf16, #tpu.memory_space<vmem>>, vector<32x64xbf16>
    %cst_65 = arith.constant dense<0.000000e+00> : vector<8x64xf32>
    %117 = tpu.matmul %115, %116, %cst_65 {dimension_numbers = #tpu.dot_dimension_numbers<[1], [0], [0], [1], [0, 0, 1, 1], [], []>} : vector<8x32xbf16>, vector<32x64xbf16>, vector<8x64xf32> -> vector<8x64xf32>
    %c0_66 = arith.constant 0 : index
    %c0_67 = arith.constant 0 : index
    %118 = vector.load %arg16[%c0_66, %c0_67] : memref<1x64xf32, #tpu.memory_space<vmem>>, vector<1x64xf32>
    %119 = vector.broadcast %118 : vector<1x64xf32> to vector<8x64xf32>
    %120 = arith.addf %117, %119 : vector<8x64xf32>
    %cst_68 = arith.constant 5.000000e-01 : f32
    %121 = vector.broadcast %cst_68 : f32 to vector<8x64xf32>
    %122 = arith.mulf %121, %120 : vector<8x64xf32>
    %cst_69 = arith.constant 4.471500e-02 : f32
    %123 = vector.broadcast %cst_69 : f32 to vector<8x64xf32>
    %124 = arith.mulf %123, %120 : vector<8x64xf32>
    %125 = arith.mulf %124, %120 : vector<8x64xf32>
    %126 = arith.mulf %125, %120 : vector<8x64xf32>
    %127 = arith.addf %120, %126 : vector<8x64xf32>
    %cst_70 = arith.constant 0.797884583 : f32
    %128 = vector.broadcast %cst_70 : f32 to vector<8x64xf32>
    %129 = arith.mulf %128, %127 : vector<8x64xf32>
    %130 = math.tanh %129 : vector<8x64xf32>
    %cst_71 = arith.constant 1.000000e+00 : f32
    %131 = vector.broadcast %cst_71 : f32 to vector<8x64xf32>
    %132 = arith.addf %131, %130 : vector<8x64xf32>
    %133 = arith.mulf %122, %132 : vector<8x64xf32>
    %134 = arith.truncf %133 : vector<8x64xf32> to vector<8x64xbf16>
    %c0_72 = arith.constant 0 : index
    %c0_73 = arith.constant 0 : index
    %135 = vector.load %arg17[%c0_72, %c0_73] : memref<64x32xbf16, #tpu.memory_space<vmem>>, vector<64x32xbf16>
    %cst_74 = arith.constant dense<0.000000e+00> : vector<8x32xf32>
    %136 = tpu.matmul %134, %135, %cst_74 {dimension_numbers = #tpu.dot_dimension_numbers<[1], [0], [0], [1], [0, 0, 1, 1], [], []>} : vector<8x64xbf16>, vector<64x32xbf16>, vector<8x32xf32> -> vector<8x32xf32>
    %c0_75 = arith.constant 0 : index
    %c0_76 = arith.constant 0 : index
    %137 = vector.load %arg18[%c0_75, %c0_76] : memref<1x32xf32, #tpu.memory_space<vmem>>, vector<1x32xf32>
    %138 = vector.broadcast %137 : vector<1x32xf32> to vector<8x32xf32>
    %139 = arith.addf %136, %138 : vector<8x32xf32>
    %140 = arith.addf %139, %114 : vector<8x32xf32>
    %c0_77 = arith.constant 0 : index
    %c0_78 = arith.constant 0 : index
    %141 = vector.load %arg19[%c0_77, %c0_78] : memref<1x32xf32, #tpu.memory_space<vmem>>, vector<1x32xf32>
    %c0_79 = arith.constant 0 : index
    %c0_80 = arith.constant 0 : index
    %142 = vector.load %arg20[%c0_79, %c0_80] : memref<1x32xf32, #tpu.memory_space<vmem>>, vector<1x32xf32>
    %cst_81 = arith.constant dense<0.000000e+00> : vector<8xf32>
    %143 = vector.multi_reduction <add>, %140, %cst_81 [1] : vector<8x32xf32> to vector<8xf32>
    %144 = vector.shape_cast %143 : vector<8xf32> to vector<8x1xf32>
    %cst_82 = arith.constant 3.200000e+01 : f32
    %145 = vector.broadcast %cst_82 : f32 to vector<8x1xf32>
    %146 = arith.divf %144, %145 : vector<8x1xf32>
    %147 = vector.broadcast %146 : vector<8x1xf32> to vector<8x32xf32>
    %148 = arith.subf %140, %147 : vector<8x32xf32>
    %149 = arith.mulf %148, %148 : vector<8x32xf32>
    %cst_83 = arith.constant dense<0.000000e+00> : vector<8xf32>
    %150 = vector.multi_reduction <add>, %149, %cst_83 [1] : vector<8x32xf32> to vector<8xf32>
    %151 = vector.shape_cast %150 : vector<8xf32> to vector<8x1xf32>
    %cst_84 = arith.constant 3.200000e+01 : f32
    %152 = vector.broadcast %cst_84 : f32 to vector<8x1xf32>
    %153 = arith.divf %151, %152 : vector<8x1xf32>
    %cst_85 = arith.constant 9.99999996E-13 : f32
    %154 = vector.broadcast %cst_85 : f32 to vector<8x1xf32>
    %155 = arith.addf %153, %154 : vector<8x1xf32>
    %156 = math.rsqrt %155 : vector<8x1xf32>
    %157 = vector.broadcast %156 : vector<8x1xf32> to vector<8x32xf32>
    %158 = arith.mulf %148, %157 : vector<8x32xf32>
    %159 = vector.broadcast %141 : vector<1x32xf32> to vector<8x32xf32>
    %160 = arith.mulf %158, %159 : vector<8x32xf32>
    %161 = vector.broadcast %142 : vector<1x32xf32> to vector<8x32xf32>
    %162 = arith.addf %160, %161 : vector<8x32xf32>
    %c0_86 = arith.constant 0 : index
    %c0_87 = arith.constant 0 : index
    %c0_88 = arith.constant 0 : index
    %163 = vector.load %arg21[%c0_86, %c0_87, %c0_88] : memref<1x8x32xf32, #tpu.memory_space<vmem>>, vector<1x8x32xf32>
    %164 = vector.shape_cast %163 : vector<1x8x32xf32> to vector<8x32xf32>
    %165 = vector.shape_cast %162 : vector<8x32xf32> to vector<1x8x32xf32>
    tpu.vector_store %arg21[%c0_86, %c0_87, %c0_88], %165 {strides = array<i32>} : memref<1x8x32xf32, #tpu.memory_space<vmem>>, vector<1x8x32xf32>,
    return
  }
  func.func @transform_0(%arg0: i32, %arg1: i32) -> (i32, i32, i32) {
    %c0_i32 = arith.constant 0 : i32
    %c0_i32_0 = arith.constant 0 : i32
    return %arg0, %arg1, %c0_i32 : i32, i32, i32
  }
  func.func @transform_1(%arg0: i32, %arg1: i32) -> (i32, i32, i32) {
    %c0_i32 = arith.constant 0 : i32
    %c0_i32_0 = arith.constant 0 : i32
    %c0_i32_1 = arith.constant 0 : i32
    return %arg0, %c0_i32, %c0_i32_0 : i32, i32, i32
  }
  func.func @transform_2(%arg0: i32, %arg1: i32) -> (i32, i32, i32) {
    %c0_i32 = arith.constant 0 : i32
    %c0_i32_0 = arith.constant 0 : i32
    %c0_i32_1 = arith.constant 0 : i32
    return %arg0, %c0_i32, %c0_i32_0 : i32, i32, i32
  }
  func.func @transform_3(%arg0: i32, %arg1: i32) -> (i32, i32) {
    %c0_i32 = arith.constant 0 : i32
    %c0_i32_0 = arith.constant 0 : i32
    %c0_i32_1 = arith.constant 0 : i32
    return %c0_i32, %c0_i32_0 : i32, i32
  }
  func.func @transform_4(%arg0: i32, %arg1: i32) -> (i32, i32) {
    %c0_i32 = arith.constant 0 : i32
    %c0_i32_0 = arith.constant 0 : i32
    %c0_i32_1 = arith.constant 0 : i32
    return %c0_i32, %c0_i32_0 : i32, i32
  }
  func.func @transform_5(%arg0: i32, %arg1: i32) -> (i32, i32) {
    %c0_i32 = arith.constant 0 : i32
    %c0_i32_0 = arith.constant 0 : i32
    %c0_i32_1 = arith.constant 0 : i32
    return %c0_i32, %c0_i32_0 : i32, i32
  }
  func.func @transform_6(%arg0: i32, %arg1: i32) -> (i32, i32) {
    %c0_i32 = arith.constant 0 : i32
    %c0_i32_0 = arith.constant 0 : i32
    %c0_i32_1 = arith.constant 0 : i32
    return %c0_i32, %c0_i32_0 : i32, i32
  }
  func.func @transform_7(%arg0: i32, %arg1: i32) -> (i32, i32) {
    %c0_i32 = arith.constant 0 : i32
    %c0_i32_0 = arith.constant 0 : i32
    %c0_i32_1 = arith.constant 0 : i32
    return %c0_i32, %c0_i32_0 : i32, i32
  }
  func.func @transform_8(%arg0: i32, %arg1: i32) -> (i32, i32) {
    %c0_i32 = arith.constant 0 : i32
    %c0_i32_0 = arith.constant 0 : i32
    %c0_i32_1 = arith.constant 0 : i32
    return %c0_i32, %c0_i32_0 : i32, i32
  }
  func.func @transform_9(%arg0: i32, %arg1: i32) -> (i32, i32, i32) {
    %c0_i32 = arith.constant 0 : i32
    %c0_i32_0 = arith.constant 0 : i32
    %c0_i32_1 = arith.constant 0 : i32
    %c0_i32_2 = arith.constant 0 : i32
    return %c0_i32, %c0_i32_0, %c0_i32_1 : i32, i32, i32
  }
  func.func @transform_10(%arg0: i32, %arg1: i32) -> (i32, i32) {
    %c0_i32 = arith.constant 0 : i32
    %c0_i32_0 = arith.constant 0 : i32
    %c0_i32_1 = arith.constant 0 : i32
    return %c0_i32, %c0_i32_0 : i32, i32
  }
  func.func @transform_11(%arg0: i32, %arg1: i32) -> (i32, i32) {
    %c0_i32 = arith.constant 0 : i32
    %c0_i32_0 = arith.constant 0 : i32
    %c0_i32_1 = arith.constant 0 : i32
    return %c0_i32, %c0_i32_0 : i32, i32
  }
  func.func @transform_12(%arg0: i32, %arg1: i32) -> (i32, i32) {
    %c0_i32 = arith.constant 0 : i32
    %c0_i32_0 = arith.constant 0 : i32
    %c0_i32_1 = arith.constant 0 : i32
    return %c0_i32, %c0_i32_0 : i32, i32
  }
  func.func @transform_13(%arg0: i32, %arg1: i32) -> (i32, i32) {
    %c0_i32 = arith.constant 0 : i32
    %c0_i32_0 = arith.constant 0 : i32
    %c0_i32_1 = arith.constant 0 : i32
    return %c0_i32, %c0_i32_0 : i32, i32
  }
  func.func @transform_14(%arg0: i32, %arg1: i32) -> (i32, i32) {
    %c0_i32 = arith.constant 0 : i32
    %c0_i32_0 = arith.constant 0 : i32
    %c0_i32_1 = arith.constant 0 : i32
    return %c0_i32, %c0_i32_0 : i32, i32
  }
  func.func @transform_15(%arg0: i32, %arg1: i32) -> (i32, i32) {
    %c0_i32 = arith.constant 0 : i32
    %c0_i32_0 = arith.constant 0 : i32
    %c0_i32_1 = arith.constant 0 : i32
    return %c0_i32, %c0_i32_0 : i32, i32
  }
  func.func @transform_16(%arg0: i32, %arg1: i32) -> (i32, i32) {
    %c0_i32 = arith.constant 0 : i32
    %c0_i32_0 = arith.constant 0 : i32
    %c0_i32_1 = arith.constant 0 : i32
    return %c0_i32, %c0_i32_0 : i32, i32
  }
  func.func @transform_17(%arg0: i32, %arg1: i32) -> (i32, i32) {
    %c0_i32 = arith.constant 0 : i32
    %c0_i32_0 = arith.constant 0 : i32
    %c0_i32_1 = arith.constant 0 : i32
    return %c0_i32, %c0_i32_0 : i32, i32
  }
  func.func @transform_18(%arg0: i32, %arg1: i32) -> (i32, i32) {
    %c0_i32 = arith.constant 0 : i32
    %c0_i32_0 = arith.constant 0 : i32
    %c0_i32_1 = arith.constant 0 : i32
    return %c0_i32, %c0_i32_0 : i32, i32
  }
  func.func @transform_19(%arg0: i32, %arg1: i32) -> (i32, i32, i32) {
    %c0_i32 = arith.constant 0 : i32
    %c0_i32_0 = arith.constant 0 : i32
    return %arg0, %arg1, %c0_i32 : i32, i32, i32
  }
}

module attributes {stable_mosaic.version = 11 : i64} {
  func.func @bert_layer_kernel(%arg0: i32, %arg1: i32, %arg2: memref<1x8x32xf32, #tpu.memory_space<vmem>>, %arg3: memref<1x8x32xbf16, #tpu.memory_space<vmem>>, %arg4: memref<1x1x8xf32, #tpu.memory_space<vmem>>, %arg5: memref<32x32xbf16, #tpu.memory_space<vmem>>, %arg6: memref<1x32xf32, #tpu.memory_space<vmem>>, %arg7: memref<32x32xbf16, #tpu.memory_space<vmem>>, %arg8: memref<1x32xf32, #tpu.memory_space<vmem>>, %arg9: memref<32x32xbf16, #tpu.memory_space<vmem>>, %arg10: memref<1x32xf32, #tpu.memory_space<vmem>>, %arg11: memref<4x8x32xbf16, #tpu.memory_space<vmem>>, %arg12: memref<1x32xf32, #tpu.memory_space<vmem>>, %arg13: memref<1x32xf32, #tpu.memory_space<vmem>>, %arg14: memref<1x32xf32, #tpu.memory_space<vmem>>, %arg15: memref<32x64xbf16, #tpu.memory_space<vmem>>, %arg16: memref<1x64xf32, #tpu.memory_space<vmem>>, %arg17: memref<64x32xbf16, #tpu.memory_space<vmem>>, %arg18: memref<1x32xf32, #tpu.memory_space<vmem>>, %arg19: memref<1x32xf32, #tpu.memory_space<vmem>>, %arg20: memref<1x32xf32, #tpu.memory_space<vmem>>, %arg21: memref<1x8x32xf32, #tpu.memory_space<vmem>>, %arg22: memref<4x8x8xbf16, #tpu.memory_space<vmem>>, %arg23: memref<4x8x8xbf16, #tpu.memory_space<vmem>>, %arg24: memref<4x8x8xbf16, #tpu.memory_space<vmem>>) attributes {dimension_semantics = [#tpu.dimension_semantics<parallel>, #tpu.dimension_semantics<arbitrary>], iteration_bounds = array<i64: 2, 1>, scalar_prefetch = 0 : i64, scratch_operands = 3 : i64, tpu.core_type = #tpu.core_type<tc>, window_params = [{transform_indices = @transform_0, window_bounds = array<i64: 1, 8, 32>}, {transform_indices = @transform_1, window_bounds = array<i64: 1, 8, 32>}, {transform_indices = @transform_2, window_bounds = array<i64: 1, 1, 8>}, {pipeline_mode = #tpu.pipeline_mode<synchronous>, transform_indices = @transform_3, window_bounds = array<i64: 32, 32>}, {pipeline_mode = #tpu.pipeline_mode<synchronous>, transform_indices = @transform_4, window_bounds = array<i64: 1, 32>}, {pipeline_mode = #tpu.pipeline_mode<synchronous>, transform_indices = @transform_5, window_bounds = array<i64: 32, 32>}, {pipeline_mode = #tpu.pipeline_mode<synchronous>, transform_indices = @transform_6, window_bounds = array<i64: 1, 32>}, {pipeline_mode = #tpu.pipeline_mode<synchronous>, transform_indices = @transform_7, window_bounds = array<i64: 32, 32>}, {pipeline_mode = #tpu.pipeline_mode<synchronous>, transform_indices = @transform_8, window_bounds = array<i64: 1, 32>}, {pipeline_mode = #tpu.pipeline_mode<synchronous>, transform_indices = @transform_9, window_bounds = array<i64: 4, 8, 32>}, {pipeline_mode = #tpu.pipeline_mode<synchronous>, transform_indices = @transform_10, window_bounds = array<i64: 1, 32>}, {pipeline_mode = #tpu.pipeline_mode<synchronous>, transform_indices = @transform_11, window_bounds = array<i64: 1, 32>}, {pipeline_mode = #tpu.pipeline_mode<synchronous>, transform_indices = @transform_12, window_bounds = array<i64: 1, 32>}, {pipeline_mode = #tpu.pipeline_mode<synchronous>, transform_indices = @transform_13, window_bounds = array<i64: 32, 64>}, {pipeline_mode = #tpu.pipeline_mode<synchronous>, transform_indices = @transform_14, window_bounds = array<i64: 1, 64>}, {pipeline_mode = #tpu.pipeline_mode<synchronous>, transform_indices = @transform_15, window_bounds = array<i64: 64, 32>}, {pipeline_mode = #tpu.pipeline_mode<synchronous>, transform_indices = @transform_16, window_bounds = array<i64: 1, 32>}, {pipeline_mode = #tpu.pipeline_mode<synchronous>, transform_indices = @transform_17, window_bounds = array<i64: 1, 32>}, {pipeline_mode = #tpu.pipeline_mode<synchronous>, transform_indices = @transform_18, window_bounds = array<i64: 1, 32>}, {transform_indices = @transform_19, window_bounds = array<i64: 1, 8, 32>}]} {
    %c0 = arith.constant 0 : index
    %c0_0 = arith.constant 0 : index
    %c0_1 = arith.constant 0 : index
    %0 = vector.load %arg2[%c0, %c0_0, %c0_1] : memref<1x8x32xf32, #tpu.memory_space<vmem>>, vector<1x8x32xf32>
    %1 = vector.shape_cast %0 : vector<1x8x32xf32> to vector<8x32xf32>
    %c0_i32 = arith.constant 0 : i32
    %2 = arith.cmpi eq, %arg1, %c0_i32 : i32
    %3 = arith.extui %2 : i1 to i32
    %c0_i32_2 = arith.constant 0 : i32
    %4 = arith.cmpi ne, %3, %c0_i32_2 : i32
    scf.if %4 {
      %c0_89 = arith.constant 0 : index
      %c0_90 = arith.constant 0 : index
      %c0_91 = arith.constant 0 : index
      %166 = vector.load %arg3[%c0_89, %c0_90, %c0_91] : memref<1x8x32xbf16, #tpu.memory_space<vmem>>, vector<1x8x32xbf16>
      %167 = vector.shape_cast %166 : vector<1x8x32xbf16> to vector<8x32xbf16>
      %c0_92 = arith.constant 0 : index
      %c0_93 = arith.constant 0 : index
      %168 = vector.load %arg7[%c0_92, %c0_93] : memref<32x32xbf16, #tpu.memory_space<vmem>>, vector<32x32xbf16>
      %cst_94 = arith.constant dense<0.000000e+00> : vector<8x32xf32>
      %169 = tpu.matmul %167, %168, %cst_94 {dimension_numbers = #tpu.dot_dimension_numbers<[1], [0], [0], [1], [0, 0, 1, 1], [], []>} : vector<8x32xbf16>, vector<32x32xbf16>, vector<8x32xf32> -> vector<8x32xf32>
      %c0_95 = arith.constant 0 : index
      %c0_96 = arith.constant 0 : index
      %170 = vector.load %arg8[%c0_95, %c0_96] : memref<1x32xf32, #tpu.memory_space<vmem>>, vector<1x32xf32>
      %171 = vector.broadcast %170 : vector<1x32xf32> to vector<8x32xf32>
      %172 = arith.addf %169, %171 : vector<8x32xf32>
      %c0_97 = arith.constant 0 : index
      %c0_98 = arith.constant 0 : index
      %173 = vector.load %arg9[%c0_97, %c0_98] : memref<32x32xbf16, #tpu.memory_space<vmem>>, vector<32x32xbf16>
      %cst_99 = arith.constant dense<0.000000e+00> : vector<8x32xf32>
      %174 = tpu.matmul %167, %173, %cst_99 {dimension_numbers = #tpu.dot_dimension_numbers<[1], [0], [0], [1], [0, 0, 1, 1], [], []>} : vector<8x32xbf16>, vector<32x32xbf16>, vector<8x32xf32> -> vector<8x32xf32>
      %c0_100 = arith.constant 0 : index
      %c0_101 = arith.constant 0 : index
      %175 = vector.load %arg10[%c0_100, %c0_101] : memref<1x32xf32, #tpu.memory_space<vmem>>, vector<1x32xf32>
      %176 = vector.broadcast %175 : vector<1x32xf32> to vector<8x32xf32>
      %177 = arith.addf %174, %176 : vector<8x32xf32>
      %178 = arith.truncf %172 : vector<8x32xf32> to vector<8x32xbf16>
      %179 = arith.truncf %177 : vector<8x32xf32> to vector<8x32xbf16>
      %180 = vector.extract_strided_slice %178 {offsets = [0, 0], sizes = [8, 8], strides = [1, 1]} : vector<8x32xbf16> to vector<8x8xbf16>
      %c0_102 = arith.constant 0 : index
      %c0_103 = arith.constant 0 : index
      %c0_104 = arith.constant 0 : index
      %181 = vector.load %arg23[%c0_102, %c0_103, %c0_104] : memref<4x8x8xbf16, #tpu.memory_space<vmem>>, vector<1x8x8xbf16>
      %182 = vector.shape_cast %181 : vector<1x8x8xbf16> to vector<8x8xbf16>
      %183 = vector.shape_cast %180 : vector<8x8xbf16> to vector<1x8x8xbf16>
      tpu.vector_store %arg23[%c0_102, %c0_103, %c0_104], %183 {strides = array<i32>} : memref<4x8x8xbf16, #tpu.memory_space<vmem>>, vector<1x8x8xbf16>,
      %184 = vector.extract_strided_slice %179 {offsets = [0, 0], sizes = [8, 8], strides = [1, 1]} : vector<8x32xbf16> to vector<8x8xbf16>
      %c0_105 = arith.constant 0 : index
      %c0_106 = arith.constant 0 : index
      %c0_107 = arith.constant 0 : index
      %185 = vector.load %arg24[%c0_105, %c0_106, %c0_107] : memref<4x8x8xbf16, #tpu.memory_space<vmem>>, vector<1x8x8xbf16>
      %186 = vector.shape_cast %185 : vector<1x8x8xbf16> to vector<8x8xbf16>
      %187 = vector.shape_cast %184 : vector<8x8xbf16> to vector<1x8x8xbf16>
      tpu.vector_store %arg24[%c0_105, %c0_106, %c0_107], %187 {strides = array<i32>} : memref<4x8x8xbf16, #tpu.memory_space<vmem>>, vector<1x8x8xbf16>,
      %188 = vector.extract_strided_slice %178 {offsets = [0, 8], sizes = [8, 8], strides = [1, 1]} : vector<8x32xbf16> to vector<8x8xbf16>
      %c1_108 = arith.constant 1 : index
      %c0_109 = arith.constant 0 : index
      %c0_110 = arith.constant 0 : index
      %189 = vector.load %arg23[%c1_108, %c0_109, %c0_110] : memref<4x8x8xbf16, #tpu.memory_space<vmem>>, vector<1x8x8xbf16>
      %190 = vector.shape_cast %189 : vector<1x8x8xbf16> to vector<8x8xbf16>
      %191 = vector.shape_cast %188 : vector<8x8xbf16> to vector<1x8x8xbf16>
      tpu.vector_store %arg23[%c1_108, %c0_109, %c0_110], %191 {strides = array<i32>} : memref<4x8x8xbf16, #tpu.memory_space<vmem>>, vector<1x8x8xbf16>,
      %192 = vector.extract_strided_slice %179 {offsets = [0, 8], sizes = [8, 8], strides = [1, 1]} : vector<8x32xbf16> to vector<8x8xbf16>
      %c1_111 = arith.constant 1 : index
      %c0_112 = arith.constant 0 : index
      %c0_113 = arith.constant 0 : index
      %193 = vector.load %arg24[%c1_111, %c0_112, %c0_113] : memref<4x8x8xbf16, #tpu.memory_space<vmem>>, vector<1x8x8xbf16>
      %194 = vector.shape_cast %193 : vector<1x8x8xbf16> to vector<8x8xbf16>
      %195 = vector.shape_cast %192 : vector<8x8xbf16> to vector<1x8x8xbf16>
      tpu.vector_store %arg24[%c1_111, %c0_112, %c0_113], %195 {strides = array<i32>} : memref<4x8x8xbf16, #tpu.memory_space<vmem>>, vector<1x8x8xbf16>,
      %196 = vector.extract_strided_slice %178 {offsets = [0, 16], sizes = [8, 8], strides = [1, 1]} : vector<8x32xbf16> to vector<8x8xbf16>
      %c2_114 = arith.constant 2 : index
      %c0_115 = arith.constant 0 : index
      %c0_116 = arith.constant 0 : index
      %197 = vector.load %arg23[%c2_114, %c0_115, %c0_116] : memref<4x8x8xbf16, #tpu.memory_space<vmem>>, vector<1x8x8xbf16>
      %198 = vector.shape_cast %197 : vector<1x8x8xbf16> to vector<8x8xbf16>
      %199 = vector.shape_cast %196 : vector<8x8xbf16> to vector<1x8x8xbf16>
      tpu.vector_store %arg23[%c2_114, %c0_115, %c0_116], %199 {strides = array<i32>} : memref<4x8x8xbf16, #tpu.memory_space<vmem>>, vector<1x8x8xbf16>,
      %200 = vector.extract_strided_slice %179 {offsets = [0, 16], sizes = [8, 8], strides = [1, 1]} : vector<8x32xbf16> to vector<8x8xbf16>
      %c2_117 = arith.constant 2 : index
      %c0_118 = arith.constant 0 : index
      %c0_119 = arith.constant 0 : index
      %201 = vector.load %arg24[%c2_117, %c0_118, %c0_119] : memref<4x8x8xbf16, #tpu.memory_space<vmem>>, vector<1x8x8xbf16>
      %202 = vector.shape_cast %201 : vector<1x8x8xbf16> to vector<8x8xbf16>
      %203 = vector.shape_cast %200 : vector<8x8xbf16> to vector<1x8x8xbf16>
      tpu.vector_store %arg24[%c2_117, %c0_118, %c0_119], %203 {strides = array<i32>} : memref<4x8x8xbf16, #tpu.memory_space<vmem>>, vector<1x8x8xbf16>,
      %204 = vector.extract_strided_slice %178 {offsets = [0, 24], sizes = [8, 8], strides = [1, 1]} : vector<8x32xbf16> to vector<8x8xbf16>
      %c3_120 = arith.constant 3 : index
      %c0_121 = arith.constant 0 : index
      %c0_122 = arith.constant 0 : index
      %205 = vector.load %arg23[%c3_120, %c0_121, %c0_122] : memref<4x8x8xbf16, #tpu.memory_space<vmem>>, vector<1x8x8xbf16>
      %206 = vector.shape_cast %205 : vector<1x8x8xbf16> to vector<8x8xbf16>
      %207 = vector.shape_cast %204 : vector<8x8xbf16> to vector<1x8x8xbf16>
      tpu.vector_store %arg23[%c3_120, %c0_121, %c0_122], %207 {strides = array<i32>} : memref<4x8x8xbf16, #tpu.memory_space<vmem>>, vector<1x8x8xbf16>,
      %208 = vector.extract_strided_slice %179 {offsets = [0, 24], sizes = [8, 8], strides = [1, 1]} : vector<8x32xbf16> to vector<8x8xbf16>
      %c3_123 = arith.constant 3 : index
      %c0_124 = arith.constant 0 : index
      %c0_125 = arith.constant 0 : index
      %209 = vector.load %arg24[%c3_123, %c0_124, %c0_125] : memref<4x8x8xbf16, #tpu.memory_space<vmem>>, vector<1x8x8xbf16>
      %210 = vector.shape_cast %209 : vector<1x8x8xbf16> to vector<8x8xbf16>
      %211 = vector.shape_cast %208 : vector<8x8xbf16> to vector<1x8x8xbf16>
      tpu.vector_store %arg24[%c3_123, %c0_124, %c0_125], %211 {strides = array<i32>} : memref<4x8x8xbf16, #tpu.memory_space<vmem>>, vector<1x8x8xbf16>,
    } else {
    }
    %5 = arith.truncf %1 : vector<8x32xf32> to vector<8x32xbf16>
    %c0_3 = arith.constant 0 : index
    %c0_4 = arith.constant 0 : index
    %6 = vector.load %arg5[%c0_3, %c0_4] : memref<32x32xbf16, #tpu.memory_space<vmem>>, vector<32x32xbf16>
    %cst = arith.constant dense<0.000000e+00> : vector<8x32xf32>
    %7 = tpu.matmul %5, %6, %cst {dimension_numbers = #tpu.dot_dimension_numbers<[1], [0], [0], [1], [0, 0, 1, 1], [], []>} : vector<8x32xbf16>, vector<32x32xbf16>, vector<8x32xf32> -> vector<8x32xf32>
    %c0_5 = arith.constant 0 : index
    %c0_6 = arith.constant 0 : index
    %8 = vector.load %arg6[%c0_5, %c0_6] : memref<1x32xf32, #tpu.memory_space<vmem>>, vector<1x32xf32>
    %9 = vector.broadcast %8 : vector<1x32xf32> to vector<8x32xf32>
    %10 = arith.addf %7, %9 : vector<8x32xf32>
    %cst_7 = arith.constant 0.353553385 : f32
    %11 = vector.broadcast %cst_7 : f32 to vector<8x32xf32>
    %12 = arith.mulf %10, %11 : vector<8x32xf32>
    %13 = arith.truncf %12 : vector<8x32xf32> to vector<8x32xbf16>
    %14 = vector.extract_strided_slice %13 {offsets = [0, 0], sizes = [8, 8], strides = [1, 1]} : vector<8x32xbf16> to vector<8x8xbf16>
    %c0_8 = arith.constant 0 : index
    %c0_9 = arith.constant 0 : index
    %c0_10 = arith.constant 0 : index
    %15 = vector.load %arg22[%c0_8, %c0_9, %c0_10] : memref<4x8x8xbf16, #tpu.memory_space<vmem>>, vector<1x8x8xbf16>
    %16 = vector.shape_cast %15 : vector<1x8x8xbf16> to vector<8x8xbf16>
    %17 = vector.shape_cast %14 : vector<8x8xbf16> to vector<1x8x8xbf16>
    tpu.vector_store %arg22[%c0_8, %c0_9, %c0_10], %17 {strides = array<i32>} : memref<4x8x8xbf16, #tpu.memory_space<vmem>>, vector<1x8x8xbf16>,
    %18 = vector.extract_strided_slice %13 {offsets = [0, 8], sizes = [8, 8], strides = [1, 1]} : vector<8x32xbf16> to vector<8x8xbf16>
    %c1 = arith.constant 1 : index
    %c0_11 = arith.constant 0 : index
    %c0_12 = arith.constant 0 : index
    %19 = vector.load %arg22[%c1, %c0_11, %c0_12] : memref<4x8x8xbf16, #tpu.memory_space<vmem>>, vector<1x8x8xbf16>
    %20 = vector.shape_cast %19 : vector<1x8x8xbf16> to vector<8x8xbf16>
    %21 = vector.shape_cast %18 : vector<8x8xbf16> to vector<1x8x8xbf16>
    tpu.vector_store %arg22[%c1, %c0_11, %c0_12], %21 {strides = array<i32>} : memref<4x8x8xbf16, #tpu.memory_space<vmem>>, vector<1x8x8xbf16>,
    %22 = vector.extract_strided_slice %13 {offsets = [0, 16], sizes = [8, 8], strides = [1, 1]} : vector<8x32xbf16> to vector<8x8xbf16>
    %c2 = arith.constant 2 : index
    %c0_13 = arith.constant 0 : index
    %c0_14 = arith.constant 0 : index
    %23 = vector.load %arg22[%c2, %c0_13, %c0_14] : memref<4x8x8xbf16, #tpu.memory_space<vmem>>, vector<1x8x8xbf16>
    %24 = vector.shape_cast %23 : vector<1x8x8xbf16> to vector<8x8xbf16>
    %25 = vector.shape_cast %22 : vector<8x8xbf16> to vector<1x8x8xbf16>
    tpu.vector_store %arg22[%c2, %c0_13, %c0_14], %25 {strides = array<i32>} : memref<4x8x8xbf16, #tpu.memory_space<vmem>>, vector<1x8x8xbf16>,
    %26 = vector.extract_strided_slice %13 {offsets = [0, 24], sizes = [8, 8], strides = [1, 1]} : vector<8x32xbf16> to vector<8x8xbf16>
    %c3 = arith.constant 3 : index
    %c0_15 = arith.constant 0 : index
    %c0_16 = arith.constant 0 : index
    %27 = vector.load %arg22[%c3, %c0_15, %c0_16] : memref<4x8x8xbf16, #tpu.memory_space<vmem>>, vector<1x8x8xbf16>
    %28 = vector.shape_cast %27 : vector<1x8x8xbf16> to vector<8x8xbf16>
    %29 = vector.shape_cast %26 : vector<8x8xbf16> to vector<1x8x8xbf16>
    tpu.vector_store %arg22[%c3, %c0_15, %c0_16], %29 {strides = array<i32>} : memref<4x8x8xbf16, #tpu.memory_space<vmem>>, vector<1x8x8xbf16>,
    %c0_17 = arith.constant 0 : index
    %c0_18 = arith.constant 0 : index
    %c0_19 = arith.constant 0 : index
    %30 = vector.load %arg22[%c0_17, %c0_18, %c0_19] : memref<4x8x8xbf16, #tpu.memory_space<vmem>>, vector<4x8x8xbf16>
    %cst_20 = arith.constant -1.000000e+30 : f32
    %31 = vector.broadcast %cst_20 : f32 to vector<4x8x1xf32>
    %cst_21 = arith.constant 0.000000e+00 : f32
    %32 = vector.broadcast %cst_21 : f32 to vector<4x8x1xf32>
    %cst_22 = arith.constant 0.000000e+00 : f32
    %33 = vector.broadcast %cst_22 : f32 to vector<4x8x8xf32>
    %c0_23 = arith.constant 0 : index
    %c0_24 = arith.constant 0 : index
    %c0_25 = arith.constant 0 : index
    %34 = vector.load %arg23[%c0_23, %c0_24, %c0_25] : memref<4x8x8xbf16, #tpu.memory_space<vmem>>, vector<4x8x8xbf16>
    %c0_26 = arith.constant 0 : index
    %c0_27 = arith.constant 0 : index
    %c0_28 = arith.constant 0 : index
    %35 = vector.load %arg24[%c0_26, %c0_27, %c0_28] : memref<4x8x8xbf16, #tpu.memory_space<vmem>>, vector<4x8x8xbf16>
    %c0_29 = arith.constant 0 : index
    %c0_30 = arith.constant 0 : index
    %c0_31 = arith.constant 0 : index
    %36 = vector.load %arg4[%c0_29, %c0_30, %c0_31] : memref<1x1x8xf32, #tpu.memory_space<vmem>>, vector<1x1x8xf32>
    %37 = vector.shape_cast %36 : vector<1x1x8xf32> to vector<1x8xf32>
    "tpu.trace_start"() <{level = 10 : i32, message = "nqd,nkd->nqk"}> : () -> ()
    %cst_32 = arith.constant dense<0.000000e+00> : vector<4x8x8xf32>
    %38 = tpu.matmul %30, %34, %cst_32 {dimension_numbers = #tpu.dot_dimension_numbers<[2], [2], [1], [1], [0, 0, 0, 1, 1, 1], [0], [0]>} : vector<4x8x8xbf16>, vector<4x8x8xbf16>, vector<4x8x8xf32> -> vector<4x8x8xf32>
    "tpu.trace_stop"() : () -> ()
    %39 = vector.shape_cast %37 : vector<1x8xf32> to vector<1x1x8xf32>
    %40 = vector.broadcast %39 : vector<1x1x8xf32> to vector<4x8x8xf32>
    %41 = arith.addf %38, %40 : vector<4x8x8xf32>
    %cst_33 = arith.constant dense<0xFF800000> : vector<4x8xf32>
    %42 = vector.multi_reduction <maximumf>, %41, %cst_33 [2] : vector<4x8x8xf32> to vector<4x8xf32>
    %43 = vector.shape_cast %42 : vector<4x8xf32> to vector<4x8x1xf32>
    %44 = arith.maximumf %31, %43 : vector<4x8x1xf32>
    %45 = arith.subf %31, %44 : vector<4x8x1xf32>
    %46 = math.exp %45 : vector<4x8x1xf32>
    %47 = vector.broadcast %44 : vector<4x8x1xf32> to vector<4x8x8xf32>
    %48 = arith.subf %41, %47 : vector<4x8x8xf32>
    %49 = math.exp %48 : vector<4x8x8xf32>
    %50 = arith.mulf %46, %32 : vector<4x8x1xf32>
    %cst_34 = arith.constant dense<0.000000e+00> : vector<4x8xf32>
    %51 = vector.multi_reduction <add>, %49, %cst_34 [2] : vector<4x8x8xf32> to vector<4x8xf32>
    %52 = vector.shape_cast %51 : vector<4x8xf32> to vector<4x8x1xf32>
    %53 = arith.addf %50, %52 : vector<4x8x1xf32>
    %54 = vector.broadcast %46 : vector<4x8x1xf32> to vector<4x8x8xf32>
    %55 = arith.mulf %54, %33 : vector<4x8x8xf32>
    %56 = arith.truncf %49 : vector<4x8x8xf32> to vector<4x8x8xbf16>
    "tpu.trace_start"() <{level = 10 : i32, message = "nqk,nkd->nqd"}> : () -> ()
    %cst_35 = arith.constant dense<0.000000e+00> : vector<4x8x8xf32>
    %57 = tpu.matmul %56, %35, %cst_35 {dimension_numbers = #tpu.dot_dimension_numbers<[2], [1], [1], [2], [0, 0, 0, 1, 1, 2], [0], [0]>} : vector<4x8x8xbf16>, vector<4x8x8xbf16>, vector<4x8x8xf32> -> vector<4x8x8xf32>
    "tpu.trace_stop"() : () -> ()
    %58 = arith.addf %55, %57 : vector<4x8x8xf32>
    %59 = tpu.reciprocal %53 {approx = true} : vector<4x8x1xf32> -> vector<4x8x1xf32>
    %60 = vector.broadcast %59 : vector<4x8x1xf32> to vector<4x8x8xf32>
    %61 = arith.mulf %58, %60 : vector<4x8x8xf32>
    %62 = vector.extract_strided_slice %61 {offsets = [0, 0, 0], sizes = [1, 8, 8], strides = [1, 1, 1]} : vector<4x8x8xf32> to vector<1x8x8xf32>
    %63 = vector.shape_cast %62 : vector<1x8x8xf32> to vector<8x8xf32>
    %64 = arith.truncf %63 : vector<8x8xf32> to vector<8x8xbf16>
    %c0_36 = arith.constant 0 : index
    %c0_37 = arith.constant 0 : index
    %c0_38 = arith.constant 0 : index
    %65 = vector.load %arg11[%c0_36, %c0_37, %c0_38] : memref<4x8x32xbf16, #tpu.memory_space<vmem>>, vector<1x8x32xbf16>
    %66 = vector.shape_cast %65 : vector<1x8x32xbf16> to vector<8x32xbf16>
    %cst_39 = arith.constant dense<0.000000e+00> : vector<8x32xf32>
    %67 = tpu.matmul %64, %66, %cst_39 {dimension_numbers = #tpu.dot_dimension_numbers<[1], [0], [0], [1], [0, 0, 1, 1], [], []>} : vector<8x8xbf16>, vector<8x32xbf16>, vector<8x32xf32> -> vector<8x32xf32>
    %68 = vector.extract_strided_slice %61 {offsets = [1, 0, 0], sizes = [1, 8, 8], strides = [1, 1, 1]} : vector<4x8x8xf32> to vector<1x8x8xf32>
    %69 = vector.shape_cast %68 : vector<1x8x8xf32> to vector<8x8xf32>
    %70 = arith.truncf %69 : vector<8x8xf32> to vector<8x8xbf16>
    %c1_40 = arith.constant 1 : index
    %c0_41 = arith.constant 0 : index
    %c0_42 = arith.constant 0 : index
    %71 = vector.load %arg11[%c1_40, %c0_41, %c0_42] : memref<4x8x32xbf16, #tpu.memory_space<vmem>>, vector<1x8x32xbf16>
    %72 = vector.shape_cast %71 : vector<1x8x32xbf16> to vector<8x32xbf16>
    %cst_43 = arith.constant dense<0.000000e+00> : vector<8x32xf32>
    %73 = tpu.matmul %70, %72, %cst_43 {dimension_numbers = #tpu.dot_dimension_numbers<[1], [0], [0], [1], [0, 0, 1, 1], [], []>} : vector<8x8xbf16>, vector<8x32xbf16>, vector<8x32xf32> -> vector<8x32xf32>
    %74 = arith.addf %67, %73 : vector<8x32xf32>
    %75 = vector.extract_strided_slice %61 {offsets = [2, 0, 0], sizes = [1, 8, 8], strides = [1, 1, 1]} : vector<4x8x8xf32> to vector<1x8x8xf32>
    %76 = vector.shape_cast %75 : vector<1x8x8xf32> to vector<8x8xf32>
    %77 = arith.truncf %76 : vector<8x8xf32> to vector<8x8xbf16>
    %c2_44 = arith.constant 2 : index
    %c0_45 = arith.constant 0 : index
    %c0_46 = arith.constant 0 : index
    %78 = vector.load %arg11[%c2_44, %c0_45, %c0_46] : memref<4x8x32xbf16, #tpu.memory_space<vmem>>, vector<1x8x32xbf16>
    %79 = vector.shape_cast %78 : vector<1x8x32xbf16> to vector<8x32xbf16>
    %cst_47 = arith.constant dense<0.000000e+00> : vector<8x32xf32>
    %80 = tpu.matmul %77, %79, %cst_47 {dimension_numbers = #tpu.dot_dimension_numbers<[1], [0], [0], [1], [0, 0, 1, 1], [], []>} : vector<8x8xbf16>, vector<8x32xbf16>, vector<8x32xf32> -> vector<8x32xf32>
    %81 = arith.addf %74, %80 : vector<8x32xf32>
    %82 = vector.extract_strided_slice %61 {offsets = [3, 0, 0], sizes = [1, 8, 8], strides = [1, 1, 1]} : vector<4x8x8xf32> to vector<1x8x8xf32>
    %83 = vector.shape_cast %82 : vector<1x8x8xf32> to vector<8x8xf32>
    %84 = arith.truncf %83 : vector<8x8xf32> to vector<8x8xbf16>
    %c3_48 = arith.constant 3 : index
    %c0_49 = arith.constant 0 : index
    %c0_50 = arith.constant 0 : index
    %85 = vector.load %arg11[%c3_48, %c0_49, %c0_50] : memref<4x8x32xbf16, #tpu.memory_space<vmem>>, vector<1x8x32xbf16>
    %86 = vector.shape_cast %85 : vector<1x8x32xbf16> to vector<8x32xbf16>
    %cst_51 = arith.constant dense<0.000000e+00> : vector<8x32xf32>
    %87 = tpu.matmul %84, %86, %cst_51 {dimension_numbers = #tpu.dot_dimension_numbers<[1], [0], [0], [1], [0, 0, 1, 1], [], []>} : vector<8x8xbf16>, vector<8x32xbf16>, vector<8x32xf32> -> vector<8x32xf32>
    %88 = arith.addf %81, %87 : vector<8x32xf32>
    %c0_52 = arith.constant 0 : index
    %c0_53 = arith.constant 0 : index
    %89 = vector.load %arg12[%c0_52, %c0_53] : memref<1x32xf32, #tpu.memory_space<vmem>>, vector<1x32xf32>
    %90 = vector.broadcast %89 : vector<1x32xf32> to vector<8x32xf32>
    %91 = arith.addf %88, %90 : vector<8x32xf32>
    %92 = arith.addf %91, %1 : vector<8x32xf32>
    %c0_54 = arith.constant 0 : index
    %c0_55 = arith.constant 0 : index
    %93 = vector.load %arg13[%c0_54, %c0_55] : memref<1x32xf32, #tpu.memory_space<vmem>>, vector<1x32xf32>
    %c0_56 = arith.constant 0 : index
    %c0_57 = arith.constant 0 : index
    %94 = vector.load %arg14[%c0_56, %c0_57] : memref<1x32xf32, #tpu.memory_space<vmem>>, vector<1x32xf32>
    %cst_58 = arith.constant dense<0.000000e+00> : vector<8xf32>
    %95 = vector.multi_reduction <add>, %92, %cst_58 [1] : vector<8x32xf32> to vector<8xf32>
    %96 = vector.shape_cast %95 : vector<8xf32> to vector<8x1xf32>
    %cst_59 = arith.constant 3.200000e+01 : f32
    %97 = vector.broadcast %cst_59 : f32 to vector<8x1xf32>
    %98 = arith.divf %96, %97 : vector<8x1xf32>
    %99 = vector.broadcast %98 : vector<8x1xf32> to vector<8x32xf32>
    %100 = arith.subf %92, %99 : vector<8x32xf32>
    %101 = arith.mulf %100, %100 : vector<8x32xf32>
    %cst_60 = arith.constant dense<0.000000e+00> : vector<8xf32>
    %102 = vector.multi_reduction <add>, %101, %cst_60 [1] : vector<8x32xf32> to vector<8xf32>
    %103 = vector.shape_cast %102 : vector<8xf32> to vector<8x1xf32>
    %cst_61 = arith.constant 3.200000e+01 : f32
    %104 = vector.broadcast %cst_61 : f32 to vector<8x1xf32>
    %105 = arith.divf %103, %104 : vector<8x1xf32>
    %cst_62 = arith.constant 9.99999996E-13 : f32
    %106 = vector.broadcast %cst_62 : f32 to vector<8x1xf32>
    %107 = arith.addf %105, %106 : vector<8x1xf32>
    %108 = math.rsqrt %107 : vector<8x1xf32>
    %109 = vector.broadcast %108 : vector<8x1xf32> to vector<8x32xf32>
    %110 = arith.mulf %100, %109 : vector<8x32xf32>
    %111 = vector.broadcast %93 : vector<1x32xf32> to vector<8x32xf32>
    %112 = arith.mulf %110, %111 : vector<8x32xf32>
    %113 = vector.broadcast %94 : vector<1x32xf32> to vector<8x32xf32>
    %114 = arith.addf %112, %113 : vector<8x32xf32>
    %115 = arith.truncf %114 : vector<8x32xf32> to vector<8x32xbf16>
    %c0_63 = arith.constant 0 : index
    %c0_64 = arith.constant 0 : index
    %116 = vector.load %arg15[%c0_63, %c0_64] : memref<32x64xbf16, #tpu.memory_space<vmem>>, vector<32x64xbf16>
    %cst_65 = arith.constant dense<0.000000e+00> : vector<8x64xf32>
    %117 = tpu.matmul %115, %116, %cst_65 {dimension_numbers = #tpu.dot_dimension_numbers<[1], [0], [0], [1], [0, 0, 1, 1], [], []>} : vector<8x32xbf16>, vector<32x64xbf16>, vector<8x64xf32> -> vector<8x64xf32>
    %c0_66 = arith.constant 0 : index
    %c0_67 = arith.constant 0 : index
    %118 = vector.load %arg16[%c0_66, %c0_67] : memref<1x64xf32, #tpu.memory_space<vmem>>, vector<1x64xf32>
    %119 = vector.broadcast %118 : vector<1x64xf32> to vector<8x64xf32>
    %120 = arith.addf %117, %119 : vector<8x64xf32>
    %cst_68 = arith.constant 5.000000e-01 : f32
    %121 = vector.broadcast %cst_68 : f32 to vector<8x64xf32>
    %122 = arith.mulf %121, %120 : vector<8x64xf32>
    %cst_69 = arith.constant 4.471500e-02 : f32
    %123 = vector.broadcast %cst_69 : f32 to vector<8x64xf32>
    %124 = arith.mulf %123, %120 : vector<8x64xf32>
    %125 = arith.mulf %124, %120 : vector<8x64xf32>
    %126 = arith.mulf %125, %120 : vector<8x64xf32>
    %127 = arith.addf %120, %126 : vector<8x64xf32>
    %cst_70 = arith.constant 0.797884583 : f32
    %128 = vector.broadcast %cst_70 : f32 to vector<8x64xf32>
    %129 = arith.mulf %128, %127 : vector<8x64xf32>
    %130 = math.tanh %129 : vector<8x64xf32>
    %cst_71 = arith.constant 1.000000e+00 : f32
    %131 = vector.broadcast %cst_71 : f32 to vector<8x64xf32>
    %132 = arith.addf %131, %130 : vector<8x64xf32>
    %133 = arith.mulf %122, %132 : vector<8x64xf32>
    %134 = arith.truncf %133 : vector<8x64xf32> to vector<8x64xbf16>
    %c0_72 = arith.constant 0 : index
    %c0_73 = arith.constant 0 : index
    %135 = vector.load %arg17[%c0_72, %c0_73] : memref<64x32xbf16, #tpu.memory_space<vmem>>, vector<64x32xbf16>
    %cst_74 = arith.constant dense<0.000000e+00> : vector<8x32xf32>
    %136 = tpu.matmul %134, %135, %cst_74 {dimension_numbers = #tpu.dot_dimension_numbers<[1], [0], [0], [1], [0, 0, 1, 1], [], []>} : vector<8x64xbf16>, vector<64x32xbf16>, vector<8x32xf32> -> vector<8x32xf32>
    %c0_75 = arith.constant 0 : index
    %c0_76 = arith.constant 0 : index
    %137 = vector.load %arg18[%c0_75, %c0_76] : memref<1x32xf32, #tpu.memory_space<vmem>>, vector<1x32xf32>
    %138 = vector.broadcast %137 : vector<1x32xf32> to vector<8x32xf32>
    %139 = arith.addf %136, %138 : vector<8x32xf32>
    %140 = arith.addf %139, %114 : vector<8x32xf32>
    %c0_77 = arith.constant 0 : index
    %c0_78 = arith.constant 0 : index
    %141 = vector.load %arg19[%c0_77, %c0_78] : memref<1x32xf32, #tpu.memory_space<vmem>>, vector<1x32xf32>
    %c0_79 = arith.constant 0 : index
    %c0_80 = arith.constant 0 : index
    %142 = vector.load %arg20[%c0_79, %c0_80] : memref<1x32xf32, #tpu.memory_space<vmem>>, vector<1x32xf32>
    %cst_81 = arith.constant dense<0.000000e+00> : vector<8xf32>
    %143 = vector.multi_reduction <add>, %140, %cst_81 [1] : vector<8x32xf32> to vector<8xf32>
    %144 = vector.shape_cast %143 : vector<8xf32> to vector<8x1xf32>
    %cst_82 = arith.constant 3.200000e+01 : f32
    %145 = vector.broadcast %cst_82 : f32 to vector<8x1xf32>
    %146 = arith.divf %144, %145 : vector<8x1xf32>
    %147 = vector.broadcast %146 : vector<8x1xf32> to vector<8x32xf32>
    %148 = arith.subf %140, %147 : vector<8x32xf32>
    %149 = arith.mulf %148, %148 : vector<8x32xf32>
    %cst_83 = arith.constant dense<0.000000e+00> : vector<8xf32>
    %150 = vector.multi_reduction <add>, %149, %cst_83 [1] : vector<8x32xf32> to vector<8xf32>
    %151 = vector.shape_cast %150 : vector<8xf32> to vector<8x1xf32>
    %cst_84 = arith.constant 3.200000e+01 : f32
    %152 = vector.broadcast %cst_84 : f32 to vector<8x1xf32>
    %153 = arith.divf %151, %152 : vector<8x1xf32>
    %cst_85 = arith.constant 9.99999996E-13 : f32
    %154 = vector.broadcast %cst_85 : f32 to vector<8x1xf32>
    %155 = arith.addf %153, %154 : vector<8x1xf32>
    %156 = math.rsqrt %155 : vector<8x1xf32>
    %157 = vector.broadcast %156 : vector<8x1xf32> to vector<8x32xf32>
    %158 = arith.mulf %148, %157 : vector<8x32xf32>
    %159 = vector.broadcast %141 : vector<1x32xf32> to vector<8x32xf32>
    %160 = arith.mulf %158, %159 : vector<8x32xf32>
    %161 = vector.broadcast %142 : vector<1x32xf32> to vector<8x32xf32>
    %162 = arith.addf %160, %161 : vector<8x32xf32>
    %c0_86 = arith.constant 0 : index
    %c0_87 = arith.constant 0 : index
    %c0_88 = arith.constant 0 : index
    %163 = vector.load %arg21[%c0_86, %c0_87, %c0_88] : memref<1x8x32xf32, #tpu.memory_space<vmem>>, vector<1x8x32xf32>
    %164 = vector.shape_cast %163 : vector<1x8x32xf32> to vector<8x32xf32>
    %165 = vector.shape_cast %162 : vector<8x32xf32> to vector<1x8x32xf32>
    tpu.vector_store %arg21[%c0_86, %c0_87, %c0_88], %165 {strides = array<i32>} : memref<1x8x32xf32, #tpu.memory_space<vmem>>, vector<1x8x32xf32>,
    return
  }
  func.func @transform_0(%arg0: i32, %arg1: i32) -> (i32, i32, i32) {
    %c0_i32 = arith.constant 0 : i32
    %c0_i32_0 = arith.constant 0 : i32
    return %arg0, %arg1, %c0_i32 : i32, i32, i32
  }
  func.func @transform_1(%arg0: i32, %arg1: i32) -> (i32, i32, i32) {
    %c0_i32 = arith.constant 0 : i32
    %c0_i32_0 = arith.constant 0 : i32
    %c0_i32_1 = arith.constant 0 : i32
    return %arg0, %c0_i32, %c0_i32_0 : i32, i32, i32
  }
  func.func @transform_2(%arg0: i32, %arg1: i32) -> (i32, i32, i32) {
    %c0_i32 = arith.constant 0 : i32
    %c0_i32_0 = arith.constant 0 : i32
    %c0_i32_1 = arith.constant 0 : i32
    return %arg0, %c0_i32, %c0_i32_0 : i32, i32, i32
  }
  func.func @transform_3(%arg0: i32, %arg1: i32) -> (i32, i32) {
    %c0_i32 = arith.constant 0 : i32
    %c0_i32_0 = arith.constant 0 : i32
    %c0_i32_1 = arith.constant 0 : i32
    return %c0_i32, %c0_i32_0 : i32, i32
  }
  func.func @transform_4(%arg0: i32, %arg1: i32) -> (i32, i32) {
    %c0_i32 = arith.constant 0 : i32
    %c0_i32_0 = arith.constant 0 : i32
    %c0_i32_1 = arith.constant 0 : i32
    return %c0_i32, %c0_i32_0 : i32, i32
  }
  func.func @transform_5(%arg0: i32, %arg1: i32) -> (i32, i32) {
    %c0_i32 = arith.constant 0 : i32
    %c0_i32_0 = arith.constant 0 : i32
    %c0_i32_1 = arith.constant 0 : i32
    return %c0_i32, %c0_i32_0 : i32, i32
  }
  func.func @transform_6(%arg0: i32, %arg1: i32) -> (i32, i32) {
    %c0_i32 = arith.constant 0 : i32
    %c0_i32_0 = arith.constant 0 : i32
    %c0_i32_1 = arith.constant 0 : i32
    return %c0_i32, %c0_i32_0 : i32, i32
  }
  func.func @transform_7(%arg0: i32, %arg1: i32) -> (i32, i32) {
    %c0_i32 = arith.constant 0 : i32
    %c0_i32_0 = arith.constant 0 : i32
    %c0_i32_1 = arith.constant 0 : i32
    return %c0_i32, %c0_i32_0 : i32, i32
  }
  func.func @transform_8(%arg0: i32, %arg1: i32) -> (i32, i32) {
    %c0_i32 = arith.constant 0 : i32
    %c0_i32_0 = arith.constant 0 : i32
    %c0_i32_1 = arith.constant 0 : i32
    return %c0_i32, %c0_i32_0 : i32, i32
  }
  func.func @transform_9(%arg0: i32, %arg1: i32) -> (i32, i32, i32) {
    %c0_i32 = arith.constant 0 : i32
    %c0_i32_0 = arith.constant 0 : i32
    %c0_i32_1 = arith.constant 0 : i32
    %c0_i32_2 = arith.constant 0 : i32
    return %c0_i32, %c0_i32_0, %c0_i32_1 : i32, i32, i32
  }
  func.func @transform_10(%arg0: i32, %arg1: i32) -> (i32, i32) {
    %c0_i32 = arith.constant 0 : i32
    %c0_i32_0 = arith.constant 0 : i32
    %c0_i32_1 = arith.constant 0 : i32
    return %c0_i32, %c0_i32_0 : i32, i32
  }
  func.func @transform_11(%arg0: i32, %arg1: i32) -> (i32, i32) {
    %c0_i32 = arith.constant 0 : i32
    %c0_i32_0 = arith.constant 0 : i32
    %c0_i32_1 = arith.constant 0 : i32
    return %c0_i32, %c0_i32_0 : i32, i32
  }
  func.func @transform_12(%arg0: i32, %arg1: i32) -> (i32, i32) {
    %c0_i32 = arith.constant 0 : i32
    %c0_i32_0 = arith.constant 0 : i32
    %c0_i32_1 = arith.constant 0 : i32
    return %c0_i32, %c0_i32_0 : i32, i32
  }
  func.func @transform_13(%arg0: i32, %arg1: i32) -> (i32, i32) {
    %c0_i32 = arith.constant 0 : i32
    %c0_i32_0 = arith.constant 0 : i32
    %c0_i32_1 = arith.constant 0 : i32
    return %c0_i32, %c0_i32_0 : i32, i32
  }
  func.func @transform_14(%arg0: i32, %arg1: i32) -> (i32, i32) {
    %c0_i32 = arith.constant 0 : i32
    %c0_i32_0 = arith.constant 0 : i32
    %c0_i32_1 = arith.constant 0 : i32
    return %c0_i32, %c0_i32_0 : i32, i32
  }
  func.func @transform_15(%arg0: i32, %arg1: i32) -> (i32, i32) {
    %c0_i32 = arith.constant 0 : i32
    %c0_i32_0 = arith.constant 0 : i32
    %c0_i32_1 = arith.constant 0 : i32
    return %c0_i32, %c0_i32_0 : i32, i32
  }
  func.func @transform_16(%arg0: i32, %arg1: i32) -> (i32, i32) {
    %c0_i32 = arith.constant 0 : i32
    %c0_i32_0 = arith.constant 0 : i32
    %c0_i32_1 = arith.constant 0 : i32
    return %c0_i32, %c0_i32_0 : i32, i32
  }
  func.func @transform_17(%arg0: i32, %arg1: i32) -> (i32, i32) {
    %c0_i32 = arith.constant 0 : i32
    %c0_i32_0 = arith.constant 0 : i32
    %c0_i32_1 = arith.constant 0 : i32
    return %c0_i32, %c0_i32_0 : i32, i32
  }
  func.func @transform_18(%arg0: i32, %arg1: i32) -> (i32, i32) {
    %c0_i32 = arith.constant 0 : i32
    %c0_i32_0 = arith.constant 0 : i32
    %c0_i32_1 = arith.constant 0 : i32
    return %c0_i32, %c0_i32_0 : i32, i32
  }
  func.func @transform_19(%arg0: i32, %arg1: i32) -> (i32, i32, i32) {
    %c0_i32 = arith.constant 0 : i32
    %c0_i32_0 = arith.constant 0 : i32
    return %arg0, %arg1, %c0_i32 : i32, i32, i32
  }
}

</mosaic_0001>

<llo_original>
// kernel: tpu_custom_call.1
$region0: #{tpu_custom_call.1}
  #allocation0 [shape = 'u32[]', space=smem, size = 0x4, offset = 0x4, fixed_abs, tag = 'smem constant byte address 0x4 - core index']
  #allocation1 [shape = 'u32[72,128]{1,0:T(1,128)}', space=vmem, size = 0x9000, scoped, tag = 'internal scratch']
  #allocation2 [shape = 'bf16[4,8,8]{2,1,0:T(8,128)(2,1)}', space=vmem, size = 0x2000, scoped, tag = 'scratch operand']
  #allocation3 [shape = 'bf16[4,8,8]{2,1,0:T(8,128)(2,1)}', space=vmem, size = 0x2000, scoped, tag = 'scratch operand']
  #allocation4 [shape = 'bf16[4,8,8]{2,1,0:T(8,128)(2,1)}', space=vmem, size = 0x2000, scoped, tag = 'scratch operand']
  %s0 = inlined_call_operand.vmem [shape: f32[2,8,32], index: 0, kind: input, shape index: {}]
  %s1 = inlined_call_operand.hbm [shape: bf16[2,8,32], index: 1, kind: input, shape index: {}]
  %s2 = inlined_call_operand.hbm [shape: f32[2,1,8], index: 2, kind: input, shape index: {}]
  %s3 = inlined_call_operand.vmem [shape: bf16[32,32], index: 3, kind: input, shape index: {}]
  %s4 = inlined_call_operand.vmem [shape: f32[1,32], index: 4, kind: input, shape index: {}]
  %s5 = inlined_call_operand.vmem [shape: bf16[32,32], index: 5, kind: input, shape index: {}]
  %s6 = inlined_call_operand.vmem [shape: f32[1,32], index: 6, kind: input, shape index: {}]
  %s7 = inlined_call_operand.hbm [shape: bf16[32,32], index: 7, kind: input, shape index: {}]
  %s8 = inlined_call_operand.vmem [shape: f32[1,32], index: 8, kind: input, shape index: {}]
  %s9 = inlined_call_operand.hbm [shape: bf16[4,8,32], index: 9, kind: input, shape index: {}]
  %s10 = inlined_call_operand.vmem [shape: f32[1,32], index: 10, kind: input, shape index: {}]
  %s11 = inlined_call_operand.vmem [shape: f32[1,32], index: 11, kind: input, shape index: {}]
  %s12 = inlined_call_operand.vmem [shape: f32[1,32], index: 12, kind: input, shape index: {}]
  %s13 = inlined_call_operand.hbm [shape: bf16[32,64], index: 13, kind: input, shape index: {}]
  %s14 = inlined_call_operand.vmem [shape: f32[1,64], index: 14, kind: input, shape index: {}]
  %s15 = inlined_call_operand.vmem [shape: bf16[64,32], index: 15, kind: input, shape index: {}]
  %s16 = inlined_call_operand.vmem [shape: f32[1,32], index: 16, kind: input, shape index: {}]
  %s17 = inlined_call_operand.vmem [shape: f32[1,32], index: 17, kind: input, shape index: {}]
  %s18 = inlined_call_operand.vmem [shape: f32[1,32], index: 18, kind: input, shape index: {}]
  %s19 = inlined_call_operand.hbm [shape: f32[2,8,32], index: 19, kind: output, shape index: {}]
  %s20 = sld [smem:[#allocation0]]
  $region133: #{tpu_custom_call.1} parent=0
    _
  %s22 = ssub.s32 1, %s20
  %s23 = scalar_select 0, %s22, %s20
  $region1: #{tpu_custom_call.1} parent=0
    #allocation5 [shape = 'u8[4096]{0}', space=vmem, size = 0x1000, scoped, tag = 'input window, operand 1']
    #allocation6 [shape = 's32[2]{0}', space=sflag, size = 0x8, scoped, tag = 'scoped memory for tpu_custom_call.1']
    #allocation7 [shape = 's32[2]{0}', space=sflag, size = 0x8, scoped, tag = 'scoped memory for tpu_custom_call.1']
    #allocation8 [shape = 'u8[1024]{0}', space=vmem, size = 0x400, scoped, tag = 'input window, operand 2']
    #allocation9 [shape = 's32[2]{0}', space=sflag, size = 0x8, scoped, tag = 'scoped memory for tpu_custom_call.1']
    #allocation10 [shape = 'u8[8192]{0}', space=vmem, size = 0x2000, scoped, tag = 'input window, operand 7, single buffered']
    #allocation11 [shape = 'u8[8192]{0}', space=vmem, size = 0x2000, scoped, tag = 'input window, operand 9, single buffered']
    #allocation12 [shape = 's32[1]{0}', space=sflag, size = 0x4, scoped, tag = 'scoped memory for tpu_custom_call.1']
    #allocation13 [shape = 'u8[8192]{0}', space=vmem, size = 0x2000, scoped, tag = 'input window, operand 13, single buffered']
    #allocation14 [shape = 'u8[8192]{0}', space=vmem, size = 0x2000, scoped, tag = 'output window, operand 0']
    %24 = vsyncpa [#allocation6], 0
    %s25 = scalar_lea.sflag [#allocation6], 1
    %26 = vsyncpa %s25, 0
    %27 = vsyncpa [#allocation9], 0
    %s28 = scalar_lea.sflag [#allocation9], 1
    %29 = vsyncpa %s28, 0
    %30 = vsyncpa [#allocation12], 0
    %31 = vsyncpa [#allocation7], 0
    %s32 = scalar_lea.sflag [#allocation7], 1
    %33 = vsyncpa %s32, 0
    loop: start=0, step=1, limit=4
    $region2: #{tpu_custom_call.1} parent=1 // loop_pre_header
      _
    $region3: #{tpu_custom_call.1} parent=1 // loop_header
      %s35 = sphi 0, %s39
      %p36 = scmp.ge.s32.totalorder %s35, 4
      %s42 = sphi 0, %s54
      %s43 = sphi 0, %s50
      %s44 = sphi 0, %s42
      %s45 = sphi 0, %s43
      %s46 = sphi 0, %s44
      %s47 = sphi 0, %s45
      %s59 = sphi 0, %s61
      %s62 = sphi 0, %s59
      %s63 = sphi 0, %s62
      %s79 = sphi 0, %s63
      %s85 = sphi 0, %s87
      %s88 = sphi 0, %s85
      %s89 = sphi 0, %s88
      %s105 = sphi 0, %s89
      %s111 = sphi 0, %s113
      %s114 = sphi 0, %s111
      %s115 = sphi 0, %s114
      %s131 = sphi 0, %s115
      %s135 = sphi 0, %s135
      %s137 = sphi 0, %s135
      %s138 = sphi 0, %s137
      %s152 = sphi 0, %s138
      %s156 = sphi 0, %s156
      %s158 = sphi 0, %s156
      %s159 = sphi 0, %s158
      %s173 = sphi 0, %s159
      %s177 = sphi 0, %s177
      %s179 = sphi 0, %s177
      %s180 = sphi 0, %s179
      %s194 = sphi 0, %s180
      %s198 = sphi 0, %s198
      %s200 = sphi 0, %s198
      %s201 = sphi 0, %s200
      %s215 = sphi 0, %s201
      %s219 = sphi 0, %s219
      %s221 = sphi 0, %s219
      %s222 = sphi 0, %s221
      %s236 = sphi 0, %s222
      %s240 = sphi 0, %s240
      %s242 = sphi 0, %s240
      %s243 = sphi 0, %s242
      %s257 = sphi 0, %s243
      %s261 = sphi 0, %s261
      %s263 = sphi 0, %s261
      %s264 = sphi 0, %s263
      %s278 = sphi 0, %s264
      %s282 = sphi 0, %s282
      %s284 = sphi 0, %s282
      %s285 = sphi 0, %s284
      %s299 = sphi 0, %s285
      %s303 = sphi 0, %s303
      %s305 = sphi 0, %s303
      %s306 = sphi 0, %s305
      %s320 = sphi 0, %s306
      %s324 = sphi 0, %s324
      %s326 = sphi 0, %s324
      %s327 = sphi 0, %s326
      %s341 = sphi 0, %s327
      %s345 = sphi 0, %s345
      %s347 = sphi 0, %s345
      %s348 = sphi 0, %s347
      %s362 = sphi 0, %s348
      %s366 = sphi 0, %s366
      %s368 = sphi 0, %s366
      %s369 = sphi 0, %s368
      %s383 = sphi 0, %s369
      %s387 = sphi 0, %s387
      %s389 = sphi 0, %s387
      %s390 = sphi 0, %s389
      %s404 = sphi 0, %s390
      %s408 = sphi 0, %s408
      %s410 = sphi 0, %s408
      %s411 = sphi 0, %s410
      %s425 = sphi 0, %s411
      %s429 = sphi 0, %s429
      %s431 = sphi 0, %s429
      %s432 = sphi 0, %s431
      %s446 = sphi 0, %s432
      %s450 = sphi 0, %s450
      %s452 = sphi 0, %s450
      %s453 = sphi 0, %s452
      %s467 = sphi 0, %s453
      %s475 = sphi 0, %s477
      %s478 = sphi 0, %s475
      %s479 = sphi 0, %s478
      %s495 = sphi 0, %s479
    $region4: #{tpu_custom_call.1} parent=1 // loop_header_branch
      %38 = sbr.rel (%p36) target = $region8
    $region5: #{tpu_custom_call.1} parent=1 // loop_body
      %s40 = ssub.s32 %s35, 1
      %s41 = ssub.s32 %s35, 2
      %s48 = sadd.s32 1, %s43
      %p49 = scmp.ge.s32.totalorder %s48, 1
      %s50 = scalar_select %p49, 0, %s48
      %s51 = sadd.s32 1, %s42
      %s52 = scalar_select %p49, %s51, %s42
      %p53 = scmp.ge.s32.totalorder %s52, 2
      %s54 = scalar_select %p53, 0, %s52
      %s55 = ssub.s32 %s42, %s54
      %s56 = ssub.s32 %s43, %s50
      %s57 = sor.u32 %s55, %s56
      %p58 = scmp.eq.s32.totalorder %s57, 0
      %s60 = sadd.s32 %s59, 1
      %s61 = scalar_select %p58, %s59, %s60
      %p64 = pneg %p58
      %p65 = scmp.eq.s32.totalorder %s35, 1
      %p66 = por %p64, %p65
      %p67 = scmp.ne.s32.totalorder %s59, %s62
      %p68 = scmp.eq.s32.totalorder %s35, 0
      %p69 = por %p67, %p68
      %p70 = scmp.ne.s32.totalorder %s59, %s62
      %p71 = scmp.eq.s32.totalorder %s40, 1
      %p72 = por %p70, %p71
      %p73 = scmp.ne.s32.totalorder %s62, %s63
      %p74 = scmp.eq.s32.totalorder %s40, 0
      %p75 = por %p73, %p74
      %p76 = scmp.ne.s32.totalorder %s62, %s63
      %p77 = scmp.eq.s32.totalorder %s41, 1
      %p78 = por %p76, %p77
      %p80 = scmp.ne.s32.totalorder %s63, %s79
      %p81 = scmp.eq.s32.totalorder %s41, 0
      %p82 = por %p80, %p81
      %s83 = ssub.s32 %s42, %s54
      %p84 = scmp.eq.s32.totalorder %s83, 0
      %s86 = sadd.s32 %s85, 1
      %s87 = scalar_select %p84, %s85, %s86
      %p90 = pneg %p84
      %p91 = scmp.eq.s32.totalorder %s35, 1
      %p92 = por %p90, %p91
      %p93 = scmp.ne.s32.totalorder %s85, %s88
      %p94 = scmp.eq.s32.totalorder %s35, 0
      %p95 = por %p93, %p94
      %p96 = scmp.ne.s32.totalorder %s85, %s88
      %p97 = scmp.eq.s32.totalorder %s40, 1
      %p98 = por %p96, %p97
      %p99 = scmp.ne.s32.totalorder %s88, %s89
      %p100 = scmp.eq.s32.totalorder %s40, 0
      %p101 = por %p99, %p100
      %p102 = scmp.ne.s32.totalorder %s88, %s89
      %p103 = scmp.eq.s32.totalorder %s41, 1
      %p104 = por %p102, %p103
      %p106 = scmp.ne.s32.totalorder %s89, %s105
      %p107 = scmp.eq.s32.totalorder %s41, 0
      %p108 = por %p106, %p107
      %s109 = ssub.s32 %s42, %s54
      %p110 = scmp.eq.s32.totalorder %s109, 0
      %s112 = sadd.s32 %s111, 1
      %s113 = scalar_select %p110, %s111, %s112
      %p116 = pneg %p110
      %p117 = scmp.eq.s32.totalorder %s35, 1
      %p118 = por %p116, %p117
      %p119 = scmp.ne.s32.totalorder %s111, %s114
      %p120 = scmp.eq.s32.totalorder %s35, 0
      %p121 = por %p119, %p120
      %p122 = scmp.ne.s32.totalorder %s111, %s114
      %p123 = scmp.eq.s32.totalorder %s40, 1
      %p124 = por %p122, %p123
      %p125 = scmp.ne.s32.totalorder %s114, %s115
      %p126 = scmp.eq.s32.totalorder %s40, 0
      %p127 = por %p125, %p126
      %p128 = scmp.ne.s32.totalorder %s114, %s115
      %p129 = scmp.eq.s32.totalorder %s41, 1
      %p130 = por %p128, %p129
      %p132 = scmp.ne.s32.totalorder %s115, %s131
      %p133 = scmp.eq.s32.totalorder %s41, 0
      %p134 = por %p132, %p133
      %s136 = sadd.s32 %s135, 1
      %p139 = scmp.eq.s32.totalorder %s35, 1
      %p140 = scmp.ne.s32.totalorder %s135, %s137
      %p141 = scmp.eq.s32.totalorder %s35, 0
      %p142 = por %p140, %p141
      %p143 = scmp.ne.s32.totalorder %s135, %s137
      %p144 = scmp.eq.s32.totalorder %s40, 1
      %p145 = por %p143, %p144
      %p146 = scmp.ne.s32.totalorder %s137, %s138
      %p147 = scmp.eq.s32.totalorder %s40, 0
      %p148 = por %p146, %p147
      %p149 = scmp.ne.s32.totalorder %s137, %s138
      %p150 = scmp.eq.s32.totalorder %s41, 1
      %p151 = por %p149, %p150
      %p153 = scmp.ne.s32.totalorder %s138, %s152
      %p154 = scmp.eq.s32.totalorder %s41, 0
      %p155 = por %p153, %p154
      %s157 = sadd.s32 %s156, 1
      %p160 = scmp.eq.s32.totalorder %s35, 1
      %p161 = scmp.ne.s32.totalorder %s156, %s158
      %p162 = scmp.eq.s32.totalorder %s35, 0
      %p163 = por %p161, %p162
      %p164 = scmp.ne.s32.totalorder %s156, %s158
      %p165 = scmp.eq.s32.totalorder %s40, 1
      %p166 = por %p164, %p165
      %p167 = scmp.ne.s32.totalorder %s158, %s159
      %p168 = scmp.eq.s32.totalorder %s40, 0
      %p169 = por %p167, %p168
      %p170 = scmp.ne.s32.totalorder %s158, %s159
      %p171 = scmp.eq.s32.totalorder %s41, 1
      %p172 = por %p170, %p171
      %p174 = scmp.ne.s32.totalorder %s159, %s173
      %p175 = scmp.eq.s32.totalorder %s41, 0
      %p176 = por %p174, %p175
      %s178 = sadd.s32 %s177, 1
      %p181 = scmp.eq.s32.totalorder %s35, 1
      %p182 = scmp.ne.s32.totalorder %s177, %s179
      %p183 = scmp.eq.s32.totalorder %s35, 0
      %p184 = por %p182, %p183
      %p185 = scmp.ne.s32.totalorder %s177, %s179
      %p186 = scmp.eq.s32.totalorder %s40, 1
      %p187 = por %p185, %p186
      %p188 = scmp.ne.s32.totalorder %s179, %s180
      %p189 = scmp.eq.s32.totalorder %s40, 0
      %p190 = por %p188, %p189
      %p191 = scmp.ne.s32.totalorder %s179, %s180
      %p192 = scmp.eq.s32.totalorder %s41, 1
      %p193 = por %p191, %p192
      %p195 = scmp.ne.s32.totalorder %s180, %s194
      %p196 = scmp.eq.s32.totalorder %s41, 0
      %p197 = por %p195, %p196
      %s199 = sadd.s32 %s198, 1
      %p202 = scmp.eq.s32.totalorder %s35, 1
      %p203 = scmp.ne.s32.totalorder %s198, %s200
      %p204 = scmp.eq.s32.totalorder %s35, 0
      %p205 = por %p203, %p204
      %p206 = scmp.ne.s32.totalorder %s198, %s200
      %p207 = scmp.eq.s32.totalorder %s40, 1
      %p208 = por %p206, %p207
      %p209 = scmp.ne.s32.totalorder %s200, %s201
      %p210 = scmp.eq.s32.totalorder %s40, 0
      %p211 = por %p209, %p210
      %p212 = scmp.ne.s32.totalorder %s200, %s201
      %p213 = scmp.eq.s32.totalorder %s41, 1
      %p214 = por %p212, %p213
      %p216 = scmp.ne.s32.totalorder %s201, %s215
      %p217 = scmp.eq.s32.totalorder %s41, 0
      %p218 = por %p216, %p217
      %s220 = sadd.s32 %s219, 1
      %p223 = scmp.eq.s32.totalorder %s35, 1
      %p224 = scmp.ne.s32.totalorder %s219, %s221
      %p225 = scmp.eq.s32.totalorder %s35, 0
      %p226 = por %p224, %p225
      %p227 = scmp.ne.s32.totalorder %s219, %s221
      %p228 = scmp.eq.s32.totalorder %s40, 1
      %p229 = por %p227, %p228
      %p230 = scmp.ne.s32.totalorder %s221, %s222
      %p231 = scmp.eq.s32.totalorder %s40, 0
      %p232 = por %p230, %p231
      %p233 = scmp.ne.s32.totalorder %s221, %s222
      %p234 = scmp.eq.s32.totalorder %s41, 1
      %p235 = por %p233, %p234
      %p237 = scmp.ne.s32.totalorder %s222, %s236
      %p238 = scmp.eq.s32.totalorder %s41, 0
      %p239 = por %p237, %p238
      %s241 = sadd.s32 %s240, 1
      %p244 = scmp.eq.s32.totalorder %s35, 1
      %p245 = scmp.ne.s32.totalorder %s240, %s242
      %p246 = scmp.eq.s32.totalorder %s35, 0
      %p247 = por %p245, %p246
      %p248 = scmp.ne.s32.totalorder %s240, %s242
      %p249 = scmp.eq.s32.totalorder %s40, 1
      %p250 = por %p248, %p249
      %p251 = scmp.ne.s32.totalorder %s242, %s243
      %p252 = scmp.eq.s32.totalorder %s40, 0
      %p253 = por %p251, %p252
      %p254 = scmp.ne.s32.totalorder %s242, %s243
      %p255 = scmp.eq.s32.totalorder %s41, 1
      %p256 = por %p254, %p255
      %p258 = scmp.ne.s32.totalorder %s243, %s257
      %p259 = scmp.eq.s32.totalorder %s41, 0
      %p260 = por %p258, %p259
      %s262 = sadd.s32 %s261, 1
      %p265 = scmp.eq.s32.totalorder %s35, 1
      %p266 = scmp.ne.s32.totalorder %s261, %s263
      %p267 = scmp.eq.s32.totalorder %s35, 0
      %p268 = por %p266, %p267
      %p269 = scmp.ne.s32.totalorder %s261, %s263
      %p270 = scmp.eq.s32.totalorder %s40, 1
      %p271 = por %p269, %p270
      %p272 = scmp.ne.s32.totalorder %s263, %s264
      %p273 = scmp.eq.s32.totalorder %s40, 0
      %p274 = por %p272, %p273
      %p275 = scmp.ne.s32.totalorder %s263, %s264
      %p276 = scmp.eq.s32.totalorder %s41, 1
      %p277 = por %p275, %p276
      %p279 = scmp.ne.s32.totalorder %s264, %s278
      %p280 = scmp.eq.s32.totalorder %s41, 0
      %p281 = por %p279, %p280
      %s283 = sadd.s32 %s282, 1
      %p286 = scmp.eq.s32.totalorder %s35, 1
      %p287 = scmp.ne.s32.totalorder %s282, %s284
      %p288 = scmp.eq.s32.totalorder %s35, 0
      %p289 = por %p287, %p288
      %p290 = scmp.ne.s32.totalorder %s282, %s284
      %p291 = scmp.eq.s32.totalorder %s40, 1
      %p292 = por %p290, %p291
      %p293 = scmp.ne.s32.totalorder %s284, %s285
      %p294 = scmp.eq.s32.totalorder %s40, 0
      %p295 = por %p293, %p294
      %p296 = scmp.ne.s32.totalorder %s284, %s285
      %p297 = scmp.eq.s32.totalorder %s41, 1
      %p298 = por %p296, %p297
      %p300 = scmp.ne.s32.totalorder %s285, %s299
      %p301 = scmp.eq.s32.totalorder %s41, 0
      %p302 = por %p300, %p301
      %s304 = sadd.s32 %s303, 1
      %p307 = scmp.eq.s32.totalorder %s35, 1
      %p308 = scmp.ne.s32.totalorder %s303, %s305
      %p309 = scmp.eq.s32.totalorder %s35, 0
      %p310 = por %p308, %p309
      %p311 = scmp.ne.s32.totalorder %s303, %s305
      %p312 = scmp.eq.s32.totalorder %s40, 1
      %p313 = por %p311, %p312
      %p314 = scmp.ne.s32.totalorder %s305, %s306
      %p315 = scmp.eq.s32.totalorder %s40, 0
      %p316 = por %p314, %p315
      %p317 = scmp.ne.s32.totalorder %s305, %s306
      %p318 = scmp.eq.s32.totalorder %s41, 1
      %p319 = por %p317, %p318
      %p321 = scmp.ne.s32.totalorder %s306, %s320
      %p322 = scmp.eq.s32.totalorder %s41, 0
      %p323 = por %p321, %p322
      %s325 = sadd.s32 %s324, 1
      %p328 = scmp.eq.s32.totalorder %s35, 1
      %p329 = scmp.ne.s32.totalorder %s324, %s326
      %p330 = scmp.eq.s32.totalorder %s35, 0
      %p331 = por %p329, %p330
      %p332 = scmp.ne.s32.totalorder %s324, %s326
      %p333 = scmp.eq.s32.totalorder %s40, 1
      %p334 = por %p332, %p333
      %p335 = scmp.ne.s32.totalorder %s326, %s327
      %p336 = scmp.eq.s32.totalorder %s40, 0
      %p337 = por %p335, %p336
      %p338 = scmp.ne.s32.totalorder %s326, %s327
      %p339 = scmp.eq.s32.totalorder %s41, 1
      %p340 = por %p338, %p339
      %p342 = scmp.ne.s32.totalorder %s327, %s341
      %p343 = scmp.eq.s32.totalorder %s41, 0
      %p344 = por %p342, %p343
      %s346 = sadd.s32 %s345, 1
      %p349 = scmp.eq.s32.totalorder %s35, 1
      %p350 = scmp.ne.s32.totalorder %s345, %s347
      %p351 = scmp.eq.s32.totalorder %s35, 0
      %p352 = por %p350, %p351
      %p353 = scmp.ne.s32.totalorder %s345, %s347
      %p354 = scmp.eq.s32.totalorder %s40, 1
      %p355 = por %p353, %p354
      %p356 = scmp.ne.s32.totalorder %s347, %s348
      %p357 = scmp.eq.s32.totalorder %s40, 0
      %p358 = por %p356, %p357
      %p359 = scmp.ne.s32.totalorder %s347, %s348
      %p360 = scmp.eq.s32.totalorder %s41, 1
      %p361 = por %p359, %p360
      %p363 = scmp.ne.s32.totalorder %s348, %s362
      %p364 = scmp.eq.s32.totalorder %s41, 0
      %p365 = por %p363, %p364
      %s367 = sadd.s32 %s366, 1
      %p370 = scmp.eq.s32.totalorder %s35, 1
      %p371 = scmp.ne.s32.totalorder %s366, %s368
      %p372 = scmp.eq.s32.totalorder %s35, 0
      %p373 = por %p371, %p372
      %p374 = scmp.ne.s32.totalorder %s366, %s368
      %p375 = scmp.eq.s32.totalorder %s40, 1
      %p376 = por %p374, %p375
      %p377 = scmp.ne.s32.totalorder %s368, %s369
      %p378 = scmp.eq.s32.totalorder %s40, 0
      %p379 = por %p377, %p378
      %p380 = scmp.ne.s32.totalorder %s368, %s369
      %p381 = scmp.eq.s32.totalorder %s41, 1
      %p382 = por %p380, %p381
      %p384 = scmp.ne.s32.totalorder %s369, %s383
      %p385 = scmp.eq.s32.totalorder %s41, 0
      %p386 = por %p384, %p385
      %s388 = sadd.s32 %s387, 1
      %p391 = scmp.eq.s32.totalorder %s35, 1
      %p392 = scmp.ne.s32.totalorder %s387, %s389
      %p393 = scmp.eq.s32.totalorder %s35, 0
      %p394 = por %p392, %p393
      %p395 = scmp.ne.s32.totalorder %s387, %s389
      %p396 = scmp.eq.s32.totalorder %s40, 1
      %p397 = por %p395, %p396
      %p398 = scmp.ne.s32.totalorder %s389, %s390
      %p399 = scmp.eq.s32.totalorder %s40, 0
      %p400 = por %p398, %p399
      %p401 = scmp.ne.s32.totalorder %s389, %s390
      %p402 = scmp.eq.s32.totalorder %s41, 1
      %p403 = por %p401, %p402
      %p405 = scmp.ne.s32.totalorder %s390, %s404
      %p406 = scmp.eq.s32.totalorder %s41, 0
      %p407 = por %p405, %p406
      %s409 = sadd.s32 %s408, 1
      %p412 = scmp.eq.s32.totalorder %s35, 1
      %p413 = scmp.ne.s32.totalorder %s408, %s410
      %p414 = scmp.eq.s32.totalorder %s35, 0
      %p415 = por %p413, %p414
      %p416 = scmp.ne.s32.totalorder %s408, %s410
      %p417 = scmp.eq.s32.totalorder %s40, 1
      %p418 = por %p416, %p417
      %p419 = scmp.ne.s32.totalorder %s410, %s411
      %p420 = scmp.eq.s32.totalorder %s40, 0
      %p421 = por %p419, %p420
      %p422 = scmp.ne.s32.totalorder %s410, %s411
      %p423 = scmp.eq.s32.totalorder %s41, 1
      %p424 = por %p422, %p423
      %p426 = scmp.ne.s32.totalorder %s411, %s425
      %p427 = scmp.eq.s32.totalorder %s41, 0
      %p428 = por %p426, %p427
      %s430 = sadd.s32 %s429, 1
      %p433 = scmp.eq.s32.totalorder %s35, 1
      %p434 = scmp.ne.s32.totalorder %s429, %s431
      %p435 = scmp.eq.s32.totalorder %s35, 0
      %p436 = por %p434, %p435
      %p437 = scmp.ne.s32.totalorder %s429, %s431
      %p438 = scmp.eq.s32.totalorder %s40, 1
      %p439 = por %p437, %p438
      %p440 = scmp.ne.s32.totalorder %s431, %s432
      %p441 = scmp.eq.s32.totalorder %s40, 0
      %p442 = por %p440, %p441
      %p443 = scmp.ne.s32.totalorder %s431, %s432
      %p444 = scmp.eq.s32.totalorder %s41, 1
      %p445 = por %p443, %p444
      %p447 = scmp.ne.s32.totalorder %s432, %s446
      %p448 = scmp.eq.s32.totalorder %s41, 0
      %p449 = por %p447, %p448
      %s451 = sadd.s32 %s450, 1
      %p454 = scmp.eq.s32.totalorder %s35, 1
      %p455 = scmp.ne.s32.totalorder %s450, %s452
      %p456 = scmp.eq.s32.totalorder %s35, 0
      %p457 = por %p455, %p456
      %p458 = scmp.ne.s32.totalorder %s450, %s452
      %p459 = scmp.eq.s32.totalorder %s40, 1
      %p460 = por %p458, %p459
      %p461 = scmp.ne.s32.totalorder %s452, %s453
      %p462 = scmp.eq.s32.totalorder %s40, 0
      %p463 = por %p461, %p462
      %p464 = scmp.ne.s32.totalorder %s452, %s453
      %p465 = scmp.eq.s32.totalorder %s41, 1
      %p466 = por %p464, %p465
      %p468 = scmp.ne.s32.totalorder %s453, %s467
      %p469 = scmp.eq.s32.totalorder %s41, 0
      %p470 = por %p468, %p469
      %s471 = ssub.s32 %s42, %s54
      %s472 = ssub.s32 %s43, %s50
      %s473 = sor.u32 %s471, %s472
      %p474 = scmp.eq.s32.totalorder %s473, 0
      %s476 = sadd.s32 %s475, 1
      %s477 = scalar_select %p474, %s475, %s476
      %p480 = pneg %p474
      %p481 = scmp.eq.s32.totalorder %s35, 1
      %p482 = por %p480, %p481
      %p483 = scmp.ne.s32.totalorder %s475, %s478
      %p484 = scmp.eq.s32.totalorder %s35, 0
      %p485 = por %p483, %p484
      %p486 = scmp.ne.s32.totalorder %s475, %s478
      %p487 = scmp.eq.s32.totalorder %s40, 1
      %p488 = por %p486, %p487
      %p489 = scmp.ne.s32.totalorder %s478, %s479
      %p490 = scmp.eq.s32.totalorder %s40, 0
      %p491 = por %p489, %p490
      %p492 = scmp.ne.s32.totalorder %s478, %s479
      %p493 = scmp.eq.s32.totalorder %s41, 1
      %p494 = por %p492, %p493
      %p496 = scmp.ne.s32.totalorder %s479, %s495
      %p497 = scmp.eq.s32.totalorder %s41, 0
      %p498 = por %p496, %p497
      %p499 = scmp.le.s32.totalorder 1, %s35
      %p500 = scmp.lt.s32.totalorder %s35, 3
      %p501 = pnand %p499, %p500
      %p502 = pneg %p501
      // Predicated region
      $region9: #{tpu_custom_call.1} parent=5 // pred_check
        _
      $region10: #{tpu_custom_call.1} parent=5 // pred_check_branch
        %504 = sbr.rel (%p501) target = $region12
      $region11: #{tpu_custom_call.1} parent=5 // pred_region
        %s505 = ssub.s32 %s35, 1
        // Predicated region
        $region13: #{tpu_custom_call.1} parent=11 // pred_check
          %p506 = pneg %p148
        $region14: #{tpu_custom_call.1} parent=11 // pred_check_branch
          %508 = sbr.rel (%p506) target = $region16
        $region15: #{tpu_custom_call.1} parent=11 // pred_region
          _
        $region16: #{tpu_custom_call.1} parent=11 // pred_fallthru
          _
        // Predicated region
        $region17: #{tpu_custom_call.1} parent=11 // pred_check
          %p509 = pneg %p169
        $region18: #{tpu_custom_call.1} parent=11 // pred_check_branch
          %511 = sbr.rel (%p509) target = $region20
        $region19: #{tpu_custom_call.1} parent=11 // pred_region
          _
        $region20: #{tpu_custom_call.1} parent=11 // pred_fallthru
          _
        // Predicated region
        $region21: #{tpu_custom_call.1} parent=11 // pred_check
          %p512 = pneg %p190
        $region22: #{tpu_custom_call.1} parent=11 // pred_check_branch
          %514 = sbr.rel (%p512) target = $region24
        $region23: #{tpu_custom_call.1} parent=11 // pred_region
          _
        $region24: #{tpu_custom_call.1} parent=11 // pred_fallthru
          _
        // Predicated region
        $region25: #{tpu_custom_call.1} parent=11 // pred_check
          %p515 = pneg %p211
        $region26: #{tpu_custom_call.1} parent=11 // pred_check_branch
          %517 = sbr.rel (%p515) target = $region28
        $region27: #{tpu_custom_call.1} parent=11 // pred_region
          _
        $region28: #{tpu_custom_call.1} parent=11 // pred_fallthru
          _
        // Predicated region
        $region29: #{tpu_custom_call.1} parent=11 // pred_check
          %p518 = pneg %p232
        $region30: #{tpu_custom_call.1} parent=11 // pred_check_branch
          %520 = sbr.rel (%p518) target = $region32
        $region31: #{tpu_custom_call.1} parent=11 // pred_region
          %522 = vsyncadd [#allocation9], 0
          %s523 = sshll.u32 %s7, 4
          %s524 = int_to_ptr.hbm [resolvable:$true] %s523
          %s525 = sshll.u32 [#allocation10], 4
          %s526 = int_to_ptr.vmem [resolvable:$true] %s525
          %531 = dma.hbm_to_vmem [thread:$0]  %s524, 256, %s526, [#allocation9], 64, 64, 4
        $region32: #{tpu_custom_call.1} parent=11 // pred_fallthru
          _
        // Predicated region
        $region33: #{tpu_custom_call.1} parent=11 // pred_check
          %p532 = pneg %p253
        $region34: #{tpu_custom_call.1} parent=11 // pred_check_branch
          %534 = sbr.rel (%p532) target = $region36
        $region35: #{tpu_custom_call.1} parent=11 // pred_region
          _
        $region36: #{tpu_custom_call.1} parent=11 // pred_fallthru
          _
        // Predicated region
        $region37: #{tpu_custom_call.1} parent=11 // pred_check
          %p535 = pneg %p274
        $region38: #{tpu_custom_call.1} parent=11 // pred_check_branch
          %537 = sbr.rel (%p535) target = $region40
        $region39: #{tpu_custom_call.1} parent=11 // pred_region
          %539 = vsyncadd [#allocation12], 0
          %s540 = sshll.u32 %s9, 4
          %s541 = int_to_ptr.hbm [resolvable:$true] %s540
          %s542 = sshll.u32 [#allocation11], 4
          %s543 = int_to_ptr.vmem [resolvable:$true] %s542
          %548 = dma.hbm_to_vmem [thread:$0]  %s541, 256, %s543, [#allocation12], 64, 64, 4
        $region40: #{tpu_custom_call.1} parent=11 // pred_fallthru
          _
        // Predicated region
        $region41: #{tpu_custom_call.1} parent=11 // pred_check
          %p549 = pneg %p295
        $region42: #{tpu_custom_call.1} parent=11 // pred_check_branch
          %551 = sbr.rel (%p549) target = $region44
        $region43: #{tpu_custom_call.1} parent=11 // pred_region
          _
        $region44: #{tpu_custom_call.1} parent=11 // pred_fallthru
          _
        // Predicated region
        $region45: #{tpu_custom_call.1} parent=11 // pred_check
          %p552 = pneg %p316
        $region46: #{tpu_custom_call.1} parent=11 // pred_check_branch
          %554 = sbr.rel (%p552) target = $region48
        $region47: #{tpu_custom_call.1} parent=11 // pred_region
          _
        $region48: #{tpu_custom_call.1} parent=11 // pred_fallthru
          _
        // Predicated region
        $region49: #{tpu_custom_call.1} parent=11 // pred_check
          %p555 = pneg %p337
        $region50: #{tpu_custom_call.1} parent=11 // pred_check_branch
          %557 = sbr.rel (%p555) target = $region52
        $region51: #{tpu_custom_call.1} parent=11 // pred_region
          _
        $region52: #{tpu_custom_call.1} parent=11 // pred_fallthru
          _
        // Predicated region
        $region53: #{tpu_custom_call.1} parent=11 // pred_check
          %p558 = pneg %p358
        $region54: #{tpu_custom_call.1} parent=11 // pred_check_branch
          %560 = sbr.rel (%p558) target = $region56
        $region55: #{tpu_custom_call.1} parent=11 // pred_region
          %562 = vsyncadd [#allocation12], 0
          %s563 = sshll.u32 %s13, 4
          %s564 = int_to_ptr.hbm [resolvable:$true] %s563
          %s565 = sshll.u32 [#allocation13], 4
          %s566 = int_to_ptr.vmem [resolvable:$true] %s565
          %571 = dma.hbm_to_vmem [thread:$0]  %s564, 256, %s566, [#allocation12], 64, 64, 4
        $region56: #{tpu_custom_call.1} parent=11 // pred_fallthru
          _
        // Predicated region
        $region57: #{tpu_custom_call.1} parent=11 // pred_check
          %p572 = pneg %p379
        $region58: #{tpu_custom_call.1} parent=11 // pred_check_branch
          %574 = sbr.rel (%p572) target = $region60
        $region59: #{tpu_custom_call.1} parent=11 // pred_region
          _
        $region60: #{tpu_custom_call.1} parent=11 // pred_fallthru
          _
        // Predicated region
        $region61: #{tpu_custom_call.1} parent=11 // pred_check
          %p575 = pneg %p400
        $region62: #{tpu_custom_call.1} parent=11 // pred_check_branch
          %577 = sbr.rel (%p575) target = $region64
        $region63: #{tpu_custom_call.1} parent=11 // pred_region
          _
        $region64: #{tpu_custom_call.1} parent=11 // pred_fallthru
          _
        // Predicated region
        $region65: #{tpu_custom_call.1} parent=11 // pred_check
          %p578 = pneg %p421
        $region66: #{tpu_custom_call.1} parent=11 // pred_check_branch
          %580 = sbr.rel (%p578) target = $region68
        $region67: #{tpu_custom_call.1} parent=11 // pred_region
          _
        $region68: #{tpu_custom_call.1} parent=11 // pred_fallthru
          _
        // Predicated region
        $region69: #{tpu_custom_call.1} parent=11 // pred_check
          %p581 = pneg %p442
        $region70: #{tpu_custom_call.1} parent=11 // pred_check_branch
          %583 = sbr.rel (%p581) target = $region72
        $region71: #{tpu_custom_call.1} parent=11 // pred_region
          _
        $region72: #{tpu_custom_call.1} parent=11 // pred_fallthru
          _
        // Predicated region
        $region73: #{tpu_custom_call.1} parent=11 // pred_check
          %p584 = pneg %p463
        $region74: #{tpu_custom_call.1} parent=11 // pred_check_branch
          %586 = sbr.rel (%p584) target = $region76
        $region75: #{tpu_custom_call.1} parent=11 // pred_region
          _
        $region76: #{tpu_custom_call.1} parent=11 // pred_fallthru
          _
      $region12: #{tpu_custom_call.1} parent=5 // pred_fallthru
        _
      %p587 = scmp.lt.s32.totalorder %s35, 2
      // Predicated region
      $region77: #{tpu_custom_call.1} parent=5 // pred_check
        %p588 = pneg %p587
      $region78: #{tpu_custom_call.1} parent=5 // pred_check_branch
        %590 = sbr.rel (%p588) target = $region80
      $region79: #{tpu_custom_call.1} parent=5 // pred_region
        // Predicated region
        $region81: #{tpu_custom_call.1} parent=79 // pred_check
          %p591 = pneg %p69
        $region82: #{tpu_custom_call.1} parent=79 // pred_check_branch
          %593 = sbr.rel (%p591) target = $region84
        $region83: #{tpu_custom_call.1} parent=79 // pred_region
          %p594 = scmp.lt.s32.totalorder %s42, 1
          %s595 = scalar_select %p594, %s42, 1
          %p596 = scmp.lt.s32.totalorder %s43, 0
          %s597 = scalar_select %p596, %s43, 0
          %s598 = sadd.s32 %s597, %s595
          %s599 = smul.addr %s598, 8
          %s600 = scalar_lea.vmem %s0, %s599
        $region84: #{tpu_custom_call.1} parent=79 // pred_fallthru
          _
        // Predicated region
        $region85: #{tpu_custom_call.1} parent=79 // pred_check
          %p601 = pneg %p95
        $region86: #{tpu_custom_call.1} parent=79 // pred_check_branch
          %603 = sbr.rel (%p601) target = $region88
        $region87: #{tpu_custom_call.1} parent=79 // pred_region
          %s604 = sand.u32 %s85, 1
          %s605 = scalar_lea.sflag [#allocation6], %s604
          %s606 = sand.u32 %s85, 1
          %s607 = smul.addr %s606, 4
          %s608 = scalar_lea.vmem [#allocation5], %s607
          %610 = vsyncadd %s605, 0
          %s611 = smul.addr %s42, 4
          %s612 = scalar_lea.hbm %s1, %s611
          %s614 = sshll.u32 %s612, 4
          %s615 = int_to_ptr.hbm [resolvable:$true] %s614
          %s616 = sshll.u32 %s608, 4
          %s617 = int_to_ptr.vmem [resolvable:$true] %s616
          %619 = dma.hbm_to_vmem [thread:$0]  %s615, 64, %s617, %s605
        $region88: #{tpu_custom_call.1} parent=79 // pred_fallthru
          _
        // Predicated region
        $region89: #{tpu_custom_call.1} parent=79 // pred_check
          %p620 = pneg %p121
        $region90: #{tpu_custom_call.1} parent=79 // pred_check_branch
          %622 = sbr.rel (%p620) target = $region92
        $region91: #{tpu_custom_call.1} parent=79 // pred_region
          %s623 = sand.u32 %s35, 1
          %s624 = scalar_lea.sflag [#allocation9], %s623
          %s625 = sand.u32 %s111, 1
          %s626 = scalar_lea.vmem [#allocation8], %s625
          %628 = vsyncadd %s624, 0
          %s629 = scalar_lea.hbm %s2, %s42
          %s631 = sshll.u32 %s629, 4
          %s632 = int_to_ptr.hbm [resolvable:$true] %s631
          %s633 = sshll.u32 %s626, 4
          %s634 = int_to_ptr.vmem [resolvable:$true] %s633
          %636 = dma.hbm_to_vmem [thread:$0]  %s632, 16, %s634, %s624
        $region92: #{tpu_custom_call.1} parent=79 // pred_fallthru
          _
      $region80: #{tpu_custom_call.1} parent=5 // pred_fallthru
        _
      %p637 = scmp.le.s32.totalorder 1, %s35
      %p638 = scmp.lt.s32.totalorder %s35, 3
      %p639 = pnand %p637, %p638
      %p640 = pneg %p639
      // Predicated region
      $region93: #{tpu_custom_call.1} parent=5 // pred_check
        _
      $region94: #{tpu_custom_call.1} parent=5 // pred_check_branch
        %642 = sbr.rel (%p639) target = $region96
      $region95: #{tpu_custom_call.1} parent=5 // pred_region
        %s643 = ssub.s32 %s35, 1
        %s644 = sand.u32 %s88, 1
        %s645 = scalar_lea.sflag [#allocation6], %s644
        %s646 = sand.u32 %s88, 1
        %s647 = smul.addr %s646, 4
        %s648 = scalar_lea.vmem [#allocation5], %s647
        // Predicated region
        $region97: #{tpu_custom_call.1} parent=95 // pred_check
          %p649 = pneg %p101
        $region98: #{tpu_custom_call.1} parent=95 // pred_check_branch
          %651 = sbr.rel (%p649) target = $region100
        $region99: #{tpu_custom_call.1} parent=95 // pred_region
          %653 = dma.done %s645, 64
        $region100: #{tpu_custom_call.1} parent=95 // pred_fallthru
          _
        %s654 = sand.u32 %s40, 1
        %s655 = scalar_lea.sflag [#allocation9], %s654
        %s656 = sand.u32 %s114, 1
        %s657 = scalar_lea.vmem [#allocation8], %s656
        // Predicated region
        $region101: #{tpu_custom_call.1} parent=95 // pred_check
          %p658 = pneg %p127
        $region102: #{tpu_custom_call.1} parent=95 // pred_check_branch
          %660 = sbr.rel (%p658) target = $region104
        $region103: #{tpu_custom_call.1} parent=95 // pred_region
          %662 = dma.done %s655, 16
        $region104: #{tpu_custom_call.1} parent=95 // pred_fallthru
          _
        // Predicated region
        $region105: #{tpu_custom_call.1} parent=95 // pred_check
          %p663 = pneg %p232
        $region106: #{tpu_custom_call.1} parent=95 // pred_check_branch
          %665 = sbr.rel (%p663) target = $region108
        $region107: #{tpu_custom_call.1} parent=95 // pred_region
          %667 = dma.done [#allocation9], 256
        $region108: #{tpu_custom_call.1} parent=95 // pred_fallthru
          _
        // Predicated region
        $region109: #{tpu_custom_call.1} parent=95 // pred_check
          %p668 = pneg %p274
        $region110: #{tpu_custom_call.1} parent=95 // pred_check_branch
          %670 = sbr.rel (%p668) target = $region112
        $region111: #{tpu_custom_call.1} parent=95 // pred_region
          %672 = dma.done [#allocation12], 256
        $region112: #{tpu_custom_call.1} parent=95 // pred_fallthru
          _
        // Predicated region
        $region113: #{tpu_custom_call.1} parent=95 // pred_check
          %p673 = pneg %p358
        $region114: #{tpu_custom_call.1} parent=95 // pred_check_branch
          %675 = sbr.rel (%p673) target = $region116
        $region115: #{tpu_custom_call.1} parent=95 // pred_region
          %677 = dma.done [#allocation12], 256
        $region116: #{tpu_custom_call.1} parent=95 // pred_fallthru
          _
        %p678 = scmp.lt.s32.totalorder %s44, 1
        %s679 = scalar_select %p678, %s44, 1
        %p680 = scmp.lt.s32.totalorder %s45, 0
        %s681 = scalar_select %p680, %s45, 0
        %s682 = sadd.s32 %s681, %s679
        %s683 = smul.addr %s682, 8
        %s684 = scalar_lea.vmem %s0, %s683
        %p685 = pneg %p75
        %p686 = pneg %p72
        %s687 = sand.u32 %s88, 1
        %s688 = scalar_lea.sflag [#allocation6], %s687
        %s689 = sand.u32 %s88, 1
        %s690 = smul.addr %s689, 4
        %s691 = scalar_lea.vmem [#allocation5], %s690
        %p692 = pneg %p101
        %p693 = pneg %p98
        %s694 = sand.u32 %s40, 1
        %s695 = scalar_lea.sflag [#allocation9], %s694
        %s696 = sand.u32 %s114, 1
        %s697 = scalar_lea.vmem [#allocation8], %s696
        %p698 = pneg %p127
        %p699 = pneg %p124
        %p700 = pneg %p148
        %p701 = pneg %p145
        %p702 = pneg %p169
        %p703 = pneg %p166
        %p704 = pneg %p190
        %p705 = pneg %p187
        %p706 = pneg %p211
        %p707 = pneg %p208
        %p708 = pneg %p232
        %p709 = pneg %p229
        %p710 = pneg %p253
        %p711 = pneg %p250
        %p712 = pneg %p274
        %p713 = pneg %p271
        %p714 = pneg %p295
        %p715 = pneg %p292
        %p716 = pneg %p316
        %p717 = pneg %p313
        %p718 = pneg %p337
        %p719 = pneg %p334
        %p720 = pneg %p358
        %p721 = pneg %p355
        %p722 = pneg %p379
        %p723 = pneg %p376
        %p724 = pneg %p400
        %p725 = pneg %p397
        %p726 = pneg %p421
        %p727 = pneg %p418
        %p728 = pneg %p442
        %p729 = pneg %p439
        %p730 = pneg %p463
        %p731 = pneg %p460
        %p732 = pneg %p491
        %p733 = pneg %p488
        %s734 = sand.u32 %s478, 1
        %s735 = scalar_lea.sflag [#allocation7], %s734
        %s736 = sand.u32 %s478, 1
        %s737 = smul.addr %s736, 8
        %s738 = scalar_lea.vmem [#allocation14], %s737
        %p739 = scmp.lt.s32.totalorder %s44, 1
        %s740 = scalar_select %p739, %s44, 1
        %p741 = scmp.lt.s32.totalorder %s45, 0
        %s742 = scalar_select %p741, %s45, 0
        %s743 = sadd.s32 %s742, %s740
        %s744 = smul.addr %s743, 8
        %s745 = scalar_lea.vmem %s0, %s744
        %v747 = vld [vmem:[%s745] sm:$0xff]
        %p748 = scmp.eq.s32.totalorder %s45, 0
        // Predicated region
        $region117: #{tpu_custom_call.1} parent=95 // pred_check
          %p749 = pneg %p748
        $region118: #{tpu_custom_call.1} parent=95 // pred_check_branch
          %751 = sbr.rel (%p749) target = $region120
        $region119: #{tpu_custom_call.1} parent=95 // pred_region
          %v752 = vld [vmem:[%s648] sm:$0xf]
          %v753 = vld [vmem:[%s5] sm:$0xf]
          %v754 = vld [vmem:[%s5 + $0x4] sm:$0xf]
          %v755 = vld [vmem:[%s5 + $0x8] sm:$0xf]
          %v756 = vld [vmem:[%s5 + $0xc] sm:$0xf]
          %v757 = vld [vmem:[%s6] sm:$0x1]
          %v759 = vperm.slane %v757, 0
          %v765 = vunpack.c.l.b16 %v753
          %v766 = vunpack.c.l.b16 %v754
          %v767 = vunpack.c.l.b16 %v755
          %v768 = vunpack.c.l.b16 %v756
          %v769 = vpack.c.b16 %v766, %v765
          %v770 = vpack.c.b16 %v768, %v767
          %vm773 = vcmask 261120
          %v775 = vsel %vm773, %v752, 0
          %777 = vmatpush.bf16.msra.mxu0 0
          %778 = vmatpush.bf16.msra.mxu0 0
          %779 = vmatpush.bf16.msra.mxu0 0
          %780 = vmatpush.bf16.msra.mxu0 0
          %781 = vmatpush.bf16.msra.mxu0 0
          %782 = vmatpush.bf16.msra.mxu0 0
          %783 = vmatpush.bf16.msra.mxu0 %v770
          %784 = vmatpush.bf16.msra.mxu0 %v769
          %785 = vmatmul.bf16.gmra.mxu0 %v775
          %v786 = vpop.f32.mrf.mxu0
          %v787 = vadd.f32 %v759, %v786
          %v788 = vpop.f32.mrf.mxu0
          %789 = vdwg.mxu0
          %v790 = vld [vmem:[#allocation10] sm:$0xf]
          %v791 = vld [vmem:[#allocation10 + $0x4] sm:$0xf]
          %v792 = vld [vmem:[#allocation10 + $0x8] sm:$0xf]
          %v793 = vld [vmem:[#allocation10 + $0xc] sm:$0xf]
          %v794 = vld [vmem:[%s8] sm:$0x1]
          %v796 = vperm.slane %v794, 0
          %v802 = vunpack.c.l.b16 %v790
          %v803 = vunpack.c.l.b16 %v791
          %v804 = vunpack.c.l.b16 %v792
          %v805 = vunpack.c.l.b16 %v793
          %v806 = vpack.c.b16 %v803, %v802
          %v807 = vpack.c.b16 %v805, %v804
          %810 = vmatpush.bf16.msra.mxu0 0
          %811 = vmatpush.bf16.msra.mxu0 0
          %812 = vmatpush.bf16.msra.mxu0 0
          %813 = vmatpush.bf16.msra.mxu0 0
          %814 = vmatpush.bf16.msra.mxu0 0
          %815 = vmatpush.bf16.msra.mxu0 0
          %816 = vmatpush.bf16.msra.mxu0 %v807
          %817 = vmatpush.bf16.msra.mxu0 %v806
          %818 = vmatmul.bf16.gmra.mxu0 %v775
          %v819 = vpop.f32.mrf.mxu0
          %v820 = vadd.f32 %v796, %v819
          %v821 = vpop.f32.mrf.mxu0
          %822 = vdwg.mxu0
          %v823 = vpack.c.bf16 %v787, %v787
          %v824 = vpack.c.bf16 %v820, %v820
          %vm825 = vcmask 60416
          %826 = vst.msk [vmem:[#allocation3] sm:$0xf] %vm825, %v823
          %827 = vst.msk [vmem:[#allocation4] sm:$0xf] %vm825, %v824
          %829 = vrot.lane.b32.xlu0 %v823, 120
          %v830 = vpop.permute.xlu0 %829
          %s832 = scalar_lea.vmem [#allocation3], 4
          %833 = vst.msk [vmem:[%s832] sm:$0xf] %vm825, %v830
          %835 = vrot.lane.b32.xlu0 %v824, 120
          %v836 = vpop.permute.xlu0 %835
          %s838 = scalar_lea.vmem [#allocation4], 4
          %839 = vst.msk [vmem:[%s838] sm:$0xf] %vm825, %v836
          %840 = vrot.lane.b32.xlu0 %v823, 112
          %v841 = vpop.permute.xlu0 %840
          %s843 = scalar_lea.vmem [#allocation3], 8
          %844 = vst.msk [vmem:[%s843] sm:$0xf] %vm825, %v841
          %845 = vrot.lane.b32.xlu0 %v824, 112
          %v846 = vpop.permute.xlu0 %845
          %s848 = scalar_lea.vmem [#allocation4], 8
          %849 = vst.msk [vmem:[%s848] sm:$0xf] %vm825, %v846
          %850 = vrot.lane.b32.xlu0 %v823, 104
          %v851 = vpop.permute.xlu0 %850
          %s853 = scalar_lea.vmem [#allocation3], 12
          %854 = vst.msk [vmem:[%s853] sm:$0xf] %vm825, %v851
          %855 = vrot.lane.b32.xlu0 %v824, 104
          %v856 = vpop.permute.xlu0 %855
          %s858 = scalar_lea.vmem [#allocation4], 12
          %859 = vst.msk [vmem:[%s858] sm:$0xf] %vm825, %v856
        $region120: #{tpu_custom_call.1} parent=95 // pred_fallthru
          _
        %v860 = vpack.c.bf16 %v747, %v747
        %v861 = vld [vmem:[%s3] sm:$0xf]
        %v862 = vld [vmem:[%s3 + $0x4] sm:$0xf]
        %v863 = vld [vmem:[%s3 + $0x8] sm:$0xf]
        %v864 = vld [vmem:[%s3 + $0xc] sm:$0xf]
        %v865 = vld [vmem:[%s4] sm:$0x1]
        %v867 = vperm.slane %v865, 0
        %v873 = vunpack.c.l.b16 %v861
        %v874 = vunpack.c.l.b16 %v862
        %v875 = vunpack.c.l.b16 %v863
        %v876 = vunpack.c.l.b16 %v864
        %v877 = vpack.c.b16 %v874, %v873
        %v878 = vpack.c.b16 %v876, %v875
        %vm881 = vcmask 261120
        %v883 = vsel %vm881, %v860, 0
        %885 = vmatpush.bf16.msra.mxu0 0
        %886 = vmatpush.bf16.msra.mxu0 0
        %887 = vmatpush.bf16.msra.mxu0 0
        %888 = vmatpush.bf16.msra.mxu0 0
        %889 = vmatpush.bf16.msra.mxu0 0
        %890 = vmatpush.bf16.msra.mxu0 0
        %891 = vmatpush.bf16.msra.mxu0 %v878
        %892 = vmatpush.bf16.msra.mxu0 %v877
        %893 = vmatmul.bf16.gmra.mxu0 %v883
        %v894 = vpop.f32.mrf.mxu0
        %v895 = vadd.f32 %v867, %v894
        %v896 = vpop.f32.mrf.mxu0
        %897 = vdwg.mxu0
        %v898 = vmul.f32 %v895, 0.35355338
        %v899 = vpack.c.bf16 %v898, %v898
        %vm900 = vcmask 60416
        %901 = vst.msk [vmem:[#allocation2] sm:$0xf] %vm900, %v899
        %903 = vrot.lane.b32.xlu0 %v899, 120
        %v904 = vpop.permute.xlu0 %903
        %s906 = scalar_lea.vmem [#allocation2], 4
        %907 = vst.msk [vmem:[%s906] sm:$0xf] %vm900, %v904
        %908 = vrot.lane.b32.xlu0 %v899, 112
        %v909 = vpop.permute.xlu0 %908
        %s911 = scalar_lea.vmem [#allocation2], 8
        %912 = vst.msk [vmem:[%s911] sm:$0xf] %vm900, %v909
        %913 = vrot.lane.b32.xlu0 %v899, 104
        %v914 = vpop.permute.xlu0 %913
        %s916 = scalar_lea.vmem [#allocation2], 12
        %917 = vst.msk [vmem:[%s916] sm:$0xf] %vm900, %v914
        %v918 = vld [vmem:[#allocation2] sm:$0xf]
        %v919 = vld [vmem:[#allocation2 + $0x4] sm:$0xf]
        %v920 = vld [vmem:[#allocation2 + $0x8] sm:$0xf]
        %v921 = vld [vmem:[#allocation2 + $0xc] sm:$0xf]
        %v922 = vld [vmem:[#allocation3] sm:$0xf]
        %v923 = vld [vmem:[#allocation3 + $0x4] sm:$0xf]
        %v924 = vld [vmem:[#allocation3 + $0x8] sm:$0xf]
        %v925 = vld [vmem:[#allocation3 + $0xc] sm:$0xf]
        %v926 = vld [vmem:[#allocation4] sm:$0xf]
        %v927 = vld [vmem:[#allocation4 + $0x4] sm:$0xf]
        %v928 = vld [vmem:[#allocation4 + $0x8] sm:$0xf]
        %v929 = vld [vmem:[#allocation4 + $0xc] sm:$0xf]
        %v930 = vld [vmem:[%s657] sm:$0x1]
        %v932 = vperm.slane %v930, 0
        %vm934 = vcmask 64512
        %v936 = vsel %vm934, %v918, 0
        %v939 = vsel %vm934, %v922, 0
        %941 = vmatpush.bf16.xpose.msra.mxu0 0
        %942 = vmatpush.bf16.xpose.msra.mxu0 0
        %943 = vmatpush.bf16.xpose.msra.mxu0 0
        %944 = vmatpush.bf16.xpose.msra.mxu0 0
        %945 = vmatpush.bf16.xpose.msra.mxu0 0
        %946 = vmatpush.bf16.xpose.msra.mxu0 0
        %947 = vmatpush.bf16.xpose.msra.mxu0 0
        %948 = vmatpush.bf16.xpose.msra.mxu0 %v939
        %949 = vmatmul.bf16.gmra.mxu0 %v936
        %v950 = vpop.f32.mrf.mxu0
        %v951 = vadd.f32 %v932, %v950
        %v952 = vpop.f32.mrf.mxu0
        %953 = vdwg.mxu0
        %v955 = vsel %vm934, %v919, 0
        %v958 = vsel %vm934, %v923, 0
        %960 = vmatpush.bf16.xpose.msra.mxu0 0
        %961 = vmatpush.bf16.xpose.msra.mxu0 0
        %962 = vmatpush.bf16.xpose.msra.mxu0 0
        %963 = vmatpush.bf16.xpose.msra.mxu0 0
        %964 = vmatpush.bf16.xpose.msra.mxu0 0
        %965 = vmatpush.bf16.xpose.msra.mxu0 0
        %966 = vmatpush.bf16.xpose.msra.mxu0 0
        %967 = vmatpush.bf16.xpose.msra.mxu0 %v958
        %968 = vmatmul.bf16.gmra.mxu0 %v955
        %v969 = vpop.f32.mrf.mxu0
        %v970 = vadd.f32 %v932, %v969
        %v971 = vpop.f32.mrf.mxu0
        %972 = vdwg.mxu0
        %v974 = vsel %vm934, %v920, 0
        %v977 = vsel %vm934, %v924, 0
        %979 = vmatpush.bf16.xpose.msra.mxu0 0
        %980 = vmatpush.bf16.xpose.msra.mxu0 0
        %981 = vmatpush.bf16.xpose.msra.mxu0 0
        %982 = vmatpush.bf16.xpose.msra.mxu0 0
        %983 = vmatpush.bf16.xpose.msra.mxu0 0
        %984 = vmatpush.bf16.xpose.msra.mxu0 0
        %985 = vmatpush.bf16.xpose.msra.mxu0 0
        %986 = vmatpush.bf16.xpose.msra.mxu0 %v977
        %987 = vmatmul.bf16.gmra.mxu0 %v974
        %v988 = vpop.f32.mrf.mxu0
        %v989 = vadd.f32 %v932, %v988
        %v990 = vpop.f32.mrf.mxu0
        %991 = vdwg.mxu0
        %v993 = vsel %vm934, %v921, 0
        %v996 = vsel %vm934, %v925, 0
        %998 = vmatpush.bf16.xpose.msra.mxu0 0
        %999 = vmatpush.bf16.xpose.msra.mxu0 0
        %1000 = vmatpush.bf16.xpose.msra.mxu0 0
        %1001 = vmatpush.bf16.xpose.msra.mxu0 0
        %1002 = vmatpush.bf16.xpose.msra.mxu0 0
        %1003 = vmatpush.bf16.xpose.msra.mxu0 0
        %1004 = vmatpush.bf16.xpose.msra.mxu0 0
        %1005 = vmatpush.bf16.xpose.msra.mxu0 %v996
        %1006 = vmatmul.bf16.gmra.mxu0 %v993
        %v1007 = vpop.f32.mrf.mxu0
        %v1008 = vadd.f32 %v932, %v1007
        %v1009 = vpop.f32.mrf.mxu0
        %1010 = vdwg.mxu0
        %v1011 = vsel %vm934, %v951, -inf
        %1012 = vmax.xlane.f32.xlu0 %v1011
        %v1013 = vpop.xlane.xlu0 %1012
        %v1014 = vsel %vm934, %v970, -inf
        %1015 = vmax.xlane.f32.xlu0 %v1014
        %v1016 = vpop.xlane.xlu0 %1015
        %v1017 = vsel %vm934, %v989, -inf
        %1018 = vmax.xlane.f32.xlu0 %v1017
        %v1019 = vpop.xlane.xlu0 %1018
        %v1020 = vsel %vm934, %v1008, -inf
        %1021 = vmax.xlane.f32.xlu0 %v1020
        %v1022 = vpop.xlane.xlu0 %1021
        %v1023 = vmax.f32 %v1013, -1e+30
        %v1024 = vmax.f32 %v1016, -1e+30
        %v1025 = vmax.f32 %v1019, -1e+30
        %v1026 = vmax.f32 %v1022, -1e+30
        %v1027 = vsub.f32 -1e+30, %v1023
        %v1028 = vsub.f32 -1e+30, %v1024
        %v1029 = vsub.f32 -1e+30, %v1025
        %v1030 = vsub.f32 -1e+30, %v1026
        %v1031 = vmul.f32 %v1027, 1.442695
        %v1032 = vpow.pop %v1031
        %v1033 = vmul.f32 %v1028, 1.442695
        %v1034 = vpow.pop %v1033
        %v1035 = vmul.f32 %v1029, 1.442695
        %v1036 = vpow.pop %v1035
        %v1037 = vmul.f32 %v1030, 1.442695
        %v1038 = vpow.pop %v1037
        %v1039 = vsub.f32 %v951, %v1023
        %v1040 = vsub.f32 %v970, %v1024
        %v1041 = vsub.f32 %v989, %v1025
        %v1042 = vsub.f32 %v1008, %v1026
        %v1043 = vmul.f32 %v1039, 1.442695
        %v1044 = vpow.pop %v1043
        %v1045 = vmul.f32 %v1040, 1.442695
        %v1046 = vpow.pop %v1045
        %v1047 = vmul.f32 %v1041, 1.442695
        %v1048 = vpow.pop %v1047
        %v1049 = vmul.f32 %v1042, 1.442695
        %v1050 = vpow.pop %v1049
        %v1051 = vmul.f32 %v1032, 0.0
        %v1052 = vmul.f32 %v1034, 0.0
        %v1053 = vmul.f32 %v1036, 0.0
        %v1054 = vmul.f32 %v1038, 0.0
        %v1055 = vsel %vm934, %v1044, 0.0
        %1056 = vadd.xlane.f32.xlu0 %v1055
        %v1057 = vpop.xlane.xlu0 %1056
        %v1058 = vsel %vm934, %v1046, 0.0
        %1059 = vadd.xlane.f32.xlu0 %v1058
        %v1060 = vpop.xlane.xlu0 %1059
        %v1061 = vsel %vm934, %v1048, 0.0
        %1062 = vadd.xlane.f32.xlu0 %v1061
        %v1063 = vpop.xlane.xlu0 %1062
        %v1064 = vsel %vm934, %v1050, 0.0
        %1065 = vadd.xlane.f32.xlu0 %v1064
        %v1066 = vpop.xlane.xlu0 %1065
        %v1067 = vadd.f32 %v1051, %v1057
        %v1068 = vadd.f32 %v1052, %v1060
        %v1069 = vadd.f32 %v1053, %v1063
        %v1070 = vadd.f32 %v1054, %v1066
        %v1071 = vpack.c.bf16 %v1044, %v1044
        %v1072 = vpack.c.bf16 %v1046, %v1046
        %v1073 = vpack.c.bf16 %v1048, %v1048
        %v1074 = vpack.c.bf16 %v1050, %v1050
        %v1076 = vsel %vm934, %v1071, 0
        %vm1078 = vcmask 1043456
        %v1080 = vsel %vm1078, %v926, 0
        %1082 = vmatpush.bf16.msra.mxu0 0
        %1083 = vmatpush.bf16.msra.mxu0 0
        %1084 = vmatpush.bf16.msra.mxu0 0
        %1085 = vmatpush.bf16.msra.mxu0 0
        %1086 = vmatpush.bf16.msra.mxu0 0
        %1087 = vmatpush.bf16.msra.mxu0 0
        %1088 = vmatpush.bf16.msra.mxu0 0
        %1089 = vmatpush.bf16.msra.mxu0 %v1080
        %1090 = vmatmul.bf16.gmra.mxu0 %v1076
        %v1091 = vpop.f32.mrf.mxu0
        %v1092 = vadd.f32 0.0, %v1091
        %v1093 = vpop.f32.mrf.mxu0
        %1094 = vdwg.mxu0
        %v1096 = vsel %vm934, %v1072, 0
        %v1099 = vsel %vm1078, %v927, 0
        %1101 = vmatpush.bf16.msra.mxu0 0
        %1102 = vmatpush.bf16.msra.mxu0 0
        %1103 = vmatpush.bf16.msra.mxu0 0
        %1104 = vmatpush.bf16.msra.mxu0 0
        %1105 = vmatpush.bf16.msra.mxu0 0
        %1106 = vmatpush.bf16.msra.mxu0 0
        %1107 = vmatpush.bf16.msra.mxu0 0
        %1108 = vmatpush.bf16.msra.mxu0 %v1099
        %1109 = vmatmul.bf16.gmra.mxu0 %v1096
        %v1110 = vpop.f32.mrf.mxu0
        %v1111 = vadd.f32 0.0, %v1110
        %v1112 = vpop.f32.mrf.mxu0
        %1113 = vdwg.mxu0
        %v1115 = vsel %vm934, %v1073, 0
        %v1118 = vsel %vm1078, %v928, 0
        %1120 = vmatpush.bf16.msra.mxu0 0
        %1121 = vmatpush.bf16.msra.mxu0 0
        %1122 = vmatpush.bf16.msra.mxu0 0
        %1123 = vmatpush.bf16.msra.mxu0 0
        %1124 = vmatpush.bf16.msra.mxu0 0
        %1125 = vmatpush.bf16.msra.mxu0 0
        %1126 = vmatpush.bf16.msra.mxu0 0
        %1127 = vmatpush.bf16.msra.mxu0 %v1118
        %1128 = vmatmul.bf16.gmra.mxu0 %v1115
        %v1129 = vpop.f32.mrf.mxu0
        %v1130 = vadd.f32 0.0, %v1129
        %v1131 = vpop.f32.mrf.mxu0
        %1132 = vdwg.mxu0
        %v1134 = vsel %vm934, %v1074, 0
        %v1137 = vsel %vm1078, %v929, 0
        %1139 = vmatpush.bf16.msra.mxu0 0
        %1140 = vmatpush.bf16.msra.mxu0 0
        %1141 = vmatpush.bf16.msra.mxu0 0
        %1142 = vmatpush.bf16.msra.mxu0 0
        %1143 = vmatpush.bf16.msra.mxu0 0
        %1144 = vmatpush.bf16.msra.mxu0 0
        %1145 = vmatpush.bf16.msra.mxu0 0
        %1146 = vmatpush.bf16.msra.mxu0 %v1137
        %1147 = vmatmul.bf16.gmra.mxu0 %v1134
        %v1148 = vpop.f32.mrf.mxu0
        %v1149 = vadd.f32 0.0, %v1148
        %v1150 = vpop.f32.mrf.mxu0
        %1151 = vdwg.mxu0
        %v1152 = vadd.f32 %v1051, %v1092
        %v1153 = vadd.f32 %v1052, %v1111
        %v1154 = vadd.f32 %v1053, %v1130
        %v1155 = vadd.f32 %v1054, %v1149
        %v1156 = vrcp.pop %v1067
        %v1157 = vrcp.pop %v1068
        %v1158 = vrcp.pop %v1069
        %v1159 = vrcp.pop %v1070
        %v1160 = vmul.f32 %v1152, %v1156
        %v1161 = vmul.f32 %v1153, %v1157
        %v1162 = vmul.f32 %v1154, %v1158
        %v1163 = vmul.f32 %v1155, %v1159
        %v1164 = vpack.c.bf16 %v1160, %v1160
        %v1165 = vld [vmem:[#allocation11] sm:$0xf]
        %v1166 = vpack.c.bf16 %v1161, %v1161
        %s1167 = scalar_lea.vmem [#allocation11], 4
        %v1168 = vld [vmem:[%s1167] sm:$0xf]
        %v1170 = vsel %vm934, %v1166, 0
        %v1173 = vsel %vm1078, %v1168, 0
        %1175 = vmatpush.bf16.msra.mxu0 0
        %1176 = vmatpush.bf16.msra.mxu0 0
        %1177 = vmatpush.bf16.msra.mxu0 0
        %1178 = vmatpush.bf16.msra.mxu0 0
        %1179 = vmatpush.bf16.msra.mxu0 0
        %1180 = vmatpush.bf16.msra.mxu0 0
        %1181 = vmatpush.bf16.msra.mxu0 0
        %1182 = vmatpush.bf16.msra.mxu0 %v1173
        %1183 = vmatmul.bf16.gmra.mxu0 %v1170
        %v1184 = vpop.f32.mrf.mxu0
        %v1185 = vadd.f32 0.0, %v1184
        %v1186 = vpop.f32.mrf.mxu0
        %1187 = vdwg.mxu0
        %v1189 = vsel %vm934, %v1164, 0
        %v1192 = vsel %vm1078, %v1165, 0
        %1194 = vmatpush.bf16.msra.mxu0 0
        %1195 = vmatpush.bf16.msra.mxu0 0
        %1196 = vmatpush.bf16.msra.mxu0 0
        %1197 = vmatpush.bf16.msra.mxu0 0
        %1198 = vmatpush.bf16.msra.mxu0 0
        %1199 = vmatpush.bf16.msra.mxu0 0
        %1200 = vmatpush.bf16.msra.mxu0 0
        %1201 = vmatpush.bf16.msra.mxu0 %v1192
        %1202 = vmatmul.bf16.gmra.mxu0 %v1189
        %v1203 = vpop.f32.mrf.mxu0
        %v1204 = vadd.f32 %v1185, %v1203
        %v1205 = vpop.f32.mrf.mxu0
        %1206 = vdwg.mxu0
        %v1207 = vpack.c.bf16 %v1162, %v1162
        %s1208 = scalar_lea.vmem [#allocation11], 8
        %v1209 = vld [vmem:[%s1208] sm:$0xf]
        %v1211 = vsel %vm934, %v1207, 0
        %v1214 = vsel %vm1078, %v1209, 0
        %1216 = vmatpush.bf16.msra.mxu0 0
        %1217 = vmatpush.bf16.msra.mxu0 0
        %1218 = vmatpush.bf16.msra.mxu0 0
        %1219 = vmatpush.bf16.msra.mxu0 0
        %1220 = vmatpush.bf16.msra.mxu0 0
        %1221 = vmatpush.bf16.msra.mxu0 0
        %1222 = vmatpush.bf16.msra.mxu0 0
        %1223 = vmatpush.bf16.msra.mxu0 %v1214
        %1224 = vmatmul.bf16.gmra.mxu0 %v1211
        %v1225 = vpop.f32.mrf.mxu0
        %v1226 = vadd.f32 0.0, %v1225
        %v1227 = vpop.f32.mrf.mxu0
        %1228 = vdwg.mxu0
        %v1229 = vadd.f32 %v1204, %v1226
        %v1230 = vpack.c.bf16 %v1163, %v1163
        %s1231 = scalar_lea.vmem [#allocation11], 12
        %v1232 = vld [vmem:[%s1231] sm:$0xf]
        %v1234 = vsel %vm934, %v1230, 0
        %v1237 = vsel %vm1078, %v1232, 0
        %1239 = vmatpush.bf16.msra.mxu0 0
        %1240 = vmatpush.bf16.msra.mxu0 0
        %1241 = vmatpush.bf16.msra.mxu0 0
        %1242 = vmatpush.bf16.msra.mxu0 0
        %1243 = vmatpush.bf16.msra.mxu0 0
        %1244 = vmatpush.bf16.msra.mxu0 0
        %1245 = vmatpush.bf16.msra.mxu0 0
        %1246 = vmatpush.bf16.msra.mxu0 %v1237
        %1247 = vmatmul.bf16.gmra.mxu0 %v1234
        %v1248 = vpop.f32.mrf.mxu0
        %v1249 = vadd.f32 0.0, %v1248
        %v1250 = vpop.f32.mrf.mxu0
        %1251 = vdwg.mxu0
        %v1252 = vadd.f32 %v1229, %v1249
        %v1253 = vld [vmem:[%s10] sm:$0x1]
        %v1255 = vperm.slane %v1253, 0
        %v1257 = vadd.f32 %v1252, %v1255
        %v1258 = vadd.f32 %v1257, %v747
        %v1259 = vld [vmem:[%s11] sm:$0x1]
        %v1260 = vld [vmem:[%s12] sm:$0x1]
        %v1261 = vsel %vm881, %v1258, 0.0
        %1262 = vadd.xlane.f32.xlu0 %v1261
        %v1263 = vpop.xlane.xlu0 %1262
        %v1264 = vrcp.pop 32.0
        %v1265 = vmul.f32 32.0, %v1264
        %v1266 = vsub.f32 1.0, %v1265
        %v1267 = vmul.f32 %v1264, %v1266
        %v1268 = vadd.f32 %v1264, %v1267
        %vm1269 = vweird.f32 %v1264
        %v1270 = vsel %vm1269, %v1264, %v1268
        %v1271 = vmul.f32 %v1263, %v1270
        %v1272 = vsub.f32 %v1258, %v1271
        %v1273 = vmul.f32 %v1272, %v1272
        %v1274 = vsel %vm881, %v1273, 0.0
        %1275 = vadd.xlane.f32.xlu0 %v1274
        %v1276 = vpop.xlane.xlu0 %1275
        %v1277 = vmul.f32 %v1276, %v1270
        %v1278 = vadd.f32 %v1277, 1e-12
        %v1279 = vrsqrt.pop %v1278
        %v1280 = vmul.f32 %v1279, %v1278
        %v1281 = vmul.f32 %v1280, %v1279
        %v1282 = vmul.f32 0.5, %v1281
        %v1283 = vsub.f32 1.5, %v1282
        %v1284 = vmul.f32 %v1279, %v1283
        %vm1285 = vweird.f32 %v1278
        %vm1286 = vweird.f32 %v1279
        %vm1287 = vmor %vm1285, %vm1286
        %v1288 = vsel %vm1287, %v1279, %v1284
        %v1289 = vmul.f32 %v1272, %v1288
        %v1291 = vperm.slane %v1259, 0
        %v1293 = vmul.f32 %v1289, %v1291
        %v1295 = vperm.slane %v1260, 0
        %v1297 = vadd.f32 %v1293, %v1295
        %v1298 = vpack.c.bf16 %v1297, %v1297
        %v1299 = vld [vmem:[#allocation13] sm:$0xf]
        %v1300 = vld [vmem:[#allocation13 + $0x4] sm:$0xf]
        %v1301 = vld [vmem:[#allocation13 + $0x8] sm:$0xf]
        %v1302 = vld [vmem:[#allocation13 + $0xc] sm:$0xf]
        %v1303 = vld [vmem:[%s14] sm:$0x1]
        %v1305 = vperm.slane %v1303, 0
        %v1311 = vunpack.c.l.b16 %v1299
        %v1312 = vunpack.c.l.b16 %v1300
        %v1313 = vunpack.c.l.b16 %v1301
        %v1314 = vunpack.c.l.b16 %v1302
        %v1315 = vpack.c.b16 %v1312, %v1311
        %v1316 = vpack.c.b16 %v1314, %v1313
        %v1320 = vsel %vm881, %v1298, 0
        %1322 = vmatpush.bf16.msra.mxu0 0
        %1323 = vmatpush.bf16.msra.mxu0 0
        %1324 = vmatpush.bf16.msra.mxu0 0
        %1325 = vmatpush.bf16.msra.mxu0 0
        %1326 = vmatpush.bf16.msra.mxu0 0
        %1327 = vmatpush.bf16.msra.mxu0 0
        %1328 = vmatpush.bf16.msra.mxu0 %v1316
        %1329 = vmatpush.bf16.msra.mxu0 %v1315
        %1330 = vmatmul.bf16.gmra.mxu0 %v1320
        %v1331 = vpop.f32.mrf.mxu0
        %v1332 = vadd.f32 %v1305, %v1331
        %v1333 = vpop.f32.mrf.mxu0
        %1334 = vdwg.mxu0
        %v1335 = vmul.f32 %v1332, 0.5
        %v1336 = vmul.f32 %v1332, 0.044715
        %v1337 = vmul.f32 %v1336, %v1332
        %v1338 = vmul.f32 %v1337, %v1332
        %v1339 = vadd.f32 %v1332, %v1338
        %v1340 = vmul.f32 %v1339, 0.7978846
        %v1341 = vtanh.pop %v1340
        %v1342 = vadd.f32 %v1341, 1.0
        %v1343 = vmul.f32 %v1335, %v1342
        %v1344 = vpack.c.bf16 %v1343, %v1343
        %v1345 = vld [vmem:[%s15] sm:$0xf]
        %v1346 = vld [vmem:[%s15 + $0x4] sm:$0xf]
        %v1347 = vld [vmem:[%s15 + $0x8] sm:$0xf]
        %v1348 = vld [vmem:[%s15 + $0xc] sm:$0xf]
        %v1349 = vld [vmem:[%s15 + $0x10] sm:$0xf]
        %v1350 = vld [vmem:[%s15 + $0x14] sm:$0xf]
        %v1351 = vld [vmem:[%s15 + $0x18] sm:$0xf]
        %v1352 = vld [vmem:[%s15 + $0x1c] sm:$0xf]
        %v1353 = vld [vmem:[%s16] sm:$0x1]
        %v1355 = vperm.slane %v1353, 0
        %v1365 = vunpack.c.l.b16 %v1345
        %v1366 = vunpack.c.l.b16 %v1346
        %v1367 = vunpack.c.l.b16 %v1347
        %v1368 = vunpack.c.l.b16 %v1348
        %v1369 = vunpack.c.l.b16 %v1349
        %v1370 = vunpack.c.l.b16 %v1350
        %v1371 = vunpack.c.l.b16 %v1351
        %v1372 = vunpack.c.l.b16 %v1352
        %v1373 = vpack.c.b16 %v1366, %v1365
        %v1374 = vpack.c.b16 %v1368, %v1367
        %v1375 = vpack.c.b16 %v1370, %v1369
        %v1376 = vpack.c.b16 %v1372, %v1371
        %vm1381 = vcmask 523264
        %v1383 = vsel %vm1381, %v1344, 0
        %1385 = vmatpush.bf16.msra.mxu0 0
        %1386 = vmatpush.bf16.msra.mxu0 0
        %1387 = vmatpush.bf16.msra.mxu0 0
        %1388 = vmatpush.bf16.msra.mxu0 0
        %1389 = vmatpush.bf16.msra.mxu0 %v1376
        %1390 = vmatpush.bf16.msra.mxu0 %v1375
        %1391 = vmatpush.bf16.msra.mxu0 %v1374
        %1392 = vmatpush.bf16.msra.mxu0 %v1373
        %1393 = vmatmul.bf16.gmra.mxu0 %v1383
        %v1394 = vpop.f32.mrf.mxu0
        %v1395 = vadd.f32 %v1355, %v1394
        %v1396 = vpop.f32.mrf.mxu0
        %1397 = vdwg.mxu0
        %v1398 = vadd.f32 %v1395, %v1297
        %v1399 = vld [vmem:[%s17] sm:$0x1]
        %v1400 = vld [vmem:[%s18] sm:$0x1]
        %v1401 = vsel %vm881, %v1398, 0.0
        %1402 = vadd.xlane.f32.xlu0 %v1401
        %v1403 = vpop.xlane.xlu0 %1402
        %v1404 = vmul.f32 %v1403, %v1270
        %v1405 = vsub.f32 %v1398, %v1404
        %v1406 = vmul.f32 %v1405, %v1405
        %v1407 = vsel %vm881, %v1406, 0.0
        %1408 = vadd.xlane.f32.xlu0 %v1407
        %v1409 = vpop.xlane.xlu0 %1408
        %v1410 = vmul.f32 %v1409, %v1270
        %v1411 = vadd.f32 %v1410, 1e-12
        %v1412 = vrsqrt.pop %v1411
        %v1413 = vmul.f32 %v1412, %v1411
        %v1414 = vmul.f32 %v1413, %v1412
        %v1415 = vmul.f32 0.5, %v1414
        %v1416 = vsub.f32 1.5, %v1415
        %v1417 = vmul.f32 %v1412, %v1416
        %vm1418 = vweird.f32 %v1411
        %vm1419 = vweird.f32 %v1412
        %vm1420 = vmor %vm1418, %vm1419
        %v1421 = vsel %vm1420, %v1412, %v1417
        %v1422 = vmul.f32 %v1405, %v1421
        %v1424 = vperm.slane %v1399, 0
        %v1426 = vmul.f32 %v1422, %v1424
        %v1428 = vperm.slane %v1400, 0
        %v1430 = vadd.f32 %v1426, %v1428
        %1431 = vst.msk [vmem:[%s738] sm:$0xff] %vm881, %v1430
        %s1432 = sand.u32 %s478, 1
        %s1433 = scalar_lea.sflag [#allocation7], %s1432
        %s1434 = sand.u32 %s478, 1
        %s1435 = smul.addr %s1434, 8
        %s1436 = scalar_lea.vmem [#allocation14], %s1435
        // Predicated region
        $region121: #{tpu_custom_call.1} parent=95 // pred_check
          %p1437 = pneg %p488
        $region122: #{tpu_custom_call.1} parent=95 // pred_check_branch
          %1439 = sbr.rel (%p1437) target = $region124
        $region123: #{tpu_custom_call.1} parent=95 // pred_region
          %1441 = vsyncadd %s1433, 0
          %s1442 = sadd.s32 %s45, %s44
          %s1443 = smul.addr %s1442, 8
          %s1444 = scalar_lea.hbm %s19, %s1443
          %s1446 = sshll.u32 %s1436, 4
          %s1447 = int_to_ptr.vmem [resolvable:$true] %s1446
          %s1448 = sshll.u32 %s1444, 4
          %s1449 = int_to_ptr.hbm [resolvable:$true] %s1448
          %1451 = dma.vmem_to_hbm [thread:$0]  %s1447, 128, %s1449, %s1433
        $region124: #{tpu_custom_call.1} parent=95 // pred_fallthru
          _
      $region96: #{tpu_custom_call.1} parent=5 // pred_fallthru
        _
      %p1452 = scmp.le.s32.totalorder 2, %s35
      // Predicated region
      $region125: #{tpu_custom_call.1} parent=5 // pred_check
        %p1453 = pneg %p1452
      $region126: #{tpu_custom_call.1} parent=5 // pred_check_branch
        %1455 = sbr.rel (%p1453) target = $region128
      $region127: #{tpu_custom_call.1} parent=5 // pred_region
        %s1456 = ssub.s32 %s35, 2
        // Predicated region
        $region129: #{tpu_custom_call.1} parent=127 // pred_check
          %p1457 = pneg %p494
        $region130: #{tpu_custom_call.1} parent=127 // pred_check_branch
          %1459 = sbr.rel (%p1457) target = $region132
        $region131: #{tpu_custom_call.1} parent=127 // pred_region
          %s1460 = sand.u32 %s479, 1
          %s1461 = scalar_lea.sflag [#allocation7], %s1460
          %s1462 = sand.u32 %s479, 1
          %s1463 = smul.addr %s1462, 8
          %s1464 = scalar_lea.vmem [#allocation14], %s1463
          %1466 = dma.done %s1461, 128
        $region132: #{tpu_custom_call.1} parent=127 // pred_fallthru
          _
      $region128: #{tpu_custom_call.1} parent=5 // pred_fallthru
        _
    $region6: #{tpu_custom_call.1} parent=1 // loop_footer
      %s39 = sadd.s32 1, %s35
    $region7: #{tpu_custom_call.1} parent=1 // loop_footer_branch
      %34 = sbr.rel target = $region3
    $region8: #{tpu_custom_call.1} parent=1 // loop_exit
      _
    %1467 = vsyncpa [#allocation6], 1
    %s1468 = scalar_lea.sflag [#allocation6], 1
    %1469 = vsyncpa %s1468, 1
    %1470 = vsyncpa [#allocation9], 1
    %s1471 = scalar_lea.sflag [#allocation9], 1
    %1472 = vsyncpa %s1471, 1
    %1473 = vsyncpa [#allocation12], 1
    %1474 = vsyncpa [#allocation7], 1
    %s1475 = scalar_lea.sflag [#allocation7], 1
    %1476 = vsyncpa %s1475, 1

// kernel: tpu_custom_call.1
$region0: #{tpu_custom_call.1}
  #allocation0 [shape = 'u32[]', space=smem, size = 0x4, offset = 0x4, fixed_abs, tag = 'smem constant byte address 0x4 - core index']
  #allocation1 [shape = 'u32[72,128]{1,0:T(1,128)}', space=vmem, size = 0x9000, scoped, tag = 'internal scratch']
  #allocation2 [shape = 'bf16[4,8,8]{2,1,0:T(8,128)(2,1)}', space=vmem, size = 0x2000, scoped, tag = 'scratch operand']
  #allocation3 [shape = 'bf16[4,8,8]{2,1,0:T(8,128)(2,1)}', space=vmem, size = 0x2000, scoped, tag = 'scratch operand']
  #allocation4 [shape = 'bf16[4,8,8]{2,1,0:T(8,128)(2,1)}', space=vmem, size = 0x2000, scoped, tag = 'scratch operand']
  %s0 = inlined_call_operand.vmem [shape: f32[2,8,32], index: 0, kind: input, shape index: {}]
  %s1 = inlined_call_operand.hbm [shape: bf16[2,8,32], index: 1, kind: input, shape index: {}]
  %s2 = inlined_call_operand.hbm [shape: f32[2,1,8], index: 2, kind: input, shape index: {}]
  %s3 = inlined_call_operand.vmem [shape: bf16[32,32], index: 3, kind: input, shape index: {}]
  %s4 = inlined_call_operand.vmem [shape: f32[1,32], index: 4, kind: input, shape index: {}]
  %s5 = inlined_call_operand.vmem [shape: bf16[32,32], index: 5, kind: input, shape index: {}]
  %s6 = inlined_call_operand.vmem [shape: f32[1,32], index: 6, kind: input, shape index: {}]
  %s7 = inlined_call_operand.hbm [shape: bf16[32,32], index: 7, kind: input, shape index: {}]
  %s8 = inlined_call_operand.vmem [shape: f32[1,32], index: 8, kind: input, shape index: {}]
  %s9 = inlined_call_operand.hbm [shape: bf16[4,8,32], index: 9, kind: input, shape index: {}]
  %s10 = inlined_call_operand.vmem [shape: f32[1,32], index: 10, kind: input, shape index: {}]
  %s11 = inlined_call_operand.vmem [shape: f32[1,32], index: 11, kind: input, shape index: {}]
  %s12 = inlined_call_operand.vmem [shape: f32[1,32], index: 12, kind: input, shape index: {}]
  %s13 = inlined_call_operand.hbm [shape: bf16[32,64], index: 13, kind: input, shape index: {}]
  %s14 = inlined_call_operand.vmem [shape: f32[1,64], index: 14, kind: input, shape index: {}]
  %s15 = inlined_call_operand.vmem [shape: bf16[64,32], index: 15, kind: input, shape index: {}]
  %s16 = inlined_call_operand.vmem [shape: f32[1,32], index: 16, kind: input, shape index: {}]
  %s17 = inlined_call_operand.vmem [shape: f32[1,32], index: 17, kind: input, shape index: {}]
  %s18 = inlined_call_operand.vmem [shape: f32[1,32], index: 18, kind: input, shape index: {}]
  %s19 = inlined_call_operand.hbm [shape: f32[2,8,32], index: 19, kind: output, shape index: {}]
  %s20 = sld [smem:[#allocation0]]
  $region133: #{tpu_custom_call.1} parent=0
    _
  %s22 = ssub.s32 1, %s20
  %s23 = scalar_select 0, %s22, %s20
  $region1: #{tpu_custom_call.1} parent=0
    #allocation5 [shape = 'u8[4096]{0}', space=vmem, size = 0x1000, scoped, tag = 'input window, operand 1']
    #allocation6 [shape = 's32[2]{0}', space=sflag, size = 0x8, scoped, tag = 'scoped memory for tpu_custom_call.1']
    #allocation7 [shape = 's32[2]{0}', space=sflag, size = 0x8, scoped, tag = 'scoped memory for tpu_custom_call.1']
    #allocation8 [shape = 'u8[1024]{0}', space=vmem, size = 0x400, scoped, tag = 'input window, operand 2']
    #allocation9 [shape = 's32[2]{0}', space=sflag, size = 0x8, scoped, tag = 'scoped memory for tpu_custom_call.1']
    #allocation10 [shape = 'u8[8192]{0}', space=vmem, size = 0x2000, scoped, tag = 'input window, operand 7, single buffered']
    #allocation11 [shape = 'u8[8192]{0}', space=vmem, size = 0x2000, scoped, tag = 'input window, operand 9, single buffered']
    #allocation12 [shape = 's32[1]{0}', space=sflag, size = 0x4, scoped, tag = 'scoped memory for tpu_custom_call.1']
    #allocation13 [shape = 'u8[8192]{0}', space=vmem, size = 0x2000, scoped, tag = 'input window, operand 13, single buffered']
    #allocation14 [shape = 'u8[8192]{0}', space=vmem, size = 0x2000, scoped, tag = 'output window, operand 0']
    %24 = vsyncpa [#allocation6], 0
    %s25 = scalar_lea.sflag [#allocation6], 1
    %26 = vsyncpa %s25, 0
    %27 = vsyncpa [#allocation9], 0
    %s28 = scalar_lea.sflag [#allocation9], 1
    %29 = vsyncpa %s28, 0
    %30 = vsyncpa [#allocation12], 0
    %31 = vsyncpa [#allocation7], 0
    %s32 = scalar_lea.sflag [#allocation7], 1
    %33 = vsyncpa %s32, 0
    loop: start=0, step=1, limit=4
    $region2: #{tpu_custom_call.1} parent=1 // loop_pre_header
      _
    $region3: #{tpu_custom_call.1} parent=1 // loop_header
      %s35 = sphi 0, %s39
      %p36 = scmp.ge.s32.totalorder %s35, 4
      %s42 = sphi 0, %s54
      %s43 = sphi 0, %s50
      %s44 = sphi 0, %s42
      %s45 = sphi 0, %s43
      %s46 = sphi 0, %s44
      %s47 = sphi 0, %s45
      %s59 = sphi 0, %s61
      %s62 = sphi 0, %s59
      %s63 = sphi 0, %s62
      %s79 = sphi 0, %s63
      %s85 = sphi 0, %s87
      %s88 = sphi 0, %s85
      %s89 = sphi 0, %s88
      %s105 = sphi 0, %s89
      %s111 = sphi 0, %s113
      %s114 = sphi 0, %s111
      %s115 = sphi 0, %s114
      %s131 = sphi 0, %s115
      %s135 = sphi 0, %s135
      %s137 = sphi 0, %s135
      %s138 = sphi 0, %s137
      %s152 = sphi 0, %s138
      %s156 = sphi 0, %s156
      %s158 = sphi 0, %s156
      %s159 = sphi 0, %s158
      %s173 = sphi 0, %s159
      %s177 = sphi 0, %s177
      %s179 = sphi 0, %s177
      %s180 = sphi 0, %s179
      %s194 = sphi 0, %s180
      %s198 = sphi 0, %s198
      %s200 = sphi 0, %s198
      %s201 = sphi 0, %s200
      %s215 = sphi 0, %s201
      %s219 = sphi 0, %s219
      %s221 = sphi 0, %s219
      %s222 = sphi 0, %s221
      %s236 = sphi 0, %s222
      %s240 = sphi 0, %s240
      %s242 = sphi 0, %s240
      %s243 = sphi 0, %s242
      %s257 = sphi 0, %s243
      %s261 = sphi 0, %s261
      %s263 = sphi 0, %s261
      %s264 = sphi 0, %s263
      %s278 = sphi 0, %s264
      %s282 = sphi 0, %s282
      %s284 = sphi 0, %s282
      %s285 = sphi 0, %s284
      %s299 = sphi 0, %s285
      %s303 = sphi 0, %s303
      %s305 = sphi 0, %s303
      %s306 = sphi 0, %s305
      %s320 = sphi 0, %s306
      %s324 = sphi 0, %s324
      %s326 = sphi 0, %s324
      %s327 = sphi 0, %s326
      %s341 = sphi 0, %s327
      %s345 = sphi 0, %s345
      %s347 = sphi 0, %s345
      %s348 = sphi 0, %s347
      %s362 = sphi 0, %s348
      %s366 = sphi 0, %s366
      %s368 = sphi 0, %s366
      %s369 = sphi 0, %s368
      %s383 = sphi 0, %s369
      %s387 = sphi 0, %s387
      %s389 = sphi 0, %s387
      %s390 = sphi 0, %s389
      %s404 = sphi 0, %s390
      %s408 = sphi 0, %s408
      %s410 = sphi 0, %s408
      %s411 = sphi 0, %s410
      %s425 = sphi 0, %s411
      %s429 = sphi 0, %s429
      %s431 = sphi 0, %s429
      %s432 = sphi 0, %s431
      %s446 = sphi 0, %s432
      %s450 = sphi 0, %s450
      %s452 = sphi 0, %s450
      %s453 = sphi 0, %s452
      %s467 = sphi 0, %s453
      %s475 = sphi 0, %s477
      %s478 = sphi 0, %s475
      %s479 = sphi 0, %s478
      %s495 = sphi 0, %s479
    $region4: #{tpu_custom_call.1} parent=1 // loop_header_branch
      %38 = sbr.rel (%p36) target = $region8
    $region5: #{tpu_custom_call.1} parent=1 // loop_body
      %s40 = ssub.s32 %s35, 1
      %s41 = ssub.s32 %s35, 2
      %s48 = sadd.s32 1, %s43
      %p49 = scmp.ge.s32.totalorder %s48, 1
      %s50 = scalar_select %p49, 0, %s48
      %s51 = sadd.s32 1, %s42
      %s52 = scalar_select %p49, %s51, %s42
      %p53 = scmp.ge.s32.totalorder %s52, 2
      %s54 = scalar_select %p53, 0, %s52
      %s55 = ssub.s32 %s42, %s54
      %s56 = ssub.s32 %s43, %s50
      %s57 = sor.u32 %s55, %s56
      %p58 = scmp.eq.s32.totalorder %s57, 0
      %s60 = sadd.s32 %s59, 1
      %s61 = scalar_select %p58, %s59, %s60
      %p64 = pneg %p58
      %p65 = scmp.eq.s32.totalorder %s35, 1
      %p66 = por %p64, %p65
      %p67 = scmp.ne.s32.totalorder %s59, %s62
      %p68 = scmp.eq.s32.totalorder %s35, 0
      %p69 = por %p67, %p68
      %p70 = scmp.ne.s32.totalorder %s59, %s62
      %p71 = scmp.eq.s32.totalorder %s40, 1
      %p72 = por %p70, %p71
      %p73 = scmp.ne.s32.totalorder %s62, %s63
      %p74 = scmp.eq.s32.totalorder %s40, 0
      %p75 = por %p73, %p74
      %p76 = scmp.ne.s32.totalorder %s62, %s63
      %p77 = scmp.eq.s32.totalorder %s41, 1
      %p78 = por %p76, %p77
      %p80 = scmp.ne.s32.totalorder %s63, %s79
      %p81 = scmp.eq.s32.totalorder %s41, 0
      %p82 = por %p80, %p81
      %s83 = ssub.s32 %s42, %s54
      %p84 = scmp.eq.s32.totalorder %s83, 0
      %s86 = sadd.s32 %s85, 1
      %s87 = scalar_select %p84, %s85, %s86
      %p90 = pneg %p84
      %p91 = scmp.eq.s32.totalorder %s35, 1
      %p92 = por %p90, %p91
      %p93 = scmp.ne.s32.totalorder %s85, %s88
      %p94 = scmp.eq.s32.totalorder %s35, 0
      %p95 = por %p93, %p94
      %p96 = scmp.ne.s32.totalorder %s85, %s88
      %p97 = scmp.eq.s32.totalorder %s40, 1
      %p98 = por %p96, %p97
      %p99 = scmp.ne.s32.totalorder %s88, %s89
      %p100 = scmp.eq.s32.totalorder %s40, 0
      %p101 = por %p99, %p100
      %p102 = scmp.ne.s32.totalorder %s88, %s89
      %p103 = scmp.eq.s32.totalorder %s41, 1
      %p104 = por %p102, %p103
      %p106 = scmp.ne.s32.totalorder %s89, %s105
      %p107 = scmp.eq.s32.totalorder %s41, 0
      %p108 = por %p106, %p107
      %s109 = ssub.s32 %s42, %s54
      %p110 = scmp.eq.s32.totalorder %s109, 0
      %s112 = sadd.s32 %s111, 1
      %s113 = scalar_select %p110, %s111, %s112
      %p116 = pneg %p110
      %p117 = scmp.eq.s32.totalorder %s35, 1
      %p118 = por %p116, %p117
      %p119 = scmp.ne.s32.totalorder %s111, %s114
      %p120 = scmp.eq.s32.totalorder %s35, 0
      %p121 = por %p119, %p120
      %p122 = scmp.ne.s32.totalorder %s111, %s114
      %p123 = scmp.eq.s32.totalorder %s40, 1
      %p124 = por %p122, %p123
      %p125 = scmp.ne.s32.totalorder %s114, %s115
      %p126 = scmp.eq.s32.totalorder %s40, 0
      %p127 = por %p125, %p126
      %p128 = scmp.ne.s32.totalorder %s114, %s115
      %p129 = scmp.eq.s32.totalorder %s41, 1
      %p130 = por %p128, %p129
      %p132 = scmp.ne.s32.totalorder %s115, %s131
      %p133 = scmp.eq.s32.totalorder %s41, 0
      %p134 = por %p132, %p133
      %s136 = sadd.s32 %s135, 1
      %p139 = scmp.eq.s32.totalorder %s35, 1
      %p140 = scmp.ne.s32.totalorder %s135, %s137
      %p141 = scmp.eq.s32.totalorder %s35, 0
      %p142 = por %p140, %p141
      %p143 = scmp.ne.s32.totalorder %s135, %s137
      %p144 = scmp.eq.s32.totalorder %s40, 1
      %p145 = por %p143, %p144
      %p146 = scmp.ne.s32.totalorder %s137, %s138
      %p147 = scmp.eq.s32.totalorder %s40, 0
      %p148 = por %p146, %p147
      %p149 = scmp.ne.s32.totalorder %s137, %s138
      %p150 = scmp.eq.s32.totalorder %s41, 1
      %p151 = por %p149, %p150
      %p153 = scmp.ne.s32.totalorder %s138, %s152
      %p154 = scmp.eq.s32.totalorder %s41, 0
      %p155 = por %p153, %p154
      %s157 = sadd.s32 %s156, 1
      %p160 = scmp.eq.s32.totalorder %s35, 1
      %p161 = scmp.ne.s32.totalorder %s156, %s158
      %p162 = scmp.eq.s32.totalorder %s35, 0
      %p163 = por %p161, %p162
      %p164 = scmp.ne.s32.totalorder %s156, %s158
      %p165 = scmp.eq.s32.totalorder %s40, 1
      %p166 = por %p164, %p165
      %p167 = scmp.ne.s32.totalorder %s158, %s159
      %p168 = scmp.eq.s32.totalorder %s40, 0
      %p169 = por %p167, %p168
      %p170 = scmp.ne.s32.totalorder %s158, %s159
      %p171 = scmp.eq.s32.totalorder %s41, 1
      %p172 = por %p170, %p171
      %p174 = scmp.ne.s32.totalorder %s159, %s173
      %p175 = scmp.eq.s32.totalorder %s41, 0
      %p176 = por %p174, %p175
      %s178 = sadd.s32 %s177, 1
      %p181 = scmp.eq.s32.totalorder %s35, 1
      %p182 = scmp.ne.s32.totalorder %s177, %s179
      %p183 = scmp.eq.s32.totalorder %s35, 0
      %p184 = por %p182, %p183
      %p185 = scmp.ne.s32.totalorder %s177, %s179
      %p186 = scmp.eq.s32.totalorder %s40, 1
      %p187 = por %p185, %p186
      %p188 = scmp.ne.s32.totalorder %s179, %s180
      %p189 = scmp.eq.s32.totalorder %s40, 0
      %p190 = por %p188, %p189
      %p191 = scmp.ne.s32.totalorder %s179, %s180
      %p192 = scmp.eq.s32.totalorder %s41, 1
      %p193 = por %p191, %p192
      %p195 = scmp.ne.s32.totalorder %s180, %s194
      %p196 = scmp.eq.s32.totalorder %s41, 0
      %p197 = por %p195, %p196
      %s199 = sadd.s32 %s198, 1
      %p202 = scmp.eq.s32.totalorder %s35, 1
      %p203 = scmp.ne.s32.totalorder %s198, %s200
      %p204 = scmp.eq.s32.totalorder %s35, 0
      %p205 = por %p203, %p204
      %p206 = scmp.ne.s32.totalorder %s198, %s200
      %p207 = scmp.eq.s32.totalorder %s40, 1
      %p208 = por %p206, %p207
      %p209 = scmp.ne.s32.totalorder %s200, %s201
      %p210 = scmp.eq.s32.totalorder %s40, 0
      %p211 = por %p209, %p210
      %p212 = scmp.ne.s32.totalorder %s200, %s201
      %p213 = scmp.eq.s32.totalorder %s41, 1
      %p214 = por %p212, %p213
      %p216 = scmp.ne.s32.totalorder %s201, %s215
      %p217 = scmp.eq.s32.totalorder %s41, 0
      %p218 = por %p216, %p217
      %s220 = sadd.s32 %s219, 1
      %p223 = scmp.eq.s32.totalorder %s35, 1
      %p224 = scmp.ne.s32.totalorder %s219, %s221
      %p225 = scmp.eq.s32.totalorder %s35, 0
      %p226 = por %p224, %p225
      %p227 = scmp.ne.s32.totalorder %s219, %s221
      %p228 = scmp.eq.s32.totalorder %s40, 1
      %p229 = por %p227, %p228
      %p230 = scmp.ne.s32.totalorder %s221, %s222
      %p231 = scmp.eq.s32.totalorder %s40, 0
      %p232 = por %p230, %p231
      %p233 = scmp.ne.s32.totalorder %s221, %s222
      %p234 = scmp.eq.s32.totalorder %s41, 1
      %p235 = por %p233, %p234
      %p237 = scmp.ne.s32.totalorder %s222, %s236
      %p238 = scmp.eq.s32.totalorder %s41, 0
      %p239 = por %p237, %p238
      %s241 = sadd.s32 %s240, 1
      %p244 = scmp.eq.s32.totalorder %s35, 1
      %p245 = scmp.ne.s32.totalorder %s240, %s242
      %p246 = scmp.eq.s32.totalorder %s35, 0
      %p247 = por %p245, %p246
      %p248 = scmp.ne.s32.totalorder %s240, %s242
      %p249 = scmp.eq.s32.totalorder %s40, 1
      %p250 = por %p248, %p249
      %p251 = scmp.ne.s32.totalorder %s242, %s243
      %p252 = scmp.eq.s32.totalorder %s40, 0
      %p253 = por %p251, %p252
      %p254 = scmp.ne.s32.totalorder %s242, %s243
      %p255 = scmp.eq.s32.totalorder %s41, 1
      %p256 = por %p254, %p255
      %p258 = scmp.ne.s32.totalorder %s243, %s257
      %p259 = scmp.eq.s32.totalorder %s41, 0
      %p260 = por %p258, %p259
      %s262 = sadd.s32 %s261, 1
      %p265 = scmp.eq.s32.totalorder %s35, 1
      %p266 = scmp.ne.s32.totalorder %s261, %s263
      %p267 = scmp.eq.s32.totalorder %s35, 0
      %p268 = por %p266, %p267
      %p269 = scmp.ne.s32.totalorder %s261, %s263
      %p270 = scmp.eq.s32.totalorder %s40, 1
      %p271 = por %p269, %p270
      %p272 = scmp.ne.s32.totalorder %s263, %s264
      %p273 = scmp.eq.s32.totalorder %s40, 0
      %p274 = por %p272, %p273
      %p275 = scmp.ne.s32.totalorder %s263, %s264
      %p276 = scmp.eq.s32.totalorder %s41, 1
      %p277 = por %p275, %p276
      %p279 = scmp.ne.s32.totalorder %s264, %s278
      %p280 = scmp.eq.s32.totalorder %s41, 0
      %p281 = por %p279, %p280
      %s283 = sadd.s32 %s282, 1
      %p286 = scmp.eq.s32.totalorder %s35, 1
      %p287 = scmp.ne.s32.totalorder %s282, %s284
      %p288 = scmp.eq.s32.totalorder %s35, 0
      %p289 = por %p287, %p288
      %p290 = scmp.ne.s32.totalorder %s282, %s284
      %p291 = scmp.eq.s32.totalorder %s40, 1
      %p292 = por %p290, %p291
      %p293 = scmp.ne.s32.totalorder %s284, %s285
      %p294 = scmp.eq.s32.totalorder %s40, 0
      %p295 = por %p293, %p294
      %p296 = scmp.ne.s32.totalorder %s284, %s285
      %p297 = scmp.eq.s32.totalorder %s41, 1
      %p298 = por %p296, %p297
      %p300 = scmp.ne.s32.totalorder %s285, %s299
      %p301 = scmp.eq.s32.totalorder %s41, 0
      %p302 = por %p300, %p301
      %s304 = sadd.s32 %s303, 1
      %p307 = scmp.eq.s32.totalorder %s35, 1
      %p308 = scmp.ne.s32.totalorder %s303, %s305
      %p309 = scmp.eq.s32.totalorder %s35, 0
      %p310 = por %p308, %p309
      %p311 = scmp.ne.s32.totalorder %s303, %s305
      %p312 = scmp.eq.s32.totalorder %s40, 1
      %p313 = por %p311, %p312
      %p314 = scmp.ne.s32.totalorder %s305, %s306
      %p315 = scmp.eq.s32.totalorder %s40, 0
      %p316 = por %p314, %p315
      %p317 = scmp.ne.s32.totalorder %s305, %s306
      %p318 = scmp.eq.s32.totalorder %s41, 1
      %p319 = por %p317, %p318
      %p321 = scmp.ne.s32.totalorder %s306, %s320
      %p322 = scmp.eq.s32.totalorder %s41, 0
      %p323 = por %p321, %p322
      %s325 = sadd.s32 %s324, 1
      %p328 = scmp.eq.s32.totalorder %s35, 1
      %p329 = scmp.ne.s32.totalorder %s324, %s326
      %p330 = scmp.eq.s32.totalorder %s35, 0
      %p331 = por %p329, %p330
      %p332 = scmp.ne.s32.totalorder %s324, %s326
      %p333 = scmp.eq.s32.totalorder %s40, 1
      %p334 = por %p332, %p333
      %p335 = scmp.ne.s32.totalorder %s326, %s327
      %p336 = scmp.eq.s32.totalorder %s40, 0
      %p337 = por %p335, %p336
      %p338 = scmp.ne.s32.totalorder %s326, %s327
      %p339 = scmp.eq.s32.totalorder %s41, 1
      %p340 = por %p338, %p339
      %p342 = scmp.ne.s32.totalorder %s327, %s341
      %p343 = scmp.eq.s32.totalorder %s41, 0
      %p344 = por %p342, %p343
      %s346 = sadd.s32 %s345, 1
      %p349 = scmp.eq.s32.totalorder %s35, 1
      %p350 = scmp.ne.s32.totalorder %s345, %s347
      %p351 = scmp.eq.s32.totalorder %s35, 0
      %p352 = por %p350, %p351
      %p353 = scmp.ne.s32.totalorder %s345, %s347
      %p354 = scmp.eq.s32.totalorder %s40, 1
      %p355 = por %p353, %p354
      %p356 = scmp.ne.s32.totalorder %s347, %s348
      %p357 = scmp.eq.s32.totalorder %s40, 0
      %p358 = por %p356, %p357
      %p359 = scmp.ne.s32.totalorder %s347, %s348
      %p360 = scmp.eq.s32.totalorder %s41, 1
      %p361 = por %p359, %p360
      %p363 = scmp.ne.s32.totalorder %s348, %s362
      %p364 = scmp.eq.s32.totalorder %s41, 0
      %p365 = por %p363, %p364
      %s367 = sadd.s32 %s366, 1
      %p370 = scmp.eq.s32.totalorder %s35, 1
      %p371 = scmp.ne.s32.totalorder %s366, %s368
      %p372 = scmp.eq.s32.totalorder %s35, 0
      %p373 = por %p371, %p372
      %p374 = scmp.ne.s32.totalorder %s366, %s368
      %p375 = scmp.eq.s32.totalorder %s40, 1
      %p376 = por %p374, %p375
      %p377 = scmp.ne.s32.totalorder %s368, %s369
      %p378 = scmp.eq.s32.totalorder %s40, 0
      %p379 = por %p377, %p378
      %p380 = scmp.ne.s32.totalorder %s368, %s369
      %p381 = scmp.eq.s32.totalorder %s41, 1
      %p382 = por %p380, %p381
      %p384 = scmp.ne.s32.totalorder %s369, %s383
      %p385 = scmp.eq.s32.totalorder %s41, 0
      %p386 = por %p384, %p385
      %s388 = sadd.s32 %s387, 1
      %p391 = scmp.eq.s32.totalorder %s35, 1
      %p392 = scmp.ne.s32.totalorder %s387, %s389
      %p393 = scmp.eq.s32.totalorder %s35, 0
      %p394 = por %p392, %p393
      %p395 = scmp.ne.s32.totalorder %s387, %s389
      %p396 = scmp.eq.s32.totalorder %s40, 1
      %p397 = por %p395, %p396
      %p398 = scmp.ne.s32.totalorder %s389, %s390
      %p399 = scmp.eq.s32.totalorder %s40, 0
      %p400 = por %p398, %p399
      %p401 = scmp.ne.s32.totalorder %s389, %s390
      %p402 = scmp.eq.s32.totalorder %s41, 1
      %p403 = por %p401, %p402
      %p405 = scmp.ne.s32.totalorder %s390, %s404
      %p406 = scmp.eq.s32.totalorder %s41, 0
      %p407 = por %p405, %p406
      %s409 = sadd.s32 %s408, 1
      %p412 = scmp.eq.s32.totalorder %s35, 1
      %p413 = scmp.ne.s32.totalorder %s408, %s410
      %p414 = scmp.eq.s32.totalorder %s35, 0
      %p415 = por %p413, %p414
      %p416 = scmp.ne.s32.totalorder %s408, %s410
      %p417 = scmp.eq.s32.totalorder %s40, 1
      %p418 = por %p416, %p417
      %p419 = scmp.ne.s32.totalorder %s410, %s411
      %p420 = scmp.eq.s32.totalorder %s40, 0
      %p421 = por %p419, %p420
      %p422 = scmp.ne.s32.totalorder %s410, %s411
      %p423 = scmp.eq.s32.totalorder %s41, 1
      %p424 = por %p422, %p423
      %p426 = scmp.ne.s32.totalorder %s411, %s425
      %p427 = scmp.eq.s32.totalorder %s41, 0
      %p428 = por %p426, %p427
      %s430 = sadd.s32 %s429, 1
      %p433 = scmp.eq.s32.totalorder %s35, 1
      %p434 = scmp.ne.s32.totalorder %s429, %s431
      %p435 = scmp.eq.s32.totalorder %s35, 0
      %p436 = por %p434, %p435
      %p437 = scmp.ne.s32.totalorder %s429, %s431
      %p438 = scmp.eq.s32.totalorder %s40, 1
      %p439 = por %p437, %p438
      %p440 = scmp.ne.s32.totalorder %s431, %s432
      %p441 = scmp.eq.s32.totalorder %s40, 0
      %p442 = por %p440, %p441
      %p443 = scmp.ne.s32.totalorder %s431, %s432
      %p444 = scmp.eq.s32.totalorder %s41, 1
      %p445 = por %p443, %p444
      %p447 = scmp.ne.s32.totalorder %s432, %s446
      %p448 = scmp.eq.s32.totalorder %s41, 0
      %p449 = por %p447, %p448
      %s451 = sadd.s32 %s450, 1
      %p454 = scmp.eq.s32.totalorder %s35, 1
      %p455 = scmp.ne.s32.totalorder %s450, %s452
      %p456 = scmp.eq.s32.totalorder %s35, 0
      %p457 = por %p455, %p456
      %p458 = scmp.ne.s32.totalorder %s450, %s452
      %p459 = scmp.eq.s32.totalorder %s40, 1
      %p460 = por %p458, %p459
      %p461 = scmp.ne.s32.totalorder %s452, %s453
      %p462 = scmp.eq.s32.totalorder %s40, 0
      %p463 = por %p461, %p462
      %p464 = scmp.ne.s32.totalorder %s452, %s453
      %p465 = scmp.eq.s32.totalorder %s41, 1
      %p466 = por %p464, %p465
      %p468 = scmp.ne.s32.totalorder %s453, %s467
      %p469 = scmp.eq.s32.totalorder %s41, 0
      %p470 = por %p468, %p469
      %s471 = ssub.s32 %s42, %s54
      %s472 = ssub.s32 %s43, %s50
      %s473 = sor.u32 %s471, %s472
      %p474 = scmp.eq.s32.totalorder %s473, 0
      %s476 = sadd.s32 %s475, 1
      %s477 = scalar_select %p474, %s475, %s476
      %p480 = pneg %p474
      %p481 = scmp.eq.s32.totalorder %s35, 1
      %p482 = por %p480, %p481
      %p483 = scmp.ne.s32.totalorder %s475, %s478
      %p484 = scmp.eq.s32.totalorder %s35, 0
      %p485 = por %p483, %p484
      %p486 = scmp.ne.s32.totalorder %s475, %s478
      %p487 = scmp.eq.s32.totalorder %s40, 1
      %p488 = por %p486, %p487
      %p489 = scmp.ne.s32.totalorder %s478, %s479
      %p490 = scmp.eq.s32.totalorder %s40, 0
      %p491 = por %p489, %p490
      %p492 = scmp.ne.s32.totalorder %s478, %s479
      %p493 = scmp.eq.s32.totalorder %s41, 1
      %p494 = por %p492, %p493
      %p496 = scmp.ne.s32.totalorder %s479, %s495
      %p497 = scmp.eq.s32.totalorder %s41, 0
      %p498 = por %p496, %p497
      %p499 = scmp.le.s32.totalorder 1, %s35
      %p500 = scmp.lt.s32.totalorder %s35, 3
      %p501 = pnand %p499, %p500
      %p502 = pneg %p501
      // Predicated region
      $region9: #{tpu_custom_call.1} parent=5 // pred_check
        _
      $region10: #{tpu_custom_call.1} parent=5 // pred_check_branch
        %504 = sbr.rel (%p501) target = $region12
      $region11: #{tpu_custom_call.1} parent=5 // pred_region
        %s505 = ssub.s32 %s35, 1
        // Predicated region
        $region13: #{tpu_custom_call.1} parent=11 // pred_check
          %p506 = pneg %p148
        $region14: #{tpu_custom_call.1} parent=11 // pred_check_branch
          %508 = sbr.rel (%p506) target = $region16
        $region15: #{tpu_custom_call.1} parent=11 // pred_region
          _
        $region16: #{tpu_custom_call.1} parent=11 // pred_fallthru
          _
        // Predicated region
        $region17: #{tpu_custom_call.1} parent=11 // pred_check
          %p509 = pneg %p169
        $region18: #{tpu_custom_call.1} parent=11 // pred_check_branch
          %511 = sbr.rel (%p509) target = $region20
        $region19: #{tpu_custom_call.1} parent=11 // pred_region
          _
        $region20: #{tpu_custom_call.1} parent=11 // pred_fallthru
          _
        // Predicated region
        $region21: #{tpu_custom_call.1} parent=11 // pred_check
          %p512 = pneg %p190
        $region22: #{tpu_custom_call.1} parent=11 // pred_check_branch
          %514 = sbr.rel (%p512) target = $region24
        $region23: #{tpu_custom_call.1} parent=11 // pred_region
          _
        $region24: #{tpu_custom_call.1} parent=11 // pred_fallthru
          _
        // Predicated region
        $region25: #{tpu_custom_call.1} parent=11 // pred_check
          %p515 = pneg %p211
        $region26: #{tpu_custom_call.1} parent=11 // pred_check_branch
          %517 = sbr.rel (%p515) target = $region28
        $region27: #{tpu_custom_call.1} parent=11 // pred_region
          _
        $region28: #{tpu_custom_call.1} parent=11 // pred_fallthru
          _
        // Predicated region
        $region29: #{tpu_custom_call.1} parent=11 // pred_check
          %p518 = pneg %p232
        $region30: #{tpu_custom_call.1} parent=11 // pred_check_branch
          %520 = sbr.rel (%p518) target = $region32
        $region31: #{tpu_custom_call.1} parent=11 // pred_region
          %522 = vsyncadd [#allocation9], 0
          %s523 = sshll.u32 %s7, 4
          %s524 = int_to_ptr.hbm [resolvable:$true] %s523
          %s525 = sshll.u32 [#allocation10], 4
          %s526 = int_to_ptr.vmem [resolvable:$true] %s525
          %531 = dma.hbm_to_vmem [thread:$0]  %s524, 256, %s526, [#allocation9], 64, 64, 4
        $region32: #{tpu_custom_call.1} parent=11 // pred_fallthru
          _
        // Predicated region
        $region33: #{tpu_custom_call.1} parent=11 // pred_check
          %p532 = pneg %p253
        $region34: #{tpu_custom_call.1} parent=11 // pred_check_branch
          %534 = sbr.rel (%p532) target = $region36
        $region35: #{tpu_custom_call.1} parent=11 // pred_region
          _
        $region36: #{tpu_custom_call.1} parent=11 // pred_fallthru
          _
        // Predicated region
        $region37: #{tpu_custom_call.1} parent=11 // pred_check
          %p535 = pneg %p274
        $region38: #{tpu_custom_call.1} parent=11 // pred_check_branch
          %537 = sbr.rel (%p535) target = $region40
        $region39: #{tpu_custom_call.1} parent=11 // pred_region
          %539 = vsyncadd [#allocation12], 0
          %s540 = sshll.u32 %s9, 4
          %s541 = int_to_ptr.hbm [resolvable:$true] %s540
          %s542 = sshll.u32 [#allocation11], 4
          %s543 = int_to_ptr.vmem [resolvable:$true] %s542
          %548 = dma.hbm_to_vmem [thread:$0]  %s541, 256, %s543, [#allocation12], 64, 64, 4
        $region40: #{tpu_custom_call.1} parent=11 // pred_fallthru
          _
        // Predicated region
        $region41: #{tpu_custom_call.1} parent=11 // pred_check
          %p549 = pneg %p295
        $region42: #{tpu_custom_call.1} parent=11 // pred_check_branch
          %551 = sbr.rel (%p549) target = $region44
        $region43: #{tpu_custom_call.1} parent=11 // pred_region
          _
        $region44: #{tpu_custom_call.1} parent=11 // pred_fallthru
          _
        // Predicated region
        $region45: #{tpu_custom_call.1} parent=11 // pred_check
          %p552 = pneg %p316
        $region46: #{tpu_custom_call.1} parent=11 // pred_check_branch
          %554 = sbr.rel (%p552) target = $region48
        $region47: #{tpu_custom_call.1} parent=11 // pred_region
          _
        $region48: #{tpu_custom_call.1} parent=11 // pred_fallthru
          _
        // Predicated region
        $region49: #{tpu_custom_call.1} parent=11 // pred_check
          %p555 = pneg %p337
        $region50: #{tpu_custom_call.1} parent=11 // pred_check_branch
          %557 = sbr.rel (%p555) target = $region52
        $region51: #{tpu_custom_call.1} parent=11 // pred_region
          _
        $region52: #{tpu_custom_call.1} parent=11 // pred_fallthru
          _
        // Predicated region
        $region53: #{tpu_custom_call.1} parent=11 // pred_check
          %p558 = pneg %p358
        $region54: #{tpu_custom_call.1} parent=11 // pred_check_branch
          %560 = sbr.rel (%p558) target = $region56
        $region55: #{tpu_custom_call.1} parent=11 // pred_region
          %562 = vsyncadd [#allocation12], 0
          %s563 = sshll.u32 %s13, 4
          %s564 = int_to_ptr.hbm [resolvable:$true] %s563
          %s565 = sshll.u32 [#allocation13], 4
          %s566 = int_to_ptr.vmem [resolvable:$true] %s565
          %571 = dma.hbm_to_vmem [thread:$0]  %s564, 256, %s566, [#allocation12], 64, 64, 4
        $region56: #{tpu_custom_call.1} parent=11 // pred_fallthru
          _
        // Predicated region
        $region57: #{tpu_custom_call.1} parent=11 // pred_check
          %p572 = pneg %p379
        $region58: #{tpu_custom_call.1} parent=11 // pred_check_branch
          %574 = sbr.rel (%p572) target = $region60
        $region59: #{tpu_custom_call.1} parent=11 // pred_region
          _
        $region60: #{tpu_custom_call.1} parent=11 // pred_fallthru
          _
        // Predicated region
        $region61: #{tpu_custom_call.1} parent=11 // pred_check
          %p575 = pneg %p400
        $region62: #{tpu_custom_call.1} parent=11 // pred_check_branch
          %577 = sbr.rel (%p575) target = $region64
        $region63: #{tpu_custom_call.1} parent=11 // pred_region
          _
        $region64: #{tpu_custom_call.1} parent=11 // pred_fallthru
          _
        // Predicated region
        $region65: #{tpu_custom_call.1} parent=11 // pred_check
          %p578 = pneg %p421
        $region66: #{tpu_custom_call.1} parent=11 // pred_check_branch
          %580 = sbr.rel (%p578) target = $region68
        $region67: #{tpu_custom_call.1} parent=11 // pred_region
          _
        $region68: #{tpu_custom_call.1} parent=11 // pred_fallthru
          _
        // Predicated region
        $region69: #{tpu_custom_call.1} parent=11 // pred_check
          %p581 = pneg %p442
        $region70: #{tpu_custom_call.1} parent=11 // pred_check_branch
          %583 = sbr.rel (%p581) target = $region72
        $region71: #{tpu_custom_call.1} parent=11 // pred_region
          _
        $region72: #{tpu_custom_call.1} parent=11 // pred_fallthru
          _
        // Predicated region
        $region73: #{tpu_custom_call.1} parent=11 // pred_check
          %p584 = pneg %p463
        $region74: #{tpu_custom_call.1} parent=11 // pred_check_branch
          %586 = sbr.rel (%p584) target = $region76
        $region75: #{tpu_custom_call.1} parent=11 // pred_region
          _
        $region76: #{tpu_custom_call.1} parent=11 // pred_fallthru
          _
      $region12: #{tpu_custom_call.1} parent=5 // pred_fallthru
        _
      %p587 = scmp.lt.s32.totalorder %s35, 2
      // Predicated region
      $region77: #{tpu_custom_call.1} parent=5 // pred_check
        %p588 = pneg %p587
      $region78: #{tpu_custom_call.1} parent=5 // pred_check_branch
        %590 = sbr.rel (%p588) target = $region80
      $region79: #{tpu_custom_call.1} parent=5 // pred_region
        // Predicated region
        $region81: #{tpu_custom_call.1} parent=79 // pred_check
          %p591 = pneg %p69
        $region82: #{tpu_custom_call.1} parent=79 // pred_check_branch
          %593 = sbr.rel (%p591) target = $region84
        $region83: #{tpu_custom_call.1} parent=79 // pred_region
          %p594 = scmp.lt.s32.totalorder %s42, 1
          %s595 = scalar_select %p594, %s42, 1
          %p596 = scmp.lt.s32.totalorder %s43, 0
          %s597 = scalar_select %p596, %s43, 0
          %s598 = sadd.s32 %s597, %s595
          %s599 = smul.addr %s598, 8
          %s600 = scalar_lea.vmem %s0, %s599
        $region84: #{tpu_custom_call.1} parent=79 // pred_fallthru
          _
        // Predicated region
        $region85: #{tpu_custom_call.1} parent=79 // pred_check
          %p601 = pneg %p95
        $region86: #{tpu_custom_call.1} parent=79 // pred_check_branch
          %603 = sbr.rel (%p601) target = $region88
        $region87: #{tpu_custom_call.1} parent=79 // pred_region
          %s604 = sand.u32 %s85, 1
          %s605 = scalar_lea.sflag [#allocation6], %s604
          %s606 = sand.u32 %s85, 1
          %s607 = smul.addr %s606, 4
          %s608 = scalar_lea.vmem [#allocation5], %s607
          %610 = vsyncadd %s605, 0
          %s611 = smul.addr %s42, 4
          %s612 = scalar_lea.hbm %s1, %s611
          %s614 = sshll.u32 %s612, 4
          %s615 = int_to_ptr.hbm [resolvable:$true] %s614
          %s616 = sshll.u32 %s608, 4
          %s617 = int_to_ptr.vmem [resolvable:$true] %s616
          %619 = dma.hbm_to_vmem [thread:$0]  %s615, 64, %s617, %s605
        $region88: #{tpu_custom_call.1} parent=79 // pred_fallthru
          _
        // Predicated region
        $region89: #{tpu_custom_call.1} parent=79 // pred_check
          %p620 = pneg %p121
        $region90: #{tpu_custom_call.1} parent=79 // pred_check_branch
          %622 = sbr.rel (%p620) target = $region92
        $region91: #{tpu_custom_call.1} parent=79 // pred_region
          %s623 = sand.u32 %s35, 1
          %s624 = scalar_lea.sflag [#allocation9], %s623
          %s625 = sand.u32 %s111, 1
          %s626 = scalar_lea.vmem [#allocation8], %s625
          %628 = vsyncadd %s624, 0
          %s629 = scalar_lea.hbm %s2, %s42
          %s631 = sshll.u32 %s629, 4
          %s632 = int_to_ptr.hbm [resolvable:$true] %s631
          %s633 = sshll.u32 %s626, 4
          %s634 = int_to_ptr.vmem [resolvable:$true] %s633
          %636 = dma.hbm_to_vmem [thread:$0]  %s632, 16, %s634, %s624
        $region92: #{tpu_custom_call.1} parent=79 // pred_fallthru
          _
      $region80: #{tpu_custom_call.1} parent=5 // pred_fallthru
        _
      %p637 = scmp.le.s32.totalorder 1, %s35
      %p638 = scmp.lt.s32.totalorder %s35, 3
      %p639 = pnand %p637, %p638
      %p640 = pneg %p639
      // Predicated region
      $region93: #{tpu_custom_call.1} parent=5 // pred_check
        _
      $region94: #{tpu_custom_call.1} parent=5 // pred_check_branch
        %642 = sbr.rel (%p639) target = $region96
      $region95: #{tpu_custom_call.1} parent=5 // pred_region
        %s643 = ssub.s32 %s35, 1
        %s644 = sand.u32 %s88, 1
        %s645 = scalar_lea.sflag [#allocation6], %s644
        %s646 = sand.u32 %s88, 1
        %s647 = smul.addr %s646, 4
        %s648 = scalar_lea.vmem [#allocation5], %s647
        // Predicated region
        $region97: #{tpu_custom_call.1} parent=95 // pred_check
          %p649 = pneg %p101
        $region98: #{tpu_custom_call.1} parent=95 // pred_check_branch
          %651 = sbr.rel (%p649) target = $region100
        $region99: #{tpu_custom_call.1} parent=95 // pred_region
          %653 = dma.done %s645, 64
        $region100: #{tpu_custom_call.1} parent=95 // pred_fallthru
          _
        %s654 = sand.u32 %s40, 1
        %s655 = scalar_lea.sflag [#allocation9], %s654
        %s656 = sand.u32 %s114, 1
        %s657 = scalar_lea.vmem [#allocation8], %s656
        // Predicated region
        $region101: #{tpu_custom_call.1} parent=95 // pred_check
          %p658 = pneg %p127
        $region102: #{tpu_custom_call.1} parent=95 // pred_check_branch
          %660 = sbr.rel (%p658) target = $region104
        $region103: #{tpu_custom_call.1} parent=95 // pred_region
          %662 = dma.done %s655, 16
        $region104: #{tpu_custom_call.1} parent=95 // pred_fallthru
          _
        // Predicated region
        $region105: #{tpu_custom_call.1} parent=95 // pred_check
          %p663 = pneg %p232
        $region106: #{tpu_custom_call.1} parent=95 // pred_check_branch
          %665 = sbr.rel (%p663) target = $region108
        $region107: #{tpu_custom_call.1} parent=95 // pred_region
          %667 = dma.done [#allocation9], 256
        $region108: #{tpu_custom_call.1} parent=95 // pred_fallthru
          _
        // Predicated region
        $region109: #{tpu_custom_call.1} parent=95 // pred_check
          %p668 = pneg %p274
        $region110: #{tpu_custom_call.1} parent=95 // pred_check_branch
          %670 = sbr.rel (%p668) target = $region112
        $region111: #{tpu_custom_call.1} parent=95 // pred_region
          %672 = dma.done [#allocation12], 256
        $region112: #{tpu_custom_call.1} parent=95 // pred_fallthru
          _
        // Predicated region
        $region113: #{tpu_custom_call.1} parent=95 // pred_check
          %p673 = pneg %p358
        $region114: #{tpu_custom_call.1} parent=95 // pred_check_branch
          %675 = sbr.rel (%p673) target = $region116
        $region115: #{tpu_custom_call.1} parent=95 // pred_region
          %677 = dma.done [#allocation12], 256
        $region116: #{tpu_custom_call.1} parent=95 // pred_fallthru
          _
        %p678 = scmp.lt.s32.totalorder %s44, 1
        %s679 = scalar_select %p678, %s44, 1
        %p680 = scmp.lt.s32.totalorder %s45, 0
        %s681 = scalar_select %p680, %s45, 0
        %s682 = sadd.s32 %s681, %s679
        %s683 = smul.addr %s682, 8
        %s684 = scalar_lea.vmem %s0, %s683
        %p685 = pneg %p75
        %p686 = pneg %p72
        %s687 = sand.u32 %s88, 1
        %s688 = scalar_lea.sflag [#allocation6], %s687
        %s689 = sand.u32 %s88, 1
        %s690 = smul.addr %s689, 4
        %s691 = scalar_lea.vmem [#allocation5], %s690
        %p692 = pneg %p101
        %p693 = pneg %p98
        %s694 = sand.u32 %s40, 1
        %s695 = scalar_lea.sflag [#allocation9], %s694
        %s696 = sand.u32 %s114, 1
        %s697 = scalar_lea.vmem [#allocation8], %s696
        %p698 = pneg %p127
        %p699 = pneg %p124
        %p700 = pneg %p148
        %p701 = pneg %p145
        %p702 = pneg %p169
        %p703 = pneg %p166
        %p704 = pneg %p190
        %p705 = pneg %p187
        %p706 = pneg %p211
        %p707 = pneg %p208
        %p708 = pneg %p232
        %p709 = pneg %p229
        %p710 = pneg %p253
        %p711 = pneg %p250
        %p712 = pneg %p274
        %p713 = pneg %p271
        %p714 = pneg %p295
        %p715 = pneg %p292
        %p716 = pneg %p316
        %p717 = pneg %p313
        %p718 = pneg %p337
        %p719 = pneg %p334
        %p720 = pneg %p358
        %p721 = pneg %p355
        %p722 = pneg %p379
        %p723 = pneg %p376
        %p724 = pneg %p400
        %p725 = pneg %p397
        %p726 = pneg %p421
        %p727 = pneg %p418
        %p728 = pneg %p442
        %p729 = pneg %p439
        %p730 = pneg %p463
        %p731 = pneg %p460
        %p732 = pneg %p491
        %p733 = pneg %p488
        %s734 = sand.u32 %s478, 1
        %s735 = scalar_lea.sflag [#allocation7], %s734
        %s736 = sand.u32 %s478, 1
        %s737 = smul.addr %s736, 8
        %s738 = scalar_lea.vmem [#allocation14], %s737
        %p739 = scmp.lt.s32.totalorder %s44, 1
        %s740 = scalar_select %p739, %s44, 1
        %p741 = scmp.lt.s32.totalorder %s45, 0
        %s742 = scalar_select %p741, %s45, 0
        %s743 = sadd.s32 %s742, %s740
        %s744 = smul.addr %s743, 8
        %s745 = scalar_lea.vmem %s0, %s744
        %v747 = vld [vmem:[%s745] sm:$0xff]
        %p748 = scmp.eq.s32.totalorder %s45, 0
        // Predicated region
        $region117: #{tpu_custom_call.1} parent=95 // pred_check
          %p749 = pneg %p748
        $region118: #{tpu_custom_call.1} parent=95 // pred_check_branch
          %751 = sbr.rel (%p749) target = $region120
        $region119: #{tpu_custom_call.1} parent=95 // pred_region
          %v752 = vld [vmem:[%s648] sm:$0xf]
          %v753 = vld [vmem:[%s5] sm:$0xf]
          %v754 = vld [vmem:[%s5 + $0x4] sm:$0xf]
          %v755 = vld [vmem:[%s5 + $0x8] sm:$0xf]
          %v756 = vld [vmem:[%s5 + $0xc] sm:$0xf]
          %v757 = vld [vmem:[%s6] sm:$0x1]
          %v759 = vperm.slane %v757, 0
          %v765 = vunpack.c.l.b16 %v753
          %v766 = vunpack.c.l.b16 %v754
          %v767 = vunpack.c.l.b16 %v755
          %v768 = vunpack.c.l.b16 %v756
          %v769 = vpack.c.b16 %v766, %v765
          %v770 = vpack.c.b16 %v768, %v767
          %vm773 = vcmask 261120
          %v775 = vsel %vm773, %v752, 0
          %777 = vmatpush.bf16.msra.mxu0 0
          %778 = vmatpush.bf16.msra.mxu0 0
          %779 = vmatpush.bf16.msra.mxu0 0
          %780 = vmatpush.bf16.msra.mxu0 0
          %781 = vmatpush.bf16.msra.mxu0 0
          %782 = vmatpush.bf16.msra.mxu0 0
          %783 = vmatpush.bf16.msra.mxu0 %v770
          %784 = vmatpush.bf16.msra.mxu0 %v769
          %785 = vmatmul.bf16.gmra.mxu0 %v775
          %v786 = vpop.f32.mrf.mxu0
          %v787 = vadd.f32 %v759, %v786
          %v788 = vpop.f32.mrf.mxu0
          %789 = vdwg.mxu0
          %v790 = vld [vmem:[#allocation10] sm:$0xf]
          %v791 = vld [vmem:[#allocation10 + $0x4] sm:$0xf]
          %v792 = vld [vmem:[#allocation10 + $0x8] sm:$0xf]
          %v793 = vld [vmem:[#allocation10 + $0xc] sm:$0xf]
          %v794 = vld [vmem:[%s8] sm:$0x1]
          %v796 = vperm.slane %v794, 0
          %v802 = vunpack.c.l.b16 %v790
          %v803 = vunpack.c.l.b16 %v791
          %v804 = vunpack.c.l.b16 %v792
          %v805 = vunpack.c.l.b16 %v793
          %v806 = vpack.c.b16 %v803, %v802
          %v807 = vpack.c.b16 %v805, %v804
          %810 = vmatpush.bf16.msra.mxu0 0
          %811 = vmatpush.bf16.msra.mxu0 0
          %812 = vmatpush.bf16.msra.mxu0 0
          %813 = vmatpush.bf16.msra.mxu0 0
          %814 = vmatpush.bf16.msra.mxu0 0
          %815 = vmatpush.bf16.msra.mxu0 0
          %816 = vmatpush.bf16.msra.mxu0 %v807
          %817 = vmatpush.bf16.msra.mxu0 %v806
          %818 = vmatmul.bf16.gmra.mxu0 %v775
          %v819 = vpop.f32.mrf.mxu0
          %v820 = vadd.f32 %v796, %v819
          %v821 = vpop.f32.mrf.mxu0
          %822 = vdwg.mxu0
          %v823 = vpack.c.bf16 %v787, %v787
          %v824 = vpack.c.bf16 %v820, %v820
          %vm825 = vcmask 60416
          %826 = vst.msk [vmem:[#allocation3] sm:$0xf] %vm825, %v823
          %827 = vst.msk [vmem:[#allocation4] sm:$0xf] %vm825, %v824
          %829 = vrot.lane.b32.xlu0 %v823, 120
          %v830 = vpop.permute.xlu0 %829
          %s832 = scalar_lea.vmem [#allocation3], 4
          %833 = vst.msk [vmem:[%s832] sm:$0xf] %vm825, %v830
          %835 = vrot.lane.b32.xlu0 %v824, 120
          %v836 = vpop.permute.xlu0 %835
          %s838 = scalar_lea.vmem [#allocation4], 4
          %839 = vst.msk [vmem:[%s838] sm:$0xf] %vm825, %v836
          %840 = vrot.lane.b32.xlu0 %v823, 112
          %v841 = vpop.permute.xlu0 %840
          %s843 = scalar_lea.vmem [#allocation3], 8
          %844 = vst.msk [vmem:[%s843] sm:$0xf] %vm825, %v841
          %845 = vrot.lane.b32.xlu0 %v824, 112
          %v846 = vpop.permute.xlu0 %845
          %s848 = scalar_lea.vmem [#allocation4], 8
          %849 = vst.msk [vmem:[%s848] sm:$0xf] %vm825, %v846
          %850 = vrot.lane.b32.xlu0 %v823, 104
          %v851 = vpop.permute.xlu0 %850
          %s853 = scalar_lea.vmem [#allocation3], 12
          %854 = vst.msk [vmem:[%s853] sm:$0xf] %vm825, %v851
          %855 = vrot.lane.b32.xlu0 %v824, 104
          %v856 = vpop.permute.xlu0 %855
          %s858 = scalar_lea.vmem [#allocation4], 12
          %859 = vst.msk [vmem:[%s858] sm:$0xf] %vm825, %v856
        $region120: #{tpu_custom_call.1} parent=95 // pred_fallthru
          _
        %v860 = vpack.c.bf16 %v747, %v747
        %v861 = vld [vmem:[%s3] sm:$0xf]
        %v862 = vld [vmem:[%s3 + $0x4] sm:$0xf]
        %v863 = vld [vmem:[%s3 + $0x8] sm:$0xf]
        %v864 = vld [vmem:[%s3 + $0xc] sm:$0xf]
        %v865 = vld [vmem:[%s4] sm:$0x1]
        %v867 = vperm.slane %v865, 0
        %v873 = vunpack.c.l.b16 %v861
        %v874 = vunpack.c.l.b16 %v862
        %v875 = vunpack.c.l.b16 %v863
        %v876 = vunpack.c.l.b16 %v864
        %v877 = vpack.c.b16 %v874, %v873
        %v878 = vpack.c.b16 %v876, %v875
        %vm881 = vcmask 261120
        %v883 = vsel %vm881, %v860, 0
        %885 = vmatpush.bf16.msra.mxu0 0
        %886 = vmatpush.bf16.msra.mxu0 0
        %887 = vmatpush.bf16.msra.mxu0 0
        %888 = vmatpush.bf16.msra.mxu0 0
        %889 = vmatpush.bf16.msra.mxu0 0
        %890 = vmatpush.bf16.msra.mxu0 0
        %891 = vmatpush.bf16.msra.mxu0 %v878
        %892 = vmatpush.bf16.msra.mxu0 %v877
        %893 = vmatmul.bf16.gmra.mxu0 %v883
        %v894 = vpop.f32.mrf.mxu0
        %v895 = vadd.f32 %v867, %v894
        %v896 = vpop.f32.mrf.mxu0
        %897 = vdwg.mxu0
        %v898 = vmul.f32 %v895, 0.35355338
        %v899 = vpack.c.bf16 %v898, %v898
        %vm900 = vcmask 60416
        %901 = vst.msk [vmem:[#allocation2] sm:$0xf] %vm900, %v899
        %903 = vrot.lane.b32.xlu0 %v899, 120
        %v904 = vpop.permute.xlu0 %903
        %s906 = scalar_lea.vmem [#allocation2], 4
        %907 = vst.msk [vmem:[%s906] sm:$0xf] %vm900, %v904
        %908 = vrot.lane.b32.xlu0 %v899, 112
        %v909 = vpop.permute.xlu0 %908
        %s911 = scalar_lea.vmem [#allocation2], 8
        %912 = vst.msk [vmem:[%s911] sm:$0xf] %vm900, %v909
        %913 = vrot.lane.b32.xlu0 %v899, 104
        %v914 = vpop.permute.xlu0 %913
        %s916 = scalar_lea.vmem [#allocation2], 12
        %917 = vst.msk [vmem:[%s916] sm:$0xf] %vm900, %v914
        %v918 = vld [vmem:[#allocation2] sm:$0xf]
        %v919 = vld [vmem:[#allocation2 + $0x4] sm:$0xf]
        %v920 = vld [vmem:[#allocation2 + $0x8] sm:$0xf]
        %v921 = vld [vmem:[#allocation2 + $0xc] sm:$0xf]
        %v922 = vld [vmem:[#allocation3] sm:$0xf]
        %v923 = vld [vmem:[#allocation3 + $0x4] sm:$0xf]
        %v924 = vld [vmem:[#allocation3 + $0x8] sm:$0xf]
        %v925 = vld [vmem:[#allocation3 + $0xc] sm:$0xf]
        %v926 = vld [vmem:[#allocation4] sm:$0xf]
        %v927 = vld [vmem:[#allocation4 + $0x4] sm:$0xf]
        %v928 = vld [vmem:[#allocation4 + $0x8] sm:$0xf]
        %v929 = vld [vmem:[#allocation4 + $0xc] sm:$0xf]
        %v930 = vld [vmem:[%s657] sm:$0x1]
        %v932 = vperm.slane %v930, 0
        %vm934 = vcmask 64512
        %v936 = vsel %vm934, %v918, 0
        %v939 = vsel %vm934, %v922, 0
        %941 = vmatpush.bf16.xpose.msra.mxu0 0
        %942 = vmatpush.bf16.xpose.msra.mxu0 0
        %943 = vmatpush.bf16.xpose.msra.mxu0 0
        %944 = vmatpush.bf16.xpose.msra.mxu0 0
        %945 = vmatpush.bf16.xpose.msra.mxu0 0
        %946 = vmatpush.bf16.xpose.msra.mxu0 0
        %947 = vmatpush.bf16.xpose.msra.mxu0 0
        %948 = vmatpush.bf16.xpose.msra.mxu0 %v939
        %949 = vmatmul.bf16.gmra.mxu0 %v936
        %v950 = vpop.f32.mrf.mxu0
        %v951 = vadd.f32 %v932, %v950
        %v952 = vpop.f32.mrf.mxu0
        %953 = vdwg.mxu0
        %v955 = vsel %vm934, %v919, 0
        %v958 = vsel %vm934, %v923, 0
        %960 = vmatpush.bf16.xpose.msra.mxu0 0
        %961 = vmatpush.bf16.xpose.msra.mxu0 0
        %962 = vmatpush.bf16.xpose.msra.mxu0 0
        %963 = vmatpush.bf16.xpose.msra.mxu0 0
        %964 = vmatpush.bf16.xpose.msra.mxu0 0
        %965 = vmatpush.bf16.xpose.msra.mxu0 0
        %966 = vmatpush.bf16.xpose.msra.mxu0 0
        %967 = vmatpush.bf16.xpose.msra.mxu0 %v958
        %968 = vmatmul.bf16.gmra.mxu0 %v955
        %v969 = vpop.f32.mrf.mxu0
        %v970 = vadd.f32 %v932, %v969
        %v971 = vpop.f32.mrf.mxu0
        %972 = vdwg.mxu0
        %v974 = vsel %vm934, %v920, 0
        %v977 = vsel %vm934, %v924, 0
        %979 = vmatpush.bf16.xpose.msra.mxu0 0
        %980 = vmatpush.bf16.xpose.msra.mxu0 0
        %981 = vmatpush.bf16.xpose.msra.mxu0 0
        %982 = vmatpush.bf16.xpose.msra.mxu0 0
        %983 = vmatpush.bf16.xpose.msra.mxu0 0
        %984 = vmatpush.bf16.xpose.msra.mxu0 0
        %985 = vmatpush.bf16.xpose.msra.mxu0 0
        %986 = vmatpush.bf16.xpose.msra.mxu0 %v977
        %987 = vmatmul.bf16.gmra.mxu0 %v974
        %v988 = vpop.f32.mrf.mxu0
        %v989 = vadd.f32 %v932, %v988
        %v990 = vpop.f32.mrf.mxu0
        %991 = vdwg.mxu0
        %v993 = vsel %vm934, %v921, 0
        %v996 = vsel %vm934, %v925, 0
        %998 = vmatpush.bf16.xpose.msra.mxu0 0
        %999 = vmatpush.bf16.xpose.msra.mxu0 0
        %1000 = vmatpush.bf16.xpose.msra.mxu0 0
        %1001 = vmatpush.bf16.xpose.msra.mxu0 0
        %1002 = vmatpush.bf16.xpose.msra.mxu0 0
        %1003 = vmatpush.bf16.xpose.msra.mxu0 0
        %1004 = vmatpush.bf16.xpose.msra.mxu0 0
        %1005 = vmatpush.bf16.xpose.msra.mxu0 %v996
        %1006 = vmatmul.bf16.gmra.mxu0 %v993
        %v1007 = vpop.f32.mrf.mxu0
        %v1008 = vadd.f32 %v932, %v1007
        %v1009 = vpop.f32.mrf.mxu0
        %1010 = vdwg.mxu0
        %v1011 = vsel %vm934, %v951, -inf
        %1012 = vmax.xlane.f32.xlu0 %v1011
        %v1013 = vpop.xlane.xlu0 %1012
        %v1014 = vsel %vm934, %v970, -inf
        %1015 = vmax.xlane.f32.xlu0 %v1014
        %v1016 = vpop.xlane.xlu0 %1015
        %v1017 = vsel %vm934, %v989, -inf
        %1018 = vmax.xlane.f32.xlu0 %v1017
        %v1019 = vpop.xlane.xlu0 %1018
        %v1020 = vsel %vm934, %v1008, -inf
        %1021 = vmax.xlane.f32.xlu0 %v1020
        %v1022 = vpop.xlane.xlu0 %1021
        %v1023 = vmax.f32 %v1013, -1e+30
        %v1024 = vmax.f32 %v1016, -1e+30
        %v1025 = vmax.f32 %v1019, -1e+30
        %v1026 = vmax.f32 %v1022, -1e+30
        %v1027 = vsub.f32 -1e+30, %v1023
        %v1028 = vsub.f32 -1e+30, %v1024
        %v1029 = vsub.f32 -1e+30, %v1025
        %v1030 = vsub.f32 -1e+30, %v1026
        %v1031 = vmul.f32 %v1027, 1.442695
        %v1032 = vpow.pop %v1031
        %v1033 = vmul.f32 %v1028, 1.442695
        %v1034 = vpow.pop %v1033
        %v1035 = vmul.f32 %v1029, 1.442695
        %v1036 = vpow.pop %v1035
        %v1037 = vmul.f32 %v1030, 1.442695
        %v1038 = vpow.pop %v1037
        %v1039 = vsub.f32 %v951, %v1023
        %v1040 = vsub.f32 %v970, %v1024
        %v1041 = vsub.f32 %v989, %v1025
        %v1042 = vsub.f32 %v1008, %v1026
        %v1043 = vmul.f32 %v1039, 1.442695
        %v1044 = vpow.pop %v1043
        %v1045 = vmul.f32 %v1040, 1.442695
        %v1046 = vpow.pop %v1045
        %v1047 = vmul.f32 %v1041, 1.442695
        %v1048 = vpow.pop %v1047
        %v1049 = vmul.f32 %v1042, 1.442695
        %v1050 = vpow.pop %v1049
        %v1051 = vmul.f32 %v1032, 0.0
        %v1052 = vmul.f32 %v1034, 0.0
        %v1053 = vmul.f32 %v1036, 0.0
        %v1054 = vmul.f32 %v1038, 0.0
        %v1055 = vsel %vm934, %v1044, 0.0
        %1056 = vadd.xlane.f32.xlu0 %v1055
        %v1057 = vpop.xlane.xlu0 %1056
        %v1058 = vsel %vm934, %v1046, 0.0
        %1059 = vadd.xlane.f32.xlu0 %v1058
        %v1060 = vpop.xlane.xlu0 %1059
        %v1061 = vsel %vm934, %v1048, 0.0
        %1062 = vadd.xlane.f32.xlu0 %v1061
        %v1063 = vpop.xlane.xlu0 %1062
        %v1064 = vsel %vm934, %v1050, 0.0
        %1065 = vadd.xlane.f32.xlu0 %v1064
        %v1066 = vpop.xlane.xlu0 %1065
        %v1067 = vadd.f32 %v1051, %v1057
        %v1068 = vadd.f32 %v1052, %v1060
        %v1069 = vadd.f32 %v1053, %v1063
        %v1070 = vadd.f32 %v1054, %v1066
        %v1071 = vpack.c.bf16 %v1044, %v1044
        %v1072 = vpack.c.bf16 %v1046, %v1046
        %v1073 = vpack.c.bf16 %v1048, %v1048
        %v1074 = vpack.c.bf16 %v1050, %v1050
        %v1076 = vsel %vm934, %v1071, 0
        %vm1078 = vcmask 1043456
        %v1080 = vsel %vm1078, %v926, 0
        %1082 = vmatpush.bf16.msra.mxu0 0
        %1083 = vmatpush.bf16.msra.mxu0 0
        %1084 = vmatpush.bf16.msra.mxu0 0
        %1085 = vmatpush.bf16.msra.mxu0 0
        %1086 = vmatpush.bf16.msra.mxu0 0
        %1087 = vmatpush.bf16.msra.mxu0 0
        %1088 = vmatpush.bf16.msra.mxu0 0
        %1089 = vmatpush.bf16.msra.mxu0 %v1080
        %1090 = vmatmul.bf16.gmra.mxu0 %v1076
        %v1091 = vpop.f32.mrf.mxu0
        %v1092 = vadd.f32 0.0, %v1091
        %v1093 = vpop.f32.mrf.mxu0
        %1094 = vdwg.mxu0
        %v1096 = vsel %vm934, %v1072, 0
        %v1099 = vsel %vm1078, %v927, 0
        %1101 = vmatpush.bf16.msra.mxu0 0
        %1102 = vmatpush.bf16.msra.mxu0 0
        %1103 = vmatpush.bf16.msra.mxu0 0
        %1104 = vmatpush.bf16.msra.mxu0 0
        %1105 = vmatpush.bf16.msra.mxu0 0
        %1106 = vmatpush.bf16.msra.mxu0 0
        %1107 = vmatpush.bf16.msra.mxu0 0
        %1108 = vmatpush.bf16.msra.mxu0 %v1099
        %1109 = vmatmul.bf16.gmra.mxu0 %v1096
        %v1110 = vpop.f32.mrf.mxu0
        %v1111 = vadd.f32 0.0, %v1110
        %v1112 = vpop.f32.mrf.mxu0
        %1113 = vdwg.mxu0
        %v1115 = vsel %vm934, %v1073, 0
        %v1118 = vsel %vm1078, %v928, 0
        %1120 = vmatpush.bf16.msra.mxu0 0
        %1121 = vmatpush.bf16.msra.mxu0 0
        %1122 = vmatpush.bf16.msra.mxu0 0
        %1123 = vmatpush.bf16.msra.mxu0 0
        %1124 = vmatpush.bf16.msra.mxu0 0
        %1125 = vmatpush.bf16.msra.mxu0 0
        %1126 = vmatpush.bf16.msra.mxu0 0
        %1127 = vmatpush.bf16.msra.mxu0 %v1118
        %1128 = vmatmul.bf16.gmra.mxu0 %v1115
        %v1129 = vpop.f32.mrf.mxu0
        %v1130 = vadd.f32 0.0, %v1129
        %v1131 = vpop.f32.mrf.mxu0
        %1132 = vdwg.mxu0
        %v1134 = vsel %vm934, %v1074, 0
        %v1137 = vsel %vm1078, %v929, 0
        %1139 = vmatpush.bf16.msra.mxu0 0
        %1140 = vmatpush.bf16.msra.mxu0 0
        %1141 = vmatpush.bf16.msra.mxu0 0
        %1142 = vmatpush.bf16.msra.mxu0 0
        %1143 = vmatpush.bf16.msra.mxu0 0
        %1144 = vmatpush.bf16.msra.mxu0 0
        %1145 = vmatpush.bf16.msra.mxu0 0
        %1146 = vmatpush.bf16.msra.mxu0 %v1137
        %1147 = vmatmul.bf16.gmra.mxu0 %v1134
        %v1148 = vpop.f32.mrf.mxu0
        %v1149 = vadd.f32 0.0, %v1148
        %v1150 = vpop.f32.mrf.mxu0
        %1151 = vdwg.mxu0
        %v1152 = vadd.f32 %v1051, %v1092
        %v1153 = vadd.f32 %v1052, %v1111
        %v1154 = vadd.f32 %v1053, %v1130
        %v1155 = vadd.f32 %v1054, %v1149
        %v1156 = vrcp.pop %v1067
        %v1157 = vrcp.pop %v1068
        %v1158 = vrcp.pop %v1069
        %v1159 = vrcp.pop %v1070
        %v1160 = vmul.f32 %v1152, %v1156
        %v1161 = vmul.f32 %v1153, %v1157
        %v1162 = vmul.f32 %v1154, %v1158
        %v1163 = vmul.f32 %v1155, %v1159
        %v1164 = vpack.c.bf16 %v1160, %v1160
        %v1165 = vld [vmem:[#allocation11] sm:$0xf]
        %v1166 = vpack.c.bf16 %v1161, %v1161
        %s1167 = scalar_lea.vmem [#allocation11], 4
        %v1168 = vld [vmem:[%s1167] sm:$0xf]
        %v1170 = vsel %vm934, %v1166, 0
        %v1173 = vsel %vm1078, %v1168, 0
        %1175 = vmatpush.bf16.msra.mxu0 0
        %1176 = vmatpush.bf16.msra.mxu0 0
        %1177 = vmatpush.bf16.msra.mxu0 0
        %1178 = vmatpush.bf16.msra.mxu0 0
        %1179 = vmatpush.bf16.msra.mxu0 0
        %1180 = vmatpush.bf16.msra.mxu0 0
        %1181 = vmatpush.bf16.msra.mxu0 0
        %1182 = vmatpush.bf16.msra.mxu0 %v1173
        %1183 = vmatmul.bf16.gmra.mxu0 %v1170
        %v1184 = vpop.f32.mrf.mxu0
        %v1185 = vadd.f32 0.0, %v1184
        %v1186 = vpop.f32.mrf.mxu0
        %1187 = vdwg.mxu0
        %v1189 = vsel %vm934, %v1164, 0
        %v1192 = vsel %vm1078, %v1165, 0
        %1194 = vmatpush.bf16.msra.mxu0 0
        %1195 = vmatpush.bf16.msra.mxu0 0
        %1196 = vmatpush.bf16.msra.mxu0 0
        %1197 = vmatpush.bf16.msra.mxu0 0
        %1198 = vmatpush.bf16.msra.mxu0 0
        %1199 = vmatpush.bf16.msra.mxu0 0
        %1200 = vmatpush.bf16.msra.mxu0 0
        %1201 = vmatpush.bf16.msra.mxu0 %v1192
        %1202 = vmatmul.bf16.gmra.mxu0 %v1189
        %v1203 = vpop.f32.mrf.mxu0
        %v1204 = vadd.f32 %v1185, %v1203
        %v1205 = vpop.f32.mrf.mxu0
        %1206 = vdwg.mxu0
        %v1207 = vpack.c.bf16 %v1162, %v1162
        %s1208 = scalar_lea.vmem [#allocation11], 8
        %v1209 = vld [vmem:[%s1208] sm:$0xf]
        %v1211 = vsel %vm934, %v1207, 0
        %v1214 = vsel %vm1078, %v1209, 0
        %1216 = vmatpush.bf16.msra.mxu0 0
        %1217 = vmatpush.bf16.msra.mxu0 0
        %1218 = vmatpush.bf16.msra.mxu0 0
        %1219 = vmatpush.bf16.msra.mxu0 0
        %1220 = vmatpush.bf16.msra.mxu0 0
        %1221 = vmatpush.bf16.msra.mxu0 0
        %1222 = vmatpush.bf16.msra.mxu0 0
        %1223 = vmatpush.bf16.msra.mxu0 %v1214
        %1224 = vmatmul.bf16.gmra.mxu0 %v1211
        %v1225 = vpop.f32.mrf.mxu0
        %v1226 = vadd.f32 0.0, %v1225
        %v1227 = vpop.f32.mrf.mxu0
        %1228 = vdwg.mxu0
        %v1229 = vadd.f32 %v1204, %v1226
        %v1230 = vpack.c.bf16 %v1163, %v1163
        %s1231 = scalar_lea.vmem [#allocation11], 12
        %v1232 = vld [vmem:[%s1231] sm:$0xf]
        %v1234 = vsel %vm934, %v1230, 0
        %v1237 = vsel %vm1078, %v1232, 0
        %1239 = vmatpush.bf16.msra.mxu0 0
        %1240 = vmatpush.bf16.msra.mxu0 0
        %1241 = vmatpush.bf16.msra.mxu0 0
        %1242 = vmatpush.bf16.msra.mxu0 0
        %1243 = vmatpush.bf16.msra.mxu0 0
        %1244 = vmatpush.bf16.msra.mxu0 0
        %1245 = vmatpush.bf16.msra.mxu0 0
        %1246 = vmatpush.bf16.msra.mxu0 %v1237
        %1247 = vmatmul.bf16.gmra.mxu0 %v1234
        %v1248 = vpop.f32.mrf.mxu0
        %v1249 = vadd.f32 0.0, %v1248
        %v1250 = vpop.f32.mrf.mxu0
        %1251 = vdwg.mxu0
        %v1252 = vadd.f32 %v1229, %v1249
        %v1253 = vld [vmem:[%s10] sm:$0x1]
        %v1255 = vperm.slane %v1253, 0
        %v1257 = vadd.f32 %v1252, %v1255
        %v1258 = vadd.f32 %v1257, %v747
        %v1259 = vld [vmem:[%s11] sm:$0x1]
        %v1260 = vld [vmem:[%s12] sm:$0x1]
        %v1261 = vsel %vm881, %v1258, 0.0
        %1262 = vadd.xlane.f32.xlu0 %v1261
        %v1263 = vpop.xlane.xlu0 %1262
        %v1264 = vrcp.pop 32.0
        %v1265 = vmul.f32 32.0, %v1264
        %v1266 = vsub.f32 1.0, %v1265
        %v1267 = vmul.f32 %v1264, %v1266
        %v1268 = vadd.f32 %v1264, %v1267
        %vm1269 = vweird.f32 %v1264
        %v1270 = vsel %vm1269, %v1264, %v1268
        %v1271 = vmul.f32 %v1263, %v1270
        %v1272 = vsub.f32 %v1258, %v1271
        %v1273 = vmul.f32 %v1272, %v1272
        %v1274 = vsel %vm881, %v1273, 0.0
        %1275 = vadd.xlane.f32.xlu0 %v1274
        %v1276 = vpop.xlane.xlu0 %1275
        %v1277 = vmul.f32 %v1276, %v1270
        %v1278 = vadd.f32 %v1277, 1e-12
        %v1279 = vrsqrt.pop %v1278
        %v1280 = vmul.f32 %v1279, %v1278
        %v1281 = vmul.f32 %v1280, %v1279
        %v1282 = vmul.f32 0.5, %v1281
        %v1283 = vsub.f32 1.5, %v1282
        %v1284 = vmul.f32 %v1279, %v1283
        %vm1285 = vweird.f32 %v1278
        %vm1286 = vweird.f32 %v1279
        %vm1287 = vmor %vm1285, %vm1286
        %v1288 = vsel %vm1287, %v1279, %v1284
        %v1289 = vmul.f32 %v1272, %v1288
        %v1291 = vperm.slane %v1259, 0
        %v1293 = vmul.f32 %v1289, %v1291
        %v1295 = vperm.slane %v1260, 0
        %v1297 = vadd.f32 %v1293, %v1295
        %v1298 = vpack.c.bf16 %v1297, %v1297
        %v1299 = vld [vmem:[#allocation13] sm:$0xf]
        %v1300 = vld [vmem:[#allocation13 + $0x4] sm:$0xf]
        %v1301 = vld [vmem:[#allocation13 + $0x8] sm:$0xf]
        %v1302 = vld [vmem:[#allocation13 + $0xc] sm:$0xf]
        %v1303 = vld [vmem:[%s14] sm:$0x1]
        %v1305 = vperm.slane %v1303, 0
        %v1311 = vunpack.c.l.b16 %v1299
        %v1312 = vunpack.c.l.b16 %v1300
        %v1313 = vunpack.c.l.b16 %v1301
        %v1314 = vunpack.c.l.b16 %v1302
        %v1315 = vpack.c.b16 %v1312, %v1311
        %v1316 = vpack.c.b16 %v1314, %v1313
        %v1320 = vsel %vm881, %v1298, 0
        %1322 = vmatpush.bf16.msra.mxu0 0
        %1323 = vmatpush.bf16.msra.mxu0 0
        %1324 = vmatpush.bf16.msra.mxu0 0
        %1325 = vmatpush.bf16.msra.mxu0 0
        %1326 = vmatpush.bf16.msra.mxu0 0
        %1327 = vmatpush.bf16.msra.mxu0 0
        %1328 = vmatpush.bf16.msra.mxu0 %v1316
        %1329 = vmatpush.bf16.msra.mxu0 %v1315
        %1330 = vmatmul.bf16.gmra.mxu0 %v1320
        %v1331 = vpop.f32.mrf.mxu0
        %v1332 = vadd.f32 %v1305, %v1331
        %v1333 = vpop.f32.mrf.mxu0
        %1334 = vdwg.mxu0
        %v1335 = vmul.f32 %v1332, 0.5
        %v1336 = vmul.f32 %v1332, 0.044715
        %v1337 = vmul.f32 %v1336, %v1332
        %v1338 = vmul.f32 %v1337, %v1332
        %v1339 = vadd.f32 %v1332, %v1338
        %v1340 = vmul.f32 %v1339, 0.7978846
        %v1341 = vtanh.pop %v1340
        %v1342 = vadd.f32 %v1341, 1.0
        %v1343 = vmul.f32 %v1335, %v1342
        %v1344 = vpack.c.bf16 %v1343, %v1343
        %v1345 = vld [vmem:[%s15] sm:$0xf]
        %v1346 = vld [vmem:[%s15 + $0x4] sm:$0xf]
        %v1347 = vld [vmem:[%s15 + $0x8] sm:$0xf]
        %v1348 = vld [vmem:[%s15 + $0xc] sm:$0xf]
        %v1349 = vld [vmem:[%s15 + $0x10] sm:$0xf]
        %v1350 = vld [vmem:[%s15 + $0x14] sm:$0xf]
        %v1351 = vld [vmem:[%s15 + $0x18] sm:$0xf]
        %v1352 = vld [vmem:[%s15 + $0x1c] sm:$0xf]
        %v1353 = vld [vmem:[%s16] sm:$0x1]
        %v1355 = vperm.slane %v1353, 0
        %v1365 = vunpack.c.l.b16 %v1345
        %v1366 = vunpack.c.l.b16 %v1346
        %v1367 = vunpack.c.l.b16 %v1347
        %v1368 = vunpack.c.l.b16 %v1348
        %v1369 = vunpack.c.l.b16 %v1349
        %v1370 = vunpack.c.l.b16 %v1350
        %v1371 = vunpack.c.l.b16 %v1351
        %v1372 = vunpack.c.l.b16 %v1352
        %v1373 = vpack.c.b16 %v1366, %v1365
        %v1374 = vpack.c.b16 %v1368, %v1367
        %v1375 = vpack.c.b16 %v1370, %v1369
        %v1376 = vpack.c.b16 %v1372, %v1371
        %vm1381 = vcmask 523264
        %v1383 = vsel %vm1381, %v1344, 0
        %1385 = vmatpush.bf16.msra.mxu0 0
        %1386 = vmatpush.bf16.msra.mxu0 0
        %1387 = vmatpush.bf16.msra.mxu0 0
        %1388 = vmatpush.bf16.msra.mxu0 0
        %1389 = vmatpush.bf16.msra.mxu0 %v1376
        %1390 = vmatpush.bf16.msra.mxu0 %v1375
        %1391 = vmatpush.bf16.msra.mxu0 %v1374
        %1392 = vmatpush.bf16.msra.mxu0 %v1373
        %1393 = vmatmul.bf16.gmra.mxu0 %v1383
        %v1394 = vpop.f32.mrf.mxu0
        %v1395 = vadd.f32 %v1355, %v1394
        %v1396 = vpop.f32.mrf.mxu0
        %1397 = vdwg.mxu0
        %v1398 = vadd.f32 %v1395, %v1297
        %v1399 = vld [vmem:[%s17] sm:$0x1]
        %v1400 = vld [vmem:[%s18] sm:$0x1]
        %v1401 = vsel %vm881, %v1398, 0.0
        %1402 = vadd.xlane.f32.xlu0 %v1401
        %v1403 = vpop.xlane.xlu0 %1402
        %v1404 = vmul.f32 %v1403, %v1270
        %v1405 = vsub.f32 %v1398, %v1404
        %v1406 = vmul.f32 %v1405, %v1405
        %v1407 = vsel %vm881, %v1406, 0.0
        %1408 = vadd.xlane.f32.xlu0 %v1407
        %v1409 = vpop.xlane.xlu0 %1408
        %v1410 = vmul.f32 %v1409, %v1270
        %v1411 = vadd.f32 %v1410, 1e-12
        %v1412 = vrsqrt.pop %v1411
        %v1413 = vmul.f32 %v1412, %v1411
        %v1414 = vmul.f32 %v1413, %v1412
        %v1415 = vmul.f32 0.5, %v1414
        %v1416 = vsub.f32 1.5, %v1415
        %v1417 = vmul.f32 %v1412, %v1416
        %vm1418 = vweird.f32 %v1411
        %vm1419 = vweird.f32 %v1412
        %vm1420 = vmor %vm1418, %vm1419
        %v1421 = vsel %vm1420, %v1412, %v1417
        %v1422 = vmul.f32 %v1405, %v1421
        %v1424 = vperm.slane %v1399, 0
        %v1426 = vmul.f32 %v1422, %v1424
        %v1428 = vperm.slane %v1400, 0
        %v1430 = vadd.f32 %v1426, %v1428
        %1431 = vst.msk [vmem:[%s738] sm:$0xff] %vm881, %v1430
        %s1432 = sand.u32 %s478, 1
        %s1433 = scalar_lea.sflag [#allocation7], %s1432
        %s1434 = sand.u32 %s478, 1
        %s1435 = smul.addr %s1434, 8
        %s1436 = scalar_lea.vmem [#allocation14], %s1435
        // Predicated region
        $region121: #{tpu_custom_call.1} parent=95 // pred_check
          %p1437 = pneg %p488
        $region122: #{tpu_custom_call.1} parent=95 // pred_check_branch
          %1439 = sbr.rel (%p1437) target = $region124
        $region123: #{tpu_custom_call.1} parent=95 // pred_region
          %1441 = vsyncadd %s1433, 0
          %s1442 = sadd.s32 %s45, %s44
          %s1443 = smul.addr %s1442, 8
          %s1444 = scalar_lea.hbm %s19, %s1443
          %s1446 = sshll.u32 %s1436, 4
          %s1447 = int_to_ptr.vmem [resolvable:$true] %s1446
          %s1448 = sshll.u32 %s1444, 4
          %s1449 = int_to_ptr.hbm [resolvable:$true] %s1448
          %1451 = dma.vmem_to_hbm [thread:$0]  %s1447, 128, %s1449, %s1433
        $region124: #{tpu_custom_call.1} parent=95 // pred_fallthru
          _
      $region96: #{tpu_custom_call.1} parent=5 // pred_fallthru
        _
      %p1452 = scmp.le.s32.totalorder 2, %s35
      // Predicated region
      $region125: #{tpu_custom_call.1} parent=5 // pred_check
        %p1453 = pneg %p1452
      $region126: #{tpu_custom_call.1} parent=5 // pred_check_branch
        %1455 = sbr.rel (%p1453) target = $region128
      $region127: #{tpu_custom_call.1} parent=5 // pred_region
        %s1456 = ssub.s32 %s35, 2
        // Predicated region
        $region129: #{tpu_custom_call.1} parent=127 // pred_check
          %p1457 = pneg %p494
        $region130: #{tpu_custom_call.1} parent=127 // pred_check_branch
          %1459 = sbr.rel (%p1457) target = $region132
        $region131: #{tpu_custom_call.1} parent=127 // pred_region
          %s1460 = sand.u32 %s479, 1
          %s1461 = scalar_lea.sflag [#allocation7], %s1460
          %s1462 = sand.u32 %s479, 1
          %s1463 = smul.addr %s1462, 8
          %s1464 = scalar_lea.vmem [#allocation14], %s1463
          %1466 = dma.done %s1461, 128
        $region132: #{tpu_custom_call.1} parent=127 // pred_fallthru
          _
      $region128: #{tpu_custom_call.1} parent=5 // pred_fallthru
        _
    $region6: #{tpu_custom_call.1} parent=1 // loop_footer
      %s39 = sadd.s32 1, %s35
    $region7: #{tpu_custom_call.1} parent=1 // loop_footer_branch
      %34 = sbr.rel target = $region3
    $region8: #{tpu_custom_call.1} parent=1 // loop_exit
      _
    %1467 = vsyncpa [#allocation6], 1
    %s1468 = scalar_lea.sflag [#allocation6], 1
    %1469 = vsyncpa %s1468, 1
    %1470 = vsyncpa [#allocation9], 1
    %s1471 = scalar_lea.sflag [#allocation9], 1
    %1472 = vsyncpa %s1471, 1
    %1473 = vsyncpa [#allocation12], 1
    %1474 = vsyncpa [#allocation7], 1
    %s1475 = scalar_lea.sflag [#allocation7], 1
    %1476 = vsyncpa %s1475, 1

</llo_original>
